<compile_context>
chip_gen: v7x
topology: tpu7x:2x2x1
jax: 0.10.0
libtpu: 0.0.40
codegen_flags: <defaults>
</compile_context>

<pallas_src>
import jax
import jax.numpy as jnp
from jax import lax
from jax.experimental import pallas as pl
from jax.experimental.pallas import tpu as pltpu

LANES = 128


def _round_up(x, m):
    return (x + m - 1) // m * m


# ----------------------------------------------------------------------------
# Fused Pallas kernel
# ----------------------------------------------------------------------------
def _make_fused_kernel(H, W, cin_bp, cmid_bp, cout_bp, use_conv_shortcut):
    HW = H * W
    PAD = _round_up(W, 8)      # halo >= one image row (for dh = +-1)
    ROWS = 2 * PAD + HW        # W % 8 == 0 -> all row offsets stay 8-aligned
    BOT = ROWS - PAD - HW

    def kernel(*refs):
        if use_conv_shortcut:
            (x_ref, w1_ref, w2_ref, wsc_ref, bsc_ref,
             s1_ref, b1_ref, s2_ref, b2_ref, o_ref, buf1, buf2) = refs
        else:
            (x_ref, w1_ref, w2_ref,
             s1_ref, b1_ref, s2_ref, b2_ref, o_ref, buf1, buf2) = refs

        # Column-boundary masks for the dw = -1 / +1 neighbours (indexed by the
        # output pixel's w coordinate); hoisted, used once per staged segment.
        w_idx = lax.broadcasted_iota(jnp.int32, (HW, 1), 0) % W
        mask_l = w_idx > 0          # w-1 exists
        mask_r = w_idx < W - 1      # w+1 exists

        def stage(buf, val_f32, cp):
            # Zero ONLY the halo rows, every step (megacore-safe: with
            # "parallel" grid axes a core may never run program_id == 0, so
            # first-step-only init would leave its scratch halo dirty).
            buf[pl.ds(0, PAD), :] = jnp.zeros((PAD, 3 * cp), jnp.bfloat16)
            buf[pl.ds(PAD + HW, BOT), :] = jnp.zeros((BOT, 3 * cp), jnp.bfloat16)
            # Three pre-shifted, pre-masked dw segments side by side on the
            # lane axis.  Shifts use the XLU (pltpu.roll); all stores below and
            # all conv loads are (8, 128)-aligned -> no relayout copies and no
            # per-tap mask multiplies inside the conv loop.
            seg_m = jnp.where(mask_l, pltpu.roll(val_f32, shift=1, axis=0), 0.0)
            seg_p = jnp.where(mask_r, pltpu.roll(val_f32, shift=HW - 1, axis=0), 0.0)
            buf[pl.ds(PAD, HW), pl.ds(0, cp)] = seg_m.astype(jnp.bfloat16)       # dw=-1
            buf[pl.ds(PAD, HW), pl.ds(cp, cp)] = val_f32.astype(jnp.bfloat16)    # dw= 0
            buf[pl.ds(PAD, HW), pl.ds(2 * cp, cp)] = seg_p.astype(jnp.bfloat16)  # dw=+1

        def conv3x3(buf, w_ref):
            # 3 MXU matmuls with K = 3*C (the three dw taps fused along K); the
            # dh accumulation stays in values, so there is no 9x f32
            # accumulator read-modify-write in VMEM.
            out = None
            for j, dh in enumerate((-1, 0, 1)):
                patch = buf[pl.ds(PAD + dh * W, HW), :]            # aligned rows
                d = jnp.dot(patch, w_ref[j], preferred_element_type=jnp.float32)
                out = d if out is None else out + d
            return out

        # ---- stage 1: y1 = relu(bn1(dropout(conv1(x))))     (dropout = identity)
        x_f32 = x_ref[...].astype(jnp.float32)
        stage(buf1, x_f32, cin_bp)
        y1 = jnp.maximum(conv3x3(buf1, w1_ref) * s1_ref[...] + b1_ref[...], 0.0)

        # ---- stage 2: out = conv2(y1); out += shortcut(x); out = relu(bn2(out))
        # (BN2 after the residual add, matching the PyTorch forward exactly.)
        stage(buf2, y1, cmid_bp)
        out2 = conv3x3(buf2, w2_ref)
        if use_conv_shortcut:
            sc = jnp.dot(x_ref[...], wsc_ref[...],
                         preferred_element_type=jnp.float32) + bsc_ref[...]
        else:
            sc = x_f32    # identity shortcut (cin == cout per group-block)
        o_ref[...] = jnp.maximum((out2 + sc) * s2_ref[...] + b2_ref[...],
                                 0.0).astype(jnp.bfloat16)

    return kernel


# ----------------------------------------------------------------------------
# Parameter plumbing (plain-JAX glue)
# ----------------------------------------------------------------------------
def _auto_groups_per_block(groups, cin_g, cmid_g, cout_g):
    """Smallest divisor gb of `groups` such that every per-block channel width
    (gb * C_g) fills at least one 128-lane tile.  Production widths
    (C_g >= 128) => gb = 1 (true per-group matmuls); tiny per-group widths are
    coalesced into one lane-dense block-diagonal tile so padding does not blow
    up MXU work."""
    min_cg = min(cin_g, cmid_g, cout_g)
    for gb in range(1, groups + 1):
        if groups % gb == 0 and gb * min_cg >= LANES:
            return gb
    return groups


def _build_conv3x3_weight(w_pt, groups, gb, cin_bp, cout_bp):
    """PyTorch grouped conv weight [Cout, Cin//G, 3, 3] -> per-group-block
    matmul weights [NGB, 3(kh), 3*Cin_bp, Cout_bp].  The K axis is laid out as
    [dw=-1 | dw=0 | dw=+1] segments of Cin_bp lanes each, matching the staged
    activation buffer; inside a group-block the weight is block-diagonal."""
    cout, cin_g, kh, kw = w_pt.shape
    assert (kh, kw) == (3, 3)
    cout_g = cout // groups
    ngb = groups // gb
    w_hwio = jnp.transpose(w_pt, (2, 3, 1, 0)).astype(jnp.float32)  # (3,3,cin_g,cout)
    w = jnp.zeros((ngb, 3, 3, cin_bp, cout_bp), jnp.float32)
    for b in range(ngb):
        for i in range(gb):
            g = b * gb + i
            w = w.at[b, :, :, i * cin_g:(i + 1) * cin_g,
                     i * cout_g:(i + 1) * cout_g].set(
                w_hwio[:, :, :, g * cout_g:(g + 1) * cout_g])
    return w.reshape(ngb, 3, 3 * cin_bp, cout_bp).astype(jnp.bfloat16)


def _build_conv1x1_weight(w_pt, groups, gb, cin_bp, cout_bp):
    cout, cin_g = w_pt.shape[0], w_pt.shape[1]
    cout_g = cout // groups
    ngb = groups // gb
    w_io = jnp.transpose(w_pt[:, :, 0, 0], (1, 0)).astype(jnp.float32)  # (cin_g, cout)
    w = jnp.zeros((ngb, cin_bp, cout_bp), jnp.float32)
    for b in range(ngb):
        for i in range(gb):
            g = b * gb + i
            w = w.at[b, i * cin_g:(i + 1) * cin_g,
                     i * cout_g:(i + 1) * cout_g].set(
                w_io[:, g * cout_g:(g + 1) * cout_g])
    return w.astype(jnp.bfloat16)


def _fold_bn_blocked(gamma, beta, mean, var, ngb, c_bp, eps=1e-5):
    """BatchNorm (inference) folded to per-channel scale/shift, reshaped to
    (NGB, 1, C_bp) so each group-block reads only its own channels."""
    scale = (gamma / jnp.sqrt(var + eps)).astype(jnp.float32)
    shift = (beta - mean * scale).astype(jnp.float32)
    c_b = gamma.shape[0] // ngb
    pad = ((0, 0), (0, c_bp - c_b))
    scale = jnp.pad(scale.reshape(ngb, c_b), pad)[:, None, :]
    shift = jnp.pad(shift.reshape(ngb, c_b), pad)[:, None, :]
    return scale, shift


# ----------------------------------------------------------------------------
# Forward wrapper
# ----------------------------------------------------------------------------
def wide_basic_block_forward(x_nchw, params, *, num_groups, stride=1,
                             groups_per_block=None, unpack_output=True):
    assert stride == 1, "TODO(synk): stride > 1 downsampling not implemented"
    N, cin, H, W = x_nchw.shape
    assert W % 8 == 0, "W must be a multiple of 8 for aligned row slices"
    HW = H * W

    G = num_groups
    cmid = params["conv1_w"].shape[0]
    cout = params["conv2_w"].shape[0]
    assert cin % G == 0 and cmid % G == 0 and cout % G == 0
    cin_g, cmid_g, cout_g = cin // G, cmid // G, cout // G

    use_conv_shortcut = "sc_w" in params
    if not use_conv_shortcut:
        assert cin == cout, "identity shortcut requires matching channel counts"

    gb = (groups_per_block if groups_per_block is not None
          else _auto_groups_per_block(G, cin_g, cmid_g, cout_g))
    assert G % gb == 0
    ngb = G // gb
    cin_b, cmid_b, cout_b = gb * cin_g, gb * cmid_g, gb * cout_g
    cin_bp, cmid_bp, cout_bp = (_round_up(c, LANES) for c in (cin_b, cmid_b, cout_b))

    # Activations: NCHW -> (N, NGB, H*W, Cin_bp) bf16, group-blocked, lane-dense.
    x = jnp.transpose(x_nchw, (0, 2, 3, 1)).astype(jnp.float32)     # NHWC
    x = x.reshape(N, HW, ngb, cin_b).transpose(0, 2, 1, 3)
    x = jnp.pad(x, ((0, 0), (0, 0), (0, 0), (0, cin_bp - cin_b))).astype(jnp.bfloat16)

    # Weights: one block-diagonal tile per group-block, K = [dw=-1|dw=0|dw=+1].
    w1 = _build_conv3x3_weight(params["conv1_w"], G, gb, cin_bp, cmid_bp)
    w2 = _build_conv3x3_weight(params["conv2_w"], G, gb, cmid_bp, cout_bp)

    # BatchNorm folded to scale/shift (inference semantics), f32.
    s1, b1 = _fold_bn_blocked(params["bn1_w"], params["bn1_b"],
                              params["bn1_rm"], params["bn1_rv"], ngb, cmid_bp)
    s2, b2 = _fold_bn_blocked(params["bn2_w"], params["bn2_b"],
                              params["bn2_rm"], params["bn2_rv"], ngb, cout_bp)

    PAD = _round_up(W, 8)
    ROWS = 2 * PAD + HW
    single_buf = pl.Buffered(1)   # weights only change along the outer (group) axis

    args = [x, w1, w2]
    in_specs = [
        pl.BlockSpec((None, None, HW, cin_bp), lambda b, n: (n, b, 0, 0)),
        pl.BlockSpec((None, 3, 3 * cin_bp, cmid_bp), lambda b, n: (b, 0, 0, 0),
                     pipeline_mode=single_buf),
        pl.BlockSpec((None, 3, 3 * cmid_bp, cout_bp), lambda b, n: (b, 0, 0, 0),
                     pipeline_mode=single_buf),
    ]
    if use_conv_shortcut:
        wsc = _build_conv1x1_weight(params["sc_w"], G, gb, cin_bp, cout_bp)
        bsc = jnp.pad(params["sc_b"].astype(jnp.float32).reshape(ngb, cout_b),
                      ((0, 0), (0, cout_bp - cout_b)))[:, None, :]
        args += [wsc, bsc]
        in_specs += [
            pl.BlockSpec((None, cin_bp, cout_bp), lambda b, n: (b, 0, 0),
                         pipeline_mode=single_buf),
            pl.BlockSpec((None, 1, cout_bp), lambda b, n: (b, 0, 0)),
        ]
    args += [s1, b1, s2, b2]
    in_specs += [
        pl.BlockSpec((None, 1, cmid_bp), lambda b, n: (b, 0, 0)),
        pl.BlockSpec((None, 1, cmid_bp), lambda b, n: (b, 0, 0)),
        pl.BlockSpec((None, 1, cout_bp), lambda b, n: (b, 0, 0)),
        pl.BlockSpec((None, 1, cout_bp), lambda b, n: (b, 0, 0)),
    ]

    out_packed = pl.pallas_call(
        _make_fused_kernel(H, W, cin_bp, cmid_bp, cout_bp, use_conv_shortcut),
        out_shape=jax.ShapeDtypeStruct((N, ngb, HW, cout_bp), jnp.bfloat16),
        grid=(ngb, N),                         # group-block outer, batch inner
        in_specs=in_specs,
        out_specs=pl.BlockSpec((None, None, HW, cout_bp), lambda b, n: (n, b, 0, 0)),
        scratch_shapes=[
            pltpu.VMEM((ROWS, 3 * cin_bp), jnp.bfloat16),   # haloed dw-shifted x
            pltpu.VMEM((ROWS, 3 * cmid_bp), jnp.bfloat16),  # haloed dw-shifted y1
        ],
        compiler_params=pltpu.CompilerParams(
            dimension_semantics=("parallel", "parallel"),   # feeds both v7x TCs
            vmem_limit_bytes=48 * 1024 * 1024,
        ),
    )(*args)

    if not unpack_output:        # packed bf16 layout for chained blocks
        return out_packed
    out = out_packed[..., :cout_b].astype(jnp.float32)      # (N, NGB, HW, cout_b)
    out = out.transpose(0, 2, 1, 3).reshape(N, H, W, cout)
    return jnp.transpose(out, (0, 3, 1, 2))                 # back to NCHW


# ----------------------------------------------------------------------------
# Pure-JAX reference (grouped convs via lax.conv).  Inputs / weights / the
# intermediate activation are bf16-quantized at the same points as the kernel
# so the comparison isolates kernel correctness from bf16 quantisation.
# ----------------------------------------------------------------------------
def reference_forward(x_nchw, params, *, num_groups, stride=1):
    q = lambda t: t.astype(jnp.bfloat16).astype(jnp.float32)
    x = q(jnp.transpose(x_nchw, (0, 2, 3, 1)).astype(jnp.float32))
    dn = ("NHWC", "HWIO", "NHWC")

    def conv(inp, w_pt, s, pad):
        w = q(jnp.transpose(w_pt, (2, 3, 1, 0)).astype(jnp.float32))
        return lax.conv_general_dilated(inp, w, (s, s), pad,
                                        dimension_numbers=dn,
                                        feature_group_count=num_groups,
                                        precision=lax.Precision.HIGHEST)

    def bn(v, g, b, m, var, eps=1e-5):
        return (v - m) / jnp.sqrt(var + eps) * g + b

    y1 = jax.nn.relu(bn(conv(x, params["conv1_w"], 1, [(1, 1), (1, 1)]),
                        params["bn1_w"], params["bn1_b"],
                        params["bn1_rm"], params["bn1_rv"]))
    y1 = q(y1)
    out = conv(y1, params["conv2_w"], stride, [(1, 1), (1, 1)])
    if "sc_w" in params:
        sc = conv(x, params["sc_w"], stride, [(0, 0), (0, 0)]) + params["sc_b"]
    else:
        sc = x
    out = jax.nn.relu(bn(out + sc, params["bn2_w"], params["bn2_b"],
                         params["bn2_rm"], params["bn2_rv"]))
    return jnp.transpose(out, (0, 3, 1, 2))


# ----------------------------------------------------------------------------
if __name__ == "__main__":
    # WideBasicBlock(in_planes=4, planes=8, dropout_rate=0.0, stride=1,
    #                alpha=2, num_estimators=4, gamma=1, groups=1)
    in_planes, planes = 4, 8
    alpha, num_estimators, gamma_p, groups_p = 2, 4, 1, 1
    stride = 1
    G = num_estimators * gamma_p * groups_p        # actual conv groups = 4
    cin = alpha * in_planes                        # 8  (block input already packed)
    cmid = alpha * planes                          # 16
    cout = alpha * planes                          # 16
    N, H, W = 2, 16, 16

    key = jax.random.PRNGKey(0)
    ks = jax.random.split(key, 13)
    params = {
        "conv1_w": 0.2 * jax.random.normal(ks[0], (cmid, cin // G, 3, 3), jnp.float32),
        "conv2_w": 0.2 * jax.random.normal(ks[1], (cout, cmid // G, 3, 3), jnp.float32),
        "bn1_w": 0.5 + jax.random.uniform(ks[2], (cmid,), jnp.float32),
        "bn1_b": 0.1 * jax.random.normal(ks[3], (cmid,), jnp.float32),
        "bn1_rm": 0.1 * jax.random.normal(ks[4], (cmid,), jnp.float32),
        "bn1_rv": 0.5 + jax.random.uniform(ks[5], (cmid,), jnp.float32),
        "bn2_w": 0.5 + jax.random.uniform(ks[6], (cout,), jnp.float32),
        "bn2_b": 0.1 * jax.random.normal(ks[7], (cout,), jnp.float32),
        "bn2_rm": 0.1 * jax.random.normal(ks[8], (cout,), jnp.float32),
        "bn2_rv": 0.5 + jax.random.uniform(ks[9], (cout,), jnp.float32),
    }
    if stride != 1 or in_planes != planes:         # shortcut = 1x1 packed conv w/ bias
        params["sc_w"] = 0.2 * jax.random.normal(ks[10], (cout, cin // G, 1, 1), jnp.float32)
        params["sc_b"] = 0.1 * jax.random.normal(ks[11], (cout,), jnp.float32)

    x = jax.random.normal(ks[12], (N, cin, H, W), jnp.float32)    # NCHW, like PyTorch

    ref = reference_forward(x, params, num_groups=G, stride=stride)

    # (a) auto group-block size (tiny groups coalesced into one lane-dense tile)
    out_auto = jax.block_until_ready(
        wide_basic_block_forward(x, params, num_groups=G, stride=stride))
    # (b) true per-group path (groups_per_block=1), as used at production widths
    out_pg = jax.block_until_ready(
        wide_basic_block_forward(x, params, num_groups=G, stride=stride,
                                 groups_per_block=1))

    for out in (out_auto, out_pg):
        assert out.shape == (N, cout, H, W), out.shape
        err = float(jnp.max(jnp.abs(out - ref) / (1.0 + jnp.abs(ref))))
        assert err < 1e-2, f"relative err {err}"
    print("KERNEL_OK")
</pallas_src>

<mosaic_0001>
module attributes {stable_mosaic.version = 11 : i64} {
  func.func @kernel(%arg0: i32, %arg1: i32, %arg2: memref<1x1x256x128xbf16, #tpu.memory_space<vmem>>, %arg3: memref<1x3x384x128xbf16, #tpu.memory_space<vmem>>, %arg4: memref<1x3x384x128xbf16, #tpu.memory_space<vmem>>, %arg5: memref<1x128x128xbf16, #tpu.memory_space<vmem>>, %arg6: memref<1x1x128xf32, #tpu.memory_space<vmem>>, %arg7: memref<1x1x128xf32, #tpu.memory_space<vmem>>, %arg8: memref<1x1x128xf32, #tpu.memory_space<vmem>>, %arg9: memref<1x1x128xf32, #tpu.memory_space<vmem>>, %arg10: memref<1x1x128xf32, #tpu.memory_space<vmem>>, %arg11: memref<1x1x256x128xbf16, #tpu.memory_space<vmem>>, %arg12: memref<288x384xbf16, #tpu.memory_space<vmem>>, %arg13: memref<288x384xbf16, #tpu.memory_space<vmem>>) attributes {dimension_semantics = [#tpu.dimension_semantics<parallel>, #tpu.dimension_semantics<parallel>], iteration_bounds = array<i64: 1, 2>, scalar_prefetch = 0 : i64, scratch_operands = 2 : i64, tpu.core_type = #tpu.core_type<tc>, window_params = [{transform_indices = @transform_0, window_bounds = array<i64: 1, 1, 256, 128>}, {pipeline_mode = #tpu.pipeline_mode<synchronous>, transform_indices = @transform_1, window_bounds = array<i64: 1, 3, 384, 128>}, {pipeline_mode = #tpu.pipeline_mode<synchronous>, transform_indices = @transform_2, window_bounds = array<i64: 1, 3, 384, 128>}, {pipeline_mode = #tpu.pipeline_mode<synchronous>, transform_indices = @transform_3, window_bounds = array<i64: 1, 128, 128>}, {transform_indices = @transform_4, window_bounds = array<i64: 1, 1, 128>}, {transform_indices = @transform_5, window_bounds = array<i64: 1, 1, 128>}, {transform_indices = @transform_6, window_bounds = array<i64: 1, 1, 128>}, {transform_indices = @transform_7, window_bounds = array<i64: 1, 1, 128>}, {transform_indices = @transform_8, window_bounds = array<i64: 1, 1, 128>}, {transform_indices = @transform_9, window_bounds = array<i64: 1, 1, 256, 128>}]} {
    %0 = tpu.iota {dimensions = array<i32: 0>} : vector<256x1xi32>
    %c16_i32 = arith.constant 16 : i32
    %c0_i32 = arith.constant 0 : i32
    %1 = arith.cmpi eq, %c16_i32, %c0_i32 : i32
    %c1_i32 = arith.constant 1 : i32
    %2 = arith.select %1, %c1_i32, %c16_i32 : i32
    %3 = vector.broadcast %2 : i32 to vector<256x1xi32>
    %4 = arith.remsi %0, %3 : vector<256x1xi32>
    %c0_i32_0 = arith.constant 0 : i32
    %5 = vector.broadcast %c0_i32_0 : i32 to vector<256x1xi32>
    %6 = arith.cmpi ne, %4, %5 : vector<256x1xi32>
    %c0_i32_1 = arith.constant 0 : i32
    %7 = vector.broadcast %c0_i32_1 : i32 to vector<256x1xi32>
    %8 = arith.cmpi slt, %4, %7 : vector<256x1xi32>
    %c0_i32_2 = arith.constant 0 : i32
    %9 = arith.cmpi slt, %2, %c0_i32_2 : i32
    %10 = vector.broadcast %9 : i1 to vector<256x1xi1>
    %11 = vector.broadcast %10 : vector<256x1xi1> to vector<256x1xi1>
    %12 = arith.xori %8, %11 : vector<256x1xi1>
    %13 = arith.andi %12, %6 : vector<256x1xi1>
    %14 = vector.broadcast %2 : i32 to vector<256x1xi32>
    %15 = arith.addi %4, %14 : vector<256x1xi32>
    %16 = arith.select %13, %15, %4 : vector<256x1xi1>, vector<256x1xi32>
    %c0_i32_3 = arith.constant 0 : i32
    %17 = vector.broadcast %c0_i32_3 : i32 to vector<256x1xi32>
    %18 = arith.cmpi sgt, %16, %17 : vector<256x1xi32>
    %c15_i32 = arith.constant 15 : i32
    %19 = vector.broadcast %c15_i32 : i32 to vector<256x1xi32>
    %20 = arith.cmpi slt, %16, %19 : vector<256x1xi32>
    %c0 = arith.constant 0 : index
    %c0_4 = arith.constant 0 : index
    %c0_5 = arith.constant 0 : index
    %c0_6 = arith.constant 0 : index
    %21 = vector.load %arg2[%c0, %c0_4, %c0_5, %c0_6] : memref<1x1x256x128xbf16, #tpu.memory_space<vmem>>, vector<1x1x256x128xbf16>
    %22 = vector.shape_cast %21 : vector<1x1x256x128xbf16> to vector<256x128xbf16>
    %23 = arith.extf %22 : vector<256x128xbf16> to vector<256x128xf32>
    %cst = arith.constant 0.000000e+00 : bf16
    %24 = vector.broadcast %cst : bf16 to vector<16x384xbf16>
    %c0_7 = arith.constant 0 : index
    %c0_8 = arith.constant 0 : index
    %25 = vector.load %arg12[%c0_7, %c0_8] : memref<288x384xbf16, #tpu.memory_space<vmem>>, vector<16x384xbf16>
    tpu.vector_store %arg12[%c0_7, %c0_8], %24 {strides = array<i32>} : memref<288x384xbf16, #tpu.memory_space<vmem>>, vector<16x384xbf16>,
    %cst_9 = arith.constant 0.000000e+00 : bf16
    %26 = vector.broadcast %cst_9 : bf16 to vector<16x384xbf16>
    %c272 = arith.constant 272 : index
    %c0_10 = arith.constant 0 : index
    %27 = vector.load %arg12[%c272, %c0_10] : memref<288x384xbf16, #tpu.memory_space<vmem>>, vector<16x384xbf16>
    tpu.vector_store %arg12[%c272, %c0_10], %26 {strides = array<i32>} : memref<288x384xbf16, #tpu.memory_space<vmem>>, vector<16x384xbf16>,
    %c1_i32_11 = arith.constant 1 : i32
    %28 = tpu.dynamic_rotate %23 by %c1_i32_11 dim 0 : vector<256x128xf32>, i32 -> vector<256x128xf32>
    %cst_12 = arith.constant 0.000000e+00 : f32
    %29 = vector.shape_cast %18 : vector<256x1xi1> to vector<256x1xi1>
    %30 = vector.broadcast %29 : vector<256x1xi1> to vector<256x128xi1>
    %31 = vector.broadcast %cst_12 : f32 to vector<256x128xf32>
    %32 = arith.select %30, %28, %31 : vector<256x128xi1>, vector<256x128xf32>
    %c255_i32 = arith.constant 255 : i32
    %33 = tpu.dynamic_rotate %23 by %c255_i32 dim 0 : vector<256x128xf32>, i32 -> vector<256x128xf32>
    %cst_13 = arith.constant 0.000000e+00 : f32
    %34 = vector.shape_cast %20 : vector<256x1xi1> to vector<256x1xi1>
    %35 = vector.broadcast %34 : vector<256x1xi1> to vector<256x128xi1>
    %36 = vector.broadcast %cst_13 : f32 to vector<256x128xf32>
    %37 = arith.select %35, %33, %36 : vector<256x128xi1>, vector<256x128xf32>
    %38 = arith.truncf %32 : vector<256x128xf32> to vector<256x128xbf16>
    %c16 = arith.constant 16 : index
    %c0_14 = arith.constant 0 : index
    %39 = vector.load %arg12[%c16, %c0_14] : memref<288x384xbf16, #tpu.memory_space<vmem>>, vector<256x128xbf16>
    tpu.vector_store %arg12[%c16, %c0_14], %38 {strides = array<i32>} : memref<288x384xbf16, #tpu.memory_space<vmem>>, vector<256x128xbf16>,
    %40 = arith.truncf %23 : vector<256x128xf32> to vector<256x128xbf16>
    %c16_15 = arith.constant 16 : index
    %c128 = arith.constant 128 : index
    %41 = vector.load %arg12[%c16_15, %c128] : memref<288x384xbf16, #tpu.memory_space<vmem>>, vector<256x128xbf16>
    tpu.vector_store %arg12[%c16_15, %c128], %40 {strides = array<i32>} : memref<288x384xbf16, #tpu.memory_space<vmem>>, vector<256x128xbf16>,
    %42 = arith.truncf %37 : vector<256x128xf32> to vector<256x128xbf16>
    %c16_16 = arith.constant 16 : index
    %c256 = arith.constant 256 : index
    %43 = vector.load %arg12[%c16_16, %c256] : memref<288x384xbf16, #tpu.memory_space<vmem>>, vector<256x128xbf16>
    tpu.vector_store %arg12[%c16_16, %c256], %42 {strides = array<i32>} : memref<288x384xbf16, #tpu.memory_space<vmem>>, vector<256x128xbf16>,
    %c0_17 = arith.constant 0 : index
    %c0_18 = arith.constant 0 : index
    %44 = vector.load %arg12[%c0_17, %c0_18] : memref<288x384xbf16, #tpu.memory_space<vmem>>, vector<256x384xbf16>
    %c0_19 = arith.constant 0 : index
    %c0_20 = arith.constant 0 : index
    %c0_21 = arith.constant 0 : index
    %c0_22 = arith.constant 0 : index
    %45 = vector.load %arg3[%c0_19, %c0_20, %c0_21, %c0_22] : memref<1x3x384x128xbf16, #tpu.memory_space<vmem>>, vector<1x1x384x128xbf16>
    %46 = vector.shape_cast %45 : vector<1x1x384x128xbf16> to vector<384x128xbf16>
    %cst_23 = arith.constant dense<0.000000e+00> : vector<256x128xf32>
    %47 = tpu.matmul %44, %46, %cst_23 {dimension_numbers = #tpu.dot_dimension_numbers<[1], [0], [0], [1], [0, 0, 1, 1], [], []>} : vector<256x384xbf16>, vector<384x128xbf16>, vector<256x128xf32> -> vector<256x128xf32>
    %c16_24 = arith.constant 16 : index
    %c0_25 = arith.constant 0 : index
    %48 = vector.load %arg12[%c16_24, %c0_25] : memref<288x384xbf16, #tpu.memory_space<vmem>>, vector<256x384xbf16>
    %c0_26 = arith.constant 0 : index
    %c1 = arith.constant 1 : index
    %c0_27 = arith.constant 0 : index
    %c0_28 = arith.constant 0 : index
    %49 = vector.load %arg3[%c0_26, %c1, %c0_27, %c0_28] : memref<1x3x384x128xbf16, #tpu.memory_space<vmem>>, vector<1x1x384x128xbf16>
    %50 = vector.shape_cast %49 : vector<1x1x384x128xbf16> to vector<384x128xbf16>
    %cst_29 = arith.constant dense<0.000000e+00> : vector<256x128xf32>
    %51 = tpu.matmul %48, %50, %cst_29 {dimension_numbers = #tpu.dot_dimension_numbers<[1], [0], [0], [1], [0, 0, 1, 1], [], []>} : vector<256x384xbf16>, vector<384x128xbf16>, vector<256x128xf32> -> vector<256x128xf32>
    %52 = arith.addf %47, %51 : vector<256x128xf32>
    %c32 = arith.constant 32 : index
    %c0_30 = arith.constant 0 : index
    %53 = vector.load %arg12[%c32, %c0_30] : memref<288x384xbf16, #tpu.memory_space<vmem>>, vector<256x384xbf16>
    %c0_31 = arith.constant 0 : index
    %c2 = arith.constant 2 : index
    %c0_32 = arith.constant 0 : index
    %c0_33 = arith.constant 0 : index
    %54 = vector.load %arg3[%c0_31, %c2, %c0_32, %c0_33] : memref<1x3x384x128xbf16, #tpu.memory_space<vmem>>, vector<1x1x384x128xbf16>
    %55 = vector.shape_cast %54 : vector<1x1x384x128xbf16> to vector<384x128xbf16>
    %cst_34 = arith.constant dense<0.000000e+00> : vector<256x128xf32>
    %56 = tpu.matmul %53, %55, %cst_34 {dimension_numbers = #tpu.dot_dimension_numbers<[1], [0], [0], [1], [0, 0, 1, 1], [], []>} : vector<256x384xbf16>, vector<384x128xbf16>, vector<256x128xf32> -> vector<256x128xf32>
    %57 = arith.addf %52, %56 : vector<256x128xf32>
    %c0_35 = arith.constant 0 : index
    %c0_36 = arith.constant 0 : index
    %c0_37 = arith.constant 0 : index
    %58 = vector.load %arg7[%c0_35, %c0_36, %c0_37] : memref<1x1x128xf32, #tpu.memory_space<vmem>>, vector<1x1x128xf32>
    %59 = vector.shape_cast %58 : vector<1x1x128xf32> to vector<1x128xf32>
    %60 = vector.broadcast %59 : vector<1x128xf32> to vector<256x128xf32>
    %61 = arith.mulf %57, %60 : vector<256x128xf32>
    %c0_38 = arith.constant 0 : index
    %c0_39 = arith.constant 0 : index
    %c0_40 = arith.constant 0 : index
    %62 = vector.load %arg8[%c0_38, %c0_39, %c0_40] : memref<1x1x128xf32, #tpu.memory_space<vmem>>, vector<1x1x128xf32>
    %63 = vector.shape_cast %62 : vector<1x1x128xf32> to vector<1x128xf32>
    %64 = vector.broadcast %63 : vector<1x128xf32> to vector<256x128xf32>
    %65 = arith.addf %61, %64 : vector<256x128xf32>
    %cst_41 = arith.constant 0.000000e+00 : f32
    %66 = vector.broadcast %cst_41 : f32 to vector<256x128xf32>
    %67 = arith.maximumf %65, %66 : vector<256x128xf32>
    %cst_42 = arith.constant 0.000000e+00 : bf16
    %68 = vector.broadcast %cst_42 : bf16 to vector<16x384xbf16>
    %c0_43 = arith.constant 0 : index
    %c0_44 = arith.constant 0 : index
    %69 = vector.load %arg13[%c0_43, %c0_44] : memref<288x384xbf16, #tpu.memory_space<vmem>>, vector<16x384xbf16>
    tpu.vector_store %arg13[%c0_43, %c0_44], %68 {strides = array<i32>} : memref<288x384xbf16, #tpu.memory_space<vmem>>, vector<16x384xbf16>,
    %cst_45 = arith.constant 0.000000e+00 : bf16
    %70 = vector.broadcast %cst_45 : bf16 to vector<16x384xbf16>
    %c272_46 = arith.constant 272 : index
    %c0_47 = arith.constant 0 : index
    %71 = vector.load %arg13[%c272_46, %c0_47] : memref<288x384xbf16, #tpu.memory_space<vmem>>, vector<16x384xbf16>
    tpu.vector_store %arg13[%c272_46, %c0_47], %70 {strides = array<i32>} : memref<288x384xbf16, #tpu.memory_space<vmem>>, vector<16x384xbf16>,
    %c1_i32_48 = arith.constant 1 : i32
    %72 = tpu.dynamic_rotate %67 by %c1_i32_48 dim 0 : vector<256x128xf32>, i32 -> vector<256x128xf32>
    %cst_49 = arith.constant 0.000000e+00 : f32
    %73 = vector.shape_cast %18 : vector<256x1xi1> to vector<256x1xi1>
    %74 = vector.broadcast %73 : vector<256x1xi1> to vector<256x128xi1>
    %75 = vector.broadcast %cst_49 : f32 to vector<256x128xf32>
    %76 = arith.select %74, %72, %75 : vector<256x128xi1>, vector<256x128xf32>
    %c255_i32_50 = arith.constant 255 : i32
    %77 = tpu.dynamic_rotate %67 by %c255_i32_50 dim 0 : vector<256x128xf32>, i32 -> vector<256x128xf32>
    %cst_51 = arith.constant 0.000000e+00 : f32
    %78 = vector.shape_cast %20 : vector<256x1xi1> to vector<256x1xi1>
    %79 = vector.broadcast %78 : vector<256x1xi1> to vector<256x128xi1>
    %80 = vector.broadcast %cst_51 : f32 to vector<256x128xf32>
    %81 = arith.select %79, %77, %80 : vector<256x128xi1>, vector<256x128xf32>
    %82 = arith.truncf %76 : vector<256x128xf32> to vector<256x128xbf16>
    %c16_52 = arith.constant 16 : index
    %c0_53 = arith.constant 0 : index
    %83 = vector.load %arg13[%c16_52, %c0_53] : memref<288x384xbf16, #tpu.memory_space<vmem>>, vector<256x128xbf16>
    tpu.vector_store %arg13[%c16_52, %c0_53], %82 {strides = array<i32>} : memref<288x384xbf16, #tpu.memory_space<vmem>>, vector<256x128xbf16>,
    %84 = arith.truncf %67 : vector<256x128xf32> to vector<256x128xbf16>
    %c16_54 = arith.constant 16 : index
    %c128_55 = arith.constant 128 : index
    %85 = vector.load %arg13[%c16_54, %c128_55] : memref<288x384xbf16, #tpu.memory_space<vmem>>, vector<256x128xbf16>
    tpu.vector_store %arg13[%c16_54, %c128_55], %84 {strides = array<i32>} : memref<288x384xbf16, #tpu.memory_space<vmem>>, vector<256x128xbf16>,
    %86 = arith.truncf %81 : vector<256x128xf32> to vector<256x128xbf16>
    %c16_56 = arith.constant 16 : index
    %c256_57 = arith.constant 256 : index
    %87 = vector.load %arg13[%c16_56, %c256_57] : memref<288x384xbf16, #tpu.memory_space<vmem>>, vector<256x128xbf16>
    tpu.vector_store %arg13[%c16_56, %c256_57], %86 {strides = array<i32>} : memref<288x384xbf16, #tpu.memory_space<vmem>>, vector<256x128xbf16>,
    %c0_58 = arith.constant 0 : index
    %c0_59 = arith.constant 0 : index
    %88 = vector.load %arg13[%c0_58, %c0_59] : memref<288x384xbf16, #tpu.memory_space<vmem>>, vector<256x384xbf16>
    %c0_60 = arith.constant 0 : index
    %c0_61 = arith.constant 0 : index
    %c0_62 = arith.constant 0 : index
    %c0_63 = arith.constant 0 : index
    %89 = vector.load %arg4[%c0_60, %c0_61, %c0_62, %c0_63] : memref<1x3x384x128xbf16, #tpu.memory_space<vmem>>, vector<1x1x384x128xbf16>
    %90 = vector.shape_cast %89 : vector<1x1x384x128xbf16> to vector<384x128xbf16>
    %cst_64 = arith.constant dense<0.000000e+00> : vector<256x128xf32>
    %91 = tpu.matmul %88, %90, %cst_64 {dimension_numbers = #tpu.dot_dimension_numbers<[1], [0], [0], [1], [0, 0, 1, 1], [], []>} : vector<256x384xbf16>, vector<384x128xbf16>, vector<256x128xf32> -> vector<256x128xf32>
    %c16_65 = arith.constant 16 : index
    %c0_66 = arith.constant 0 : index
    %92 = vector.load %arg13[%c16_65, %c0_66] : memref<288x384xbf16, #tpu.memory_space<vmem>>, vector<256x384xbf16>
    %c0_67 = arith.constant 0 : index
    %c1_68 = arith.constant 1 : index
    %c0_69 = arith.constant 0 : index
    %c0_70 = arith.constant 0 : index
    %93 = vector.load %arg4[%c0_67, %c1_68, %c0_69, %c0_70] : memref<1x3x384x128xbf16, #tpu.memory_space<vmem>>, vector<1x1x384x128xbf16>
    %94 = vector.shape_cast %93 : vector<1x1x384x128xbf16> to vector<384x128xbf16>
    %cst_71 = arith.constant dense<0.000000e+00> : vector<256x128xf32>
    %95 = tpu.matmul %92, %94, %cst_71 {dimension_numbers = #tpu.dot_dimension_numbers<[1], [0], [0], [1], [0, 0, 1, 1], [], []>} : vector<256x384xbf16>, vector<384x128xbf16>, vector<256x128xf32> -> vector<256x128xf32>
    %96 = arith.addf %91, %95 : vector<256x128xf32>
    %c32_72 = arith.constant 32 : index
    %c0_73 = arith.constant 0 : index
    %97 = vector.load %arg13[%c32_72, %c0_73] : memref<288x384xbf16, #tpu.memory_space<vmem>>, vector<256x384xbf16>
    %c0_74 = arith.constant 0 : index
    %c2_75 = arith.constant 2 : index
    %c0_76 = arith.constant 0 : index
    %c0_77 = arith.constant 0 : index
    %98 = vector.load %arg4[%c0_74, %c2_75, %c0_76, %c0_77] : memref<1x3x384x128xbf16, #tpu.memory_space<vmem>>, vector<1x1x384x128xbf16>
    %99 = vector.shape_cast %98 : vector<1x1x384x128xbf16> to vector<384x128xbf16>
    %cst_78 = arith.constant dense<0.000000e+00> : vector<256x128xf32>
    %100 = tpu.matmul %97, %99, %cst_78 {dimension_numbers = #tpu.dot_dimension_numbers<[1], [0], [0], [1], [0, 0, 1, 1], [], []>} : vector<256x384xbf16>, vector<384x128xbf16>, vector<256x128xf32> -> vector<256x128xf32>
    %101 = arith.addf %96, %100 : vector<256x128xf32>
    %c0_79 = arith.constant 0 : index
    %c0_80 = arith.constant 0 : index
    %c0_81 = arith.constant 0 : index
    %c0_82 = arith.constant 0 : index
    %102 = vector.load %arg2[%c0_79, %c0_80, %c0_81, %c0_82] : memref<1x1x256x128xbf16, #tpu.memory_space<vmem>>, vector<1x1x256x128xbf16>
    %103 = vector.shape_cast %102 : vector<1x1x256x128xbf16> to vector<256x128xbf16>
    %c0_83 = arith.constant 0 : index
    %c0_84 = arith.constant 0 : index
    %c0_85 = arith.constant 0 : index
    %104 = vector.load %arg5[%c0_83, %c0_84, %c0_85] : memref<1x128x128xbf16, #tpu.memory_space<vmem>>, vector<1x128x128xbf16>
    %105 = vector.shape_cast %104 : vector<1x128x128xbf16> to vector<128x128xbf16>
    %cst_86 = arith.constant dense<0.000000e+00> : vector<256x128xf32>
    %106 = tpu.matmul %103, %105, %cst_86 {dimension_numbers = #tpu.dot_dimension_numbers<[1], [0], [0], [1], [0, 0, 1, 1], [], []>} : vector<256x128xbf16>, vector<128x128xbf16>, vector<256x128xf32> -> vector<256x128xf32>
    %c0_87 = arith.constant 0 : index
    %c0_88 = arith.constant 0 : index
    %c0_89 = arith.constant 0 : index
    %107 = vector.load %arg6[%c0_87, %c0_88, %c0_89] : memref<1x1x128xf32, #tpu.memory_space<vmem>>, vector<1x1x128xf32>
    %108 = vector.shape_cast %107 : vector<1x1x128xf32> to vector<1x128xf32>
    %109 = vector.broadcast %108 : vector<1x128xf32> to vector<256x128xf32>
    %110 = arith.addf %106, %109 : vector<256x128xf32>
    %111 = arith.addf %101, %110 : vector<256x128xf32>
    %c0_90 = arith.constant 0 : index
    %c0_91 = arith.constant 0 : index
    %c0_92 = arith.constant 0 : index
    %112 = vector.load %arg9[%c0_90, %c0_91, %c0_92] : memref<1x1x128xf32, #tpu.memory_space<vmem>>, vector<1x1x128xf32>
    %113 = vector.shape_cast %112 : vector<1x1x128xf32> to vector<1x128xf32>
    %114 = vector.broadcast %113 : vector<1x128xf32> to vector<256x128xf32>
    %115 = arith.mulf %111, %114 : vector<256x128xf32>
    %c0_93 = arith.constant 0 : index
    %c0_94 = arith.constant 0 : index
    %c0_95 = arith.constant 0 : index
    %116 = vector.load %arg10[%c0_93, %c0_94, %c0_95] : memref<1x1x128xf32, #tpu.memory_space<vmem>>, vector<1x1x128xf32>
    %117 = vector.shape_cast %116 : vector<1x1x128xf32> to vector<1x128xf32>
    %118 = vector.broadcast %117 : vector<1x128xf32> to vector<256x128xf32>
    %119 = arith.addf %115, %118 : vector<256x128xf32>
    %cst_96 = arith.constant 0.000000e+00 : f32
    %120 = vector.broadcast %cst_96 : f32 to vector<256x128xf32>
    %121 = arith.maximumf %119, %120 : vector<256x128xf32>
    %122 = arith.truncf %121 : vector<256x128xf32> to vector<256x128xbf16>
    %c0_97 = arith.constant 0 : index
    %c0_98 = arith.constant 0 : index
    %c0_99 = arith.constant 0 : index
    %c0_100 = arith.constant 0 : index
    %123 = vector.load %arg11[%c0_97, %c0_98, %c0_99, %c0_100] : memref<1x1x256x128xbf16, #tpu.memory_space<vmem>>, vector<1x1x256x128xbf16>
    %124 = vector.shape_cast %123 : vector<1x1x256x128xbf16> to vector<256x128xbf16>
    %125 = vector.shape_cast %122 : vector<256x128xbf16> to vector<1x1x256x128xbf16>
    tpu.vector_store %arg11[%c0_97, %c0_98, %c0_99, %c0_100], %125 {strides = array<i32>} : memref<1x1x256x128xbf16, #tpu.memory_space<vmem>>, vector<1x1x256x128xbf16>,
    return
  }
  func.func @transform_0(%arg0: i32, %arg1: i32) -> (i32, i32, i32, i32) {
    %c0_i32 = arith.constant 0 : i32
    %c0_i32_0 = arith.constant 0 : i32
    %c0_i32_1 = arith.constant 0 : i32
    return %arg1, %arg0, %c0_i32, %c0_i32_0 : i32, i32, i32, i32
  }
  func.func @transform_1(%arg0: i32, %arg1: i32) -> (i32, i32, i32, i32) {
    %c0_i32 = arith.constant 0 : i32
    %c0_i32_0 = arith.constant 0 : i32
    %c0_i32_1 = arith.constant 0 : i32
    %c0_i32_2 = arith.constant 0 : i32
    return %arg0, %c0_i32, %c0_i32_0, %c0_i32_1 : i32, i32, i32, i32
  }
  func.func @transform_2(%arg0: i32, %arg1: i32) -> (i32, i32, i32, i32) {
    %c0_i32 = arith.constant 0 : i32
    %c0_i32_0 = arith.constant 0 : i32
    %c0_i32_1 = arith.constant 0 : i32
    %c0_i32_2 = arith.constant 0 : i32
    return %arg0, %c0_i32, %c0_i32_0, %c0_i32_1 : i32, i32, i32, i32
  }
  func.func @transform_3(%arg0: i32, %arg1: i32) -> (i32, i32, i32) {
    %c0_i32 = arith.constant 0 : i32
    %c0_i32_0 = arith.constant 0 : i32
    %c0_i32_1 = arith.constant 0 : i32
    return %arg0, %c0_i32, %c0_i32_0 : i32, i32, i32
  }
  func.func @transform_4(%arg0: i32, %arg1: i32) -> (i32, i32, i32) {
    %c0_i32 = arith.constant 0 : i32
    %c0_i32_0 = arith.constant 0 : i32
    %c0_i32_1 = arith.constant 0 : i32
    return %arg0, %c0_i32, %c0_i32_0 : i32, i32, i32
  }
  func.func @transform_5(%arg0: i32, %arg1: i32) -> (i32, i32, i32) {
    %c0_i32 = arith.constant 0 : i32
    %c0_i32_0 = arith.constant 0 : i32
    %c0_i32_1 = arith.constant 0 : i32
    return %arg0, %c0_i32, %c0_i32_0 : i32, i32, i32
  }
  func.func @transform_6(%arg0: i32, %arg1: i32) -> (i32, i32, i32) {
    %c0_i32 = arith.constant 0 : i32
    %c0_i32_0 = arith.constant 0 : i32
    %c0_i32_1 = arith.constant 0 : i32
    return %arg0, %c0_i32, %c0_i32_0 : i32, i32, i32
  }
  func.func @transform_7(%arg0: i32, %arg1: i32) -> (i32, i32, i32) {
    %c0_i32 = arith.constant 0 : i32
    %c0_i32_0 = arith.constant 0 : i32
    %c0_i32_1 = arith.constant 0 : i32
    return %arg0, %c0_i32, %c0_i32_0 : i32, i32, i32
  }
  func.func @transform_8(%arg0: i32, %arg1: i32) -> (i32, i32, i32) {
    %c0_i32 = arith.constant 0 : i32
    %c0_i32_0 = arith.constant 0 : i32
    %c0_i32_1 = arith.constant 0 : i32
    return %arg0, %c0_i32, %c0_i32_0 : i32, i32, i32
  }
  func.func @transform_9(%arg0: i32, %arg1: i32) -> (i32, i32, i32, i32) {
    %c0_i32 = arith.constant 0 : i32
    %c0_i32_0 = arith.constant 0 : i32
    %c0_i32_1 = arith.constant 0 : i32
    return %arg1, %arg0, %c0_i32, %c0_i32_0 : i32, i32, i32, i32
  }
}

</mosaic_0001>

<llo_original>
// kernel: tpu_custom_call.1
$region0: #{tpu_custom_call.1}
  #allocation0 [shape = 'u32[]', space=smem, size = 0x4, offset = 0x4, fixed_abs, tag = 'smem constant byte address 0x4 - core index']
  #allocation1 [shape = 'u32[144,128]{1,0:T(1,128)}', space=vmem, size = 0x12000, scoped, tag = 'internal scratch']
  #allocation2 [shape = 'bf16[288,384]{1,0:T(16,128)(2,1)}', space=vmem, size = 0x36000, scoped, tag = 'scratch operand']
  #allocation3 [shape = 'bf16[288,384]{1,0:T(16,128)(2,1)}', space=vmem, size = 0x36000, scoped, tag = 'scratch operand']
  %s0 = inlined_call_operand.hbm [shape: bf16[2,1,256,128], index: 0, kind: input, shape index: {}]
  %s1 = inlined_call_operand.hbm [shape: bf16[1,3,384,128], index: 1, kind: input, shape index: {}]
  %s2 = inlined_call_operand.hbm [shape: bf16[1,3,384,128], index: 2, kind: input, shape index: {}]
  %s3 = inlined_call_operand.hbm [shape: bf16[1,128,128], index: 3, kind: input, shape index: {}]
  %s4 = inlined_call_operand.vmem [shape: f32[1,1,128], index: 4, kind: input, shape index: {}]
  %s5 = inlined_call_operand.vmem [shape: f32[1,1,128], index: 5, kind: input, shape index: {}]
  %s6 = inlined_call_operand.vmem [shape: f32[1,1,128], index: 6, kind: input, shape index: {}]
  %s7 = inlined_call_operand.vmem [shape: f32[1,1,128], index: 7, kind: input, shape index: {}]
  %s8 = inlined_call_operand.vmem [shape: f32[1,1,128], index: 8, kind: input, shape index: {}]
  %s9 = inlined_call_operand.hbm [shape: bf16[2,1,256,128], index: 9, kind: output, shape index: {}]
  %s10 = sld [smem:[#allocation0]]
  $region85: #{tpu_custom_call.1} parent=0
    _
  %s12 = ssub.s32 1, %s10
  %s13 = scalar_select 0, %s12, %s10
  $region1: #{tpu_custom_call.1} parent=0
    #allocation4 [shape = 'u8[131072]{0}', space=vmem, size = 0x20000, scoped, tag = 'input window, operand 0']
    #allocation5 [shape = 's32[2]{0}', space=sflag, size = 0x8, scoped, tag = 'scoped memory for tpu_custom_call.1']
    #allocation6 [shape = 's32[2]{0}', space=sflag, size = 0x8, scoped, tag = 'scoped memory for tpu_custom_call.1']
    #allocation7 [shape = 'u8[294912]{0}', space=vmem, size = 0x48000, scoped, tag = 'input window, operand 1, single buffered']
    #allocation8 [shape = 's32[1]{0}', space=sflag, size = 0x4, scoped, tag = 'scoped memory for tpu_custom_call.1']
    #allocation9 [shape = 'u8[294912]{0}', space=vmem, size = 0x48000, scoped, tag = 'input window, operand 2, single buffered']
    #allocation10 [shape = 'u8[32768]{0}', space=vmem, size = 0x8000, scoped, tag = 'input window, operand 3, single buffered']
    #allocation11 [shape = 's32[1]{0}', space=sflag, size = 0x4, scoped, tag = 'scoped memory for tpu_custom_call.1']
    #allocation12 [shape = 'u8[131072]{0}', space=vmem, size = 0x20000, scoped, tag = 'output window, operand 0']
    %14 = vsyncpa [#allocation5], 0
    %s15 = scalar_lea.sflag [#allocation5], 1
    %16 = vsyncpa %s15, 0
    %17 = vsyncpa [#allocation8], 0
    %18 = vsyncpa [#allocation11], 0
    %19 = vsyncpa [#allocation6], 0
    %s20 = scalar_lea.sflag [#allocation6], 1
    %21 = vsyncpa %s20, 0
    loop: start=0, step=1, limit=4
    $region2: #{tpu_custom_call.1} parent=1 // loop_pre_header
      _
    $region3: #{tpu_custom_call.1} parent=1 // loop_header
      %s23 = sphi 0, %s27
      %p24 = scmp.ge.s32.totalorder %s23, 4
      %s30 = sphi 0, %s42
      %s31 = sphi 0, %s38
      %s32 = sphi 0, %s30
      %s33 = sphi 0, %s31
      %s34 = sphi 0, %s32
      %s35 = sphi 0, %s33
      %s47 = sphi 0, %s49
      %s50 = sphi 0, %s47
      %s51 = sphi 0, %s50
      %s67 = sphi 0, %s51
      %s73 = sphi 0, %s75
      %s76 = sphi 0, %s73
      %s77 = sphi 0, %s76
      %s93 = sphi 0, %s77
      %s99 = sphi 0, %s101
      %s102 = sphi 0, %s99
      %s103 = sphi 0, %s102
      %s119 = sphi 0, %s103
      %s125 = sphi 0, %s127
      %s128 = sphi 0, %s125
      %s129 = sphi 0, %s128
      %s145 = sphi 0, %s129
      %s151 = sphi 0, %s153
      %s154 = sphi 0, %s151
      %s155 = sphi 0, %s154
      %s171 = sphi 0, %s155
      %s177 = sphi 0, %s179
      %s180 = sphi 0, %s177
      %s181 = sphi 0, %s180
      %s197 = sphi 0, %s181
      %s203 = sphi 0, %s205
      %s206 = sphi 0, %s203
      %s207 = sphi 0, %s206
      %s223 = sphi 0, %s207
      %s229 = sphi 0, %s231
      %s232 = sphi 0, %s229
      %s233 = sphi 0, %s232
      %s249 = sphi 0, %s233
      %s255 = sphi 0, %s257
      %s258 = sphi 0, %s255
      %s259 = sphi 0, %s258
      %s275 = sphi 0, %s259
      %s283 = sphi 0, %s285
      %s286 = sphi 0, %s283
      %s287 = sphi 0, %s286
      %s303 = sphi 0, %s287
    $region4: #{tpu_custom_call.1} parent=1 // loop_header_branch
      %26 = sbr.rel (%p24) target = $region8
    $region5: #{tpu_custom_call.1} parent=1 // loop_body
      %s28 = ssub.s32 %s23, 1
      %s29 = ssub.s32 %s23, 2
      %s36 = sadd.s32 1, %s31
      %p37 = scmp.ge.s32.totalorder %s36, 2
      %s38 = scalar_select %p37, 0, %s36
      %s39 = sadd.s32 1, %s30
      %s40 = scalar_select %p37, %s39, %s30
      %p41 = scmp.ge.s32.totalorder %s40, 1
      %s42 = scalar_select %p41, 0, %s40
      %s43 = ssub.s32 %s31, %s38
      %s44 = ssub.s32 %s30, %s42
      %s45 = sor.u32 %s43, %s44
      %p46 = scmp.eq.s32.totalorder %s45, 0
      %s48 = sadd.s32 %s47, 1
      %s49 = scalar_select %p46, %s47, %s48
      %p52 = pneg %p46
      %p53 = scmp.eq.s32.totalorder %s23, 1
      %p54 = por %p52, %p53
      %p55 = scmp.ne.s32.totalorder %s47, %s50
      %p56 = scmp.eq.s32.totalorder %s23, 0
      %p57 = por %p55, %p56
      %p58 = scmp.ne.s32.totalorder %s47, %s50
      %p59 = scmp.eq.s32.totalorder %s28, 1
      %p60 = por %p58, %p59
      %p61 = scmp.ne.s32.totalorder %s50, %s51
      %p62 = scmp.eq.s32.totalorder %s28, 0
      %p63 = por %p61, %p62
      %p64 = scmp.ne.s32.totalorder %s50, %s51
      %p65 = scmp.eq.s32.totalorder %s29, 1
      %p66 = por %p64, %p65
      %p68 = scmp.ne.s32.totalorder %s51, %s67
      %p69 = scmp.eq.s32.totalorder %s29, 0
      %p70 = por %p68, %p69
      %s71 = ssub.s32 %s30, %s42
      %p72 = scmp.eq.s32.totalorder %s71, 0
      %s74 = sadd.s32 %s73, 1
      %s75 = scalar_select %p72, %s73, %s74
      %p78 = pneg %p72
      %p79 = scmp.eq.s32.totalorder %s23, 1
      %p80 = por %p78, %p79
      %p81 = scmp.ne.s32.totalorder %s73, %s76
      %p82 = scmp.eq.s32.totalorder %s23, 0
      %p83 = por %p81, %p82
      %p84 = scmp.ne.s32.totalorder %s73, %s76
      %p85 = scmp.eq.s32.totalorder %s28, 1
      %p86 = por %p84, %p85
      %p87 = scmp.ne.s32.totalorder %s76, %s77
      %p88 = scmp.eq.s32.totalorder %s28, 0
      %p89 = por %p87, %p88
      %p90 = scmp.ne.s32.totalorder %s76, %s77
      %p91 = scmp.eq.s32.totalorder %s29, 1
      %p92 = por %p90, %p91
      %p94 = scmp.ne.s32.totalorder %s77, %s93
      %p95 = scmp.eq.s32.totalorder %s29, 0
      %p96 = por %p94, %p95
      %s97 = ssub.s32 %s30, %s42
      %p98 = scmp.eq.s32.totalorder %s97, 0
      %s100 = sadd.s32 %s99, 1
      %s101 = scalar_select %p98, %s99, %s100
      %p104 = pneg %p98
      %p105 = scmp.eq.s32.totalorder %s23, 1
      %p106 = por %p104, %p105
      %p107 = scmp.ne.s32.totalorder %s99, %s102
      %p108 = scmp.eq.s32.totalorder %s23, 0
      %p109 = por %p107, %p108
      %p110 = scmp.ne.s32.totalorder %s99, %s102
      %p111 = scmp.eq.s32.totalorder %s28, 1
      %p112 = por %p110, %p111
      %p113 = scmp.ne.s32.totalorder %s102, %s103
      %p114 = scmp.eq.s32.totalorder %s28, 0
      %p115 = por %p113, %p114
      %p116 = scmp.ne.s32.totalorder %s102, %s103
      %p117 = scmp.eq.s32.totalorder %s29, 1
      %p118 = por %p116, %p117
      %p120 = scmp.ne.s32.totalorder %s103, %s119
      %p121 = scmp.eq.s32.totalorder %s29, 0
      %p122 = por %p120, %p121
      %s123 = ssub.s32 %s30, %s42
      %p124 = scmp.eq.s32.totalorder %s123, 0
      %s126 = sadd.s32 %s125, 1
      %s127 = scalar_select %p124, %s125, %s126
      %p130 = pneg %p124
      %p131 = scmp.eq.s32.totalorder %s23, 1
      %p132 = por %p130, %p131
      %p133 = scmp.ne.s32.totalorder %s125, %s128
      %p134 = scmp.eq.s32.totalorder %s23, 0
      %p135 = por %p133, %p134
      %p136 = scmp.ne.s32.totalorder %s125, %s128
      %p137 = scmp.eq.s32.totalorder %s28, 1
      %p138 = por %p136, %p137
      %p139 = scmp.ne.s32.totalorder %s128, %s129
      %p140 = scmp.eq.s32.totalorder %s28, 0
      %p141 = por %p139, %p140
      %p142 = scmp.ne.s32.totalorder %s128, %s129
      %p143 = scmp.eq.s32.totalorder %s29, 1
      %p144 = por %p142, %p143
      %p146 = scmp.ne.s32.totalorder %s129, %s145
      %p147 = scmp.eq.s32.totalorder %s29, 0
      %p148 = por %p146, %p147
      %s149 = ssub.s32 %s30, %s42
      %p150 = scmp.eq.s32.totalorder %s149, 0
      %s152 = sadd.s32 %s151, 1
      %s153 = scalar_select %p150, %s151, %s152
      %p156 = pneg %p150
      %p157 = scmp.eq.s32.totalorder %s23, 1
      %p158 = por %p156, %p157
      %p159 = scmp.ne.s32.totalorder %s151, %s154
      %p160 = scmp.eq.s32.totalorder %s23, 0
      %p161 = por %p159, %p160
      %p162 = scmp.ne.s32.totalorder %s151, %s154
      %p163 = scmp.eq.s32.totalorder %s28, 1
      %p164 = por %p162, %p163
      %p165 = scmp.ne.s32.totalorder %s154, %s155
      %p166 = scmp.eq.s32.totalorder %s28, 0
      %p167 = por %p165, %p166
      %p168 = scmp.ne.s32.totalorder %s154, %s155
      %p169 = scmp.eq.s32.totalorder %s29, 1
      %p170 = por %p168, %p169
      %p172 = scmp.ne.s32.totalorder %s155, %s171
      %p173 = scmp.eq.s32.totalorder %s29, 0
      %p174 = por %p172, %p173
      %s175 = ssub.s32 %s30, %s42
      %p176 = scmp.eq.s32.totalorder %s175, 0
      %s178 = sadd.s32 %s177, 1
      %s179 = scalar_select %p176, %s177, %s178
      %p182 = pneg %p176
      %p183 = scmp.eq.s32.totalorder %s23, 1
      %p184 = por %p182, %p183
      %p185 = scmp.ne.s32.totalorder %s177, %s180
      %p186 = scmp.eq.s32.totalorder %s23, 0
      %p187 = por %p185, %p186
      %p188 = scmp.ne.s32.totalorder %s177, %s180
      %p189 = scmp.eq.s32.totalorder %s28, 1
      %p190 = por %p188, %p189
      %p191 = scmp.ne.s32.totalorder %s180, %s181
      %p192 = scmp.eq.s32.totalorder %s28, 0
      %p193 = por %p191, %p192
      %p194 = scmp.ne.s32.totalorder %s180, %s181
      %p195 = scmp.eq.s32.totalorder %s29, 1
      %p196 = por %p194, %p195
      %p198 = scmp.ne.s32.totalorder %s181, %s197
      %p199 = scmp.eq.s32.totalorder %s29, 0
      %p200 = por %p198, %p199
      %s201 = ssub.s32 %s30, %s42
      %p202 = scmp.eq.s32.totalorder %s201, 0
      %s204 = sadd.s32 %s203, 1
      %s205 = scalar_select %p202, %s203, %s204
      %p208 = pneg %p202
      %p209 = scmp.eq.s32.totalorder %s23, 1
      %p210 = por %p208, %p209
      %p211 = scmp.ne.s32.totalorder %s203, %s206
      %p212 = scmp.eq.s32.totalorder %s23, 0
      %p213 = por %p211, %p212
      %p214 = scmp.ne.s32.totalorder %s203, %s206
      %p215 = scmp.eq.s32.totalorder %s28, 1
      %p216 = por %p214, %p215
      %p217 = scmp.ne.s32.totalorder %s206, %s207
      %p218 = scmp.eq.s32.totalorder %s28, 0
      %p219 = por %p217, %p218
      %p220 = scmp.ne.s32.totalorder %s206, %s207
      %p221 = scmp.eq.s32.totalorder %s29, 1
      %p222 = por %p220, %p221
      %p224 = scmp.ne.s32.totalorder %s207, %s223
      %p225 = scmp.eq.s32.totalorder %s29, 0
      %p226 = por %p224, %p225
      %s227 = ssub.s32 %s30, %s42
      %p228 = scmp.eq.s32.totalorder %s227, 0
      %s230 = sadd.s32 %s229, 1
      %s231 = scalar_select %p228, %s229, %s230
      %p234 = pneg %p228
      %p235 = scmp.eq.s32.totalorder %s23, 1
      %p236 = por %p234, %p235
      %p237 = scmp.ne.s32.totalorder %s229, %s232
      %p238 = scmp.eq.s32.totalorder %s23, 0
      %p239 = por %p237, %p238
      %p240 = scmp.ne.s32.totalorder %s229, %s232
      %p241 = scmp.eq.s32.totalorder %s28, 1
      %p242 = por %p240, %p241
      %p243 = scmp.ne.s32.totalorder %s232, %s233
      %p244 = scmp.eq.s32.totalorder %s28, 0
      %p245 = por %p243, %p244
      %p246 = scmp.ne.s32.totalorder %s232, %s233
      %p247 = scmp.eq.s32.totalorder %s29, 1
      %p248 = por %p246, %p247
      %p250 = scmp.ne.s32.totalorder %s233, %s249
      %p251 = scmp.eq.s32.totalorder %s29, 0
      %p252 = por %p250, %p251
      %s253 = ssub.s32 %s30, %s42
      %p254 = scmp.eq.s32.totalorder %s253, 0
      %s256 = sadd.s32 %s255, 1
      %s257 = scalar_select %p254, %s255, %s256
      %p260 = pneg %p254
      %p261 = scmp.eq.s32.totalorder %s23, 1
      %p262 = por %p260, %p261
      %p263 = scmp.ne.s32.totalorder %s255, %s258
      %p264 = scmp.eq.s32.totalorder %s23, 0
      %p265 = por %p263, %p264
      %p266 = scmp.ne.s32.totalorder %s255, %s258
      %p267 = scmp.eq.s32.totalorder %s28, 1
      %p268 = por %p266, %p267
      %p269 = scmp.ne.s32.totalorder %s258, %s259
      %p270 = scmp.eq.s32.totalorder %s28, 0
      %p271 = por %p269, %p270
      %p272 = scmp.ne.s32.totalorder %s258, %s259
      %p273 = scmp.eq.s32.totalorder %s29, 1
      %p274 = por %p272, %p273
      %p276 = scmp.ne.s32.totalorder %s259, %s275
      %p277 = scmp.eq.s32.totalorder %s29, 0
      %p278 = por %p276, %p277
      %s279 = ssub.s32 %s31, %s38
      %s280 = ssub.s32 %s30, %s42
      %s281 = sor.u32 %s279, %s280
      %p282 = scmp.eq.s32.totalorder %s281, 0
      %s284 = sadd.s32 %s283, 1
      %s285 = scalar_select %p282, %s283, %s284
      %p288 = pneg %p282
      %p289 = scmp.eq.s32.totalorder %s23, 1
      %p290 = por %p288, %p289
      %p291 = scmp.ne.s32.totalorder %s283, %s286
      %p292 = scmp.eq.s32.totalorder %s23, 0
      %p293 = por %p291, %p292
      %p294 = scmp.ne.s32.totalorder %s283, %s286
      %p295 = scmp.eq.s32.totalorder %s28, 1
      %p296 = por %p294, %p295
      %p297 = scmp.ne.s32.totalorder %s286, %s287
      %p298 = scmp.eq.s32.totalorder %s28, 0
      %p299 = por %p297, %p298
      %p300 = scmp.ne.s32.totalorder %s286, %s287
      %p301 = scmp.eq.s32.totalorder %s29, 1
      %p302 = por %p300, %p301
      %p304 = scmp.ne.s32.totalorder %s287, %s303
      %p305 = scmp.eq.s32.totalorder %s29, 0
      %p306 = por %p304, %p305
      %p307 = scmp.le.s32.totalorder 1, %s23
      %p308 = scmp.lt.s32.totalorder %s23, 3
      %p309 = pnand %p307, %p308
      %p310 = pneg %p309
      // Predicated region
      $region9: #{tpu_custom_call.1} parent=5 // pred_check
        _
      $region10: #{tpu_custom_call.1} parent=5 // pred_check_branch
        %312 = sbr.rel (%p309) target = $region12
      $region11: #{tpu_custom_call.1} parent=5 // pred_region
        %s313 = ssub.s32 %s23, 1
        // Predicated region
        $region13: #{tpu_custom_call.1} parent=11 // pred_check
          %p314 = pneg %p89
        $region14: #{tpu_custom_call.1} parent=11 // pred_check_branch
          %316 = sbr.rel (%p314) target = $region16
        $region15: #{tpu_custom_call.1} parent=11 // pred_region
          %s318 = ssub.s32 9216, 9216
          %319 = vsyncadd [#allocation8], %s318
          %s320 = smul.addr %s32, 144
          %s321 = smul.addr %s320, 64
          %s322 = scalar_lea.hbm %s1, %s321
          %s323 = sshll.u32 [#allocation7], 4
          %s324 = int_to_ptr.vmem [resolvable:$true] %s323
          %329 = dma.hbm_to_vmem [thread:$0]  %s322, 9216, %s324, [#allocation8], 64, 64, 4
        $region16: #{tpu_custom_call.1} parent=11 // pred_fallthru
          _
        // Predicated region
        $region17: #{tpu_custom_call.1} parent=11 // pred_check
          %p330 = pneg %p115
        $region18: #{tpu_custom_call.1} parent=11 // pred_check_branch
          %332 = sbr.rel (%p330) target = $region20
        $region19: #{tpu_custom_call.1} parent=11 // pred_region
          %s334 = ssub.s32 9216, 9216
          %335 = vsyncadd [#allocation8], %s334
          %s336 = smul.addr %s32, 144
          %s337 = smul.addr %s336, 64
          %s338 = scalar_lea.hbm %s2, %s337
          %s339 = sshll.u32 [#allocation9], 4
          %s340 = int_to_ptr.vmem [resolvable:$true] %s339
          %345 = dma.hbm_to_vmem [thread:$0]  %s338, 9216, %s340, [#allocation8], 64, 64, 4
        $region20: #{tpu_custom_call.1} parent=11 // pred_fallthru
          _
        // Predicated region
        $region21: #{tpu_custom_call.1} parent=11 // pred_check
          %p346 = pneg %p141
        $region22: #{tpu_custom_call.1} parent=11 // pred_check_branch
          %348 = sbr.rel (%p346) target = $region24
        $region23: #{tpu_custom_call.1} parent=11 // pred_region
          %s350 = ssub.s32 1024, 1024
          %351 = vsyncadd [#allocation11], %s350
          %s352 = smul.addr %s32, 16
          %s353 = smul.addr %s352, 64
          %s354 = scalar_lea.hbm %s3, %s353
          %s355 = sshll.u32 [#allocation10], 4
          %s356 = int_to_ptr.vmem [resolvable:$true] %s355
          %361 = dma.hbm_to_vmem [thread:$0]  %s354, 1024, %s356, [#allocation11], 64, 64, 4
        $region24: #{tpu_custom_call.1} parent=11 // pred_fallthru
          _
        // Predicated region
        $region25: #{tpu_custom_call.1} parent=11 // pred_check
          %p362 = pneg %p167
        $region26: #{tpu_custom_call.1} parent=11 // pred_check_branch
          %364 = sbr.rel (%p362) target = $region28
        $region27: #{tpu_custom_call.1} parent=11 // pred_region
          %p365 = scmp.lt.s32.totalorder %s32, 0
          %s366 = scalar_select %p365, %s32, 0
          %s367 = scalar_lea.vmem %s4, %s366
        $region28: #{tpu_custom_call.1} parent=11 // pred_fallthru
          _
        // Predicated region
        $region29: #{tpu_custom_call.1} parent=11 // pred_check
          %p368 = pneg %p193
        $region30: #{tpu_custom_call.1} parent=11 // pred_check_branch
          %370 = sbr.rel (%p368) target = $region32
        $region31: #{tpu_custom_call.1} parent=11 // pred_region
          %p371 = scmp.lt.s32.totalorder %s32, 0
          %s372 = scalar_select %p371, %s32, 0
          %s373 = scalar_lea.vmem %s5, %s372
        $region32: #{tpu_custom_call.1} parent=11 // pred_fallthru
          _
        // Predicated region
        $region33: #{tpu_custom_call.1} parent=11 // pred_check
          %p374 = pneg %p219
        $region34: #{tpu_custom_call.1} parent=11 // pred_check_branch
          %376 = sbr.rel (%p374) target = $region36
        $region35: #{tpu_custom_call.1} parent=11 // pred_region
          %p377 = scmp.lt.s32.totalorder %s32, 0
          %s378 = scalar_select %p377, %s32, 0
          %s379 = scalar_lea.vmem %s6, %s378
        $region36: #{tpu_custom_call.1} parent=11 // pred_fallthru
          _
        // Predicated region
        $region37: #{tpu_custom_call.1} parent=11 // pred_check
          %p380 = pneg %p245
        $region38: #{tpu_custom_call.1} parent=11 // pred_check_branch
          %382 = sbr.rel (%p380) target = $region40
        $region39: #{tpu_custom_call.1} parent=11 // pred_region
          %p383 = scmp.lt.s32.totalorder %s32, 0
          %s384 = scalar_select %p383, %s32, 0
          %s385 = scalar_lea.vmem %s7, %s384
        $region40: #{tpu_custom_call.1} parent=11 // pred_fallthru
          _
        // Predicated region
        $region41: #{tpu_custom_call.1} parent=11 // pred_check
          %p386 = pneg %p271
        $region42: #{tpu_custom_call.1} parent=11 // pred_check_branch
          %388 = sbr.rel (%p386) target = $region44
        $region43: #{tpu_custom_call.1} parent=11 // pred_region
          %p389 = scmp.lt.s32.totalorder %s32, 0
          %s390 = scalar_select %p389, %s32, 0
          %s391 = scalar_lea.vmem %s8, %s390
        $region44: #{tpu_custom_call.1} parent=11 // pred_fallthru
          _
      $region12: #{tpu_custom_call.1} parent=5 // pred_fallthru
        _
      %p392 = scmp.lt.s32.totalorder %s23, 2
      // Predicated region
      $region45: #{tpu_custom_call.1} parent=5 // pred_check
        %p393 = pneg %p392
      $region46: #{tpu_custom_call.1} parent=5 // pred_check_branch
        %395 = sbr.rel (%p393) target = $region48
      $region47: #{tpu_custom_call.1} parent=5 // pred_region
        // Predicated region
        $region49: #{tpu_custom_call.1} parent=47 // pred_check
          %p396 = pneg %p57
        $region50: #{tpu_custom_call.1} parent=47 // pred_check_branch
          %398 = sbr.rel (%p396) target = $region52
        $region51: #{tpu_custom_call.1} parent=47 // pred_region
          %s399 = sand.u32 %s47, 1
          %s400 = scalar_lea.sflag [#allocation5], %s399
          %s401 = sand.u32 %s47, 1
          %s402 = smul.addr %s401, 128
          %s403 = scalar_lea.vmem [#allocation4], %s402
          %s405 = ssub.s32 2048, 2048
          %406 = vsyncadd %s400, %s405
          %s407 = smul.addr %s30, 32
          %s408 = smul.addr %s31, 32
          %s409 = sadd.s32 %s407, %s408
          %s410 = smul.addr %s409, 64
          %s411 = scalar_lea.hbm %s0, %s410
          %s412 = sshll.u32 %s403, 4
          %s413 = int_to_ptr.vmem [resolvable:$true] %s412
          %418 = dma.hbm_to_vmem [thread:$0]  %s411, 2048, %s413, %s400, 64, 64, 4
        $region52: #{tpu_custom_call.1} parent=47 // pred_fallthru
          _
      $region48: #{tpu_custom_call.1} parent=5 // pred_fallthru
        _
      %p419 = scmp.le.s32.totalorder 1, %s23
      %p420 = scmp.lt.s32.totalorder %s23, 3
      %p421 = pnand %p419, %p420
      %p422 = pneg %p421
      // Predicated region
      $region53: #{tpu_custom_call.1} parent=5 // pred_check
        _
      $region54: #{tpu_custom_call.1} parent=5 // pred_check_branch
        %424 = sbr.rel (%p421) target = $region56
      $region55: #{tpu_custom_call.1} parent=5 // pred_region
        %s425 = ssub.s32 %s23, 1
        %s426 = sand.u32 %s50, 1
        %s427 = scalar_lea.sflag [#allocation5], %s426
        %s428 = sand.u32 %s50, 1
        %s429 = smul.addr %s428, 128
        %s430 = scalar_lea.vmem [#allocation4], %s429
        // Predicated region
        $region57: #{tpu_custom_call.1} parent=55 // pred_check
          %p431 = pneg %p63
        $region58: #{tpu_custom_call.1} parent=55 // pred_check_branch
          %433 = sbr.rel (%p431) target = $region60
        $region59: #{tpu_custom_call.1} parent=55 // pred_region
          %434 = dma.done %s427, 2048
        $region60: #{tpu_custom_call.1} parent=55 // pred_fallthru
          _
        // Predicated region
        $region61: #{tpu_custom_call.1} parent=55 // pred_check
          %p435 = pneg %p89
        $region62: #{tpu_custom_call.1} parent=55 // pred_check_branch
          %437 = sbr.rel (%p435) target = $region64
        $region63: #{tpu_custom_call.1} parent=55 // pred_region
          %438 = dma.done [#allocation8], 9216
        $region64: #{tpu_custom_call.1} parent=55 // pred_fallthru
          _
        // Predicated region
        $region65: #{tpu_custom_call.1} parent=55 // pred_check
          %p439 = pneg %p115
        $region66: #{tpu_custom_call.1} parent=55 // pred_check_branch
          %441 = sbr.rel (%p439) target = $region68
        $region67: #{tpu_custom_call.1} parent=55 // pred_region
          %442 = dma.done [#allocation8], 9216
        $region68: #{tpu_custom_call.1} parent=55 // pred_fallthru
          _
        // Predicated region
        $region69: #{tpu_custom_call.1} parent=55 // pred_check
          %p443 = pneg %p141
        $region70: #{tpu_custom_call.1} parent=55 // pred_check_branch
          %445 = sbr.rel (%p443) target = $region72
        $region71: #{tpu_custom_call.1} parent=55 // pred_region
          %446 = dma.done [#allocation11], 1024
        $region72: #{tpu_custom_call.1} parent=55 // pred_fallthru
          _
        %s447 = sand.u32 %s50, 1
        %s448 = scalar_lea.sflag [#allocation5], %s447
        %s449 = sand.u32 %s50, 1
        %s450 = smul.addr %s449, 128
        %s451 = scalar_lea.vmem [#allocation4], %s450
        %p452 = pneg %p63
        %p453 = pneg %p60
        %p454 = pneg %p89
        %p455 = pneg %p86
        %p456 = pneg %p115
        %p457 = pneg %p112
        %p458 = pneg %p141
        %p459 = pneg %p138
        %p460 = scmp.lt.s32.totalorder %s32, 0
        %s461 = scalar_select %p460, %s32, 0
        %s462 = scalar_lea.vmem %s4, %s461
        %p463 = pneg %p167
        %p464 = pneg %p164
        %p465 = scmp.lt.s32.totalorder %s32, 0
        %s466 = scalar_select %p465, %s32, 0
        %s467 = scalar_lea.vmem %s5, %s466
        %p468 = pneg %p193
        %p469 = pneg %p190
        %p470 = scmp.lt.s32.totalorder %s32, 0
        %s471 = scalar_select %p470, %s32, 0
        %s472 = scalar_lea.vmem %s6, %s471
        %p473 = pneg %p219
        %p474 = pneg %p216
        %p475 = scmp.lt.s32.totalorder %s32, 0
        %s476 = scalar_select %p475, %s32, 0
        %s477 = scalar_lea.vmem %s7, %s476
        %p478 = pneg %p245
        %p479 = pneg %p242
        %p480 = scmp.lt.s32.totalorder %s32, 0
        %s481 = scalar_select %p480, %s32, 0
        %s482 = scalar_lea.vmem %s8, %s481
        %p483 = pneg %p271
        %p484 = pneg %p268
        %p485 = pneg %p299
        %p486 = pneg %p296
        %s487 = sand.u32 %s286, 1
        %s488 = scalar_lea.sflag [#allocation6], %s487
        %s489 = sand.u32 %s286, 1
        %s490 = smul.addr %s489, 128
        %s491 = scalar_lea.vmem [#allocation12], %s490
        %p492 = scmp.lt.s32.totalorder %s32, 0
        %s493 = scalar_select %p492, %s32, 0
        %s494 = scalar_lea.vmem %s4, %s493
        %p495 = scmp.lt.s32.totalorder %s32, 0
        %s496 = scalar_select %p495, %s32, 0
        %s497 = scalar_lea.vmem %s5, %s496
        %p498 = scmp.lt.s32.totalorder %s32, 0
        %s499 = scalar_select %p498, %s32, 0
        %s500 = scalar_lea.vmem %s6, %s499
        %p501 = scmp.lt.s32.totalorder %s32, 0
        %s502 = scalar_select %p501, %s32, 0
        %s503 = scalar_lea.vmem %s7, %s502
        %p504 = scmp.lt.s32.totalorder %s32, 0
        %s505 = scalar_select %p504, %s32, 0
        %s506 = scalar_lea.vmem %s8, %s505
        %v508 = vlaneseq
        %v509 = vshrl.u32 %v508, 7
        %v510 = vadd.s32 %v509, 8
        %v511 = vadd.s32 %v509, 16
        %v512 = vadd.s32 %v509, 24
        %v513 = vadd.s32 %v509, 32
        %v514 = vadd.s32 %v509, 40
        %v515 = vadd.s32 %v509, 48
        %v516 = vadd.s32 %v509, 56
        %v517 = vadd.s32 %v509, 64
        %v518 = vadd.s32 %v509, 72
        %v519 = vadd.s32 %v509, 80
        %v520 = vadd.s32 %v509, 88
        %v521 = vadd.s32 %v509, 96
        %v522 = vadd.s32 %v509, 104
        %v523 = vadd.s32 %v509, 112
        %v524 = vadd.s32 %v509, 120
        %v525 = vadd.s32 %v509, 128
        %v526 = vadd.s32 %v509, 136
        %v527 = vadd.s32 %v509, 144
        %v528 = vadd.s32 %v509, 152
        %v529 = vadd.s32 %v509, 160
        %v530 = vadd.s32 %v509, 168
        %v531 = vadd.s32 %v509, 176
        %v532 = vadd.s32 %v509, 184
        %v533 = vadd.s32 %v509, 192
        %v534 = vadd.s32 %v509, 200
        %v535 = vadd.s32 %v509, 208
        %v536 = vadd.s32 %v509, 216
        %v537 = vadd.s32 %v509, 224
        %v538 = vadd.s32 %v509, 232
        %v539 = vadd.s32 %v509, 240
        %v540 = vadd.s32 %v509, 248
        %vm541 = vcmp.lt.s32.totalorder %v509, 0
        %v542 = vsub.s32 0, %v509
        %v543 = vsel %vm541, %v542, %v509
        %v544 = vshrl.u32 %v543, 4
        %v545 = vand.u32 %v543, 15
        %v546 = vsub.s32 0, %v545
        %v547 = vsel %vm541, %v546, %v545
        %vm548 = vcmp.lt.s32.totalorder %v510, 0
        %v549 = vsub.s32 0, %v510
        %v550 = vsel %vm548, %v549, %v510
        %v551 = vshrl.u32 %v550, 4
        %v552 = vand.u32 %v550, 15
        %v553 = vsub.s32 0, %v552
        %v554 = vsel %vm548, %v553, %v552
        %vm555 = vcmp.lt.s32.totalorder %v511, 0
        %v556 = vsub.s32 0, %v511
        %v557 = vsel %vm555, %v556, %v511
        %v558 = vshrl.u32 %v557, 4
        %v559 = vand.u32 %v557, 15
        %v560 = vsub.s32 0, %v559
        %v561 = vsel %vm555, %v560, %v559
        %vm562 = vcmp.lt.s32.totalorder %v512, 0
        %v563 = vsub.s32 0, %v512
        %v564 = vsel %vm562, %v563, %v512
        %v565 = vshrl.u32 %v564, 4
        %v566 = vand.u32 %v564, 15
        %v567 = vsub.s32 0, %v566
        %v568 = vsel %vm562, %v567, %v566
        %vm569 = vcmp.lt.s32.totalorder %v513, 0
        %v570 = vsub.s32 0, %v513
        %v571 = vsel %vm569, %v570, %v513
        %v572 = vshrl.u32 %v571, 4
        %v573 = vand.u32 %v571, 15
        %v574 = vsub.s32 0, %v573
        %v575 = vsel %vm569, %v574, %v573
        %vm576 = vcmp.lt.s32.totalorder %v514, 0
        %v577 = vsub.s32 0, %v514
        %v578 = vsel %vm576, %v577, %v514
        %v579 = vshrl.u32 %v578, 4
        %v580 = vand.u32 %v578, 15
        %v581 = vsub.s32 0, %v580
        %v582 = vsel %vm576, %v581, %v580
        %vm583 = vcmp.lt.s32.totalorder %v515, 0
        %v584 = vsub.s32 0, %v515
        %v585 = vsel %vm583, %v584, %v515
        %v586 = vshrl.u32 %v585, 4
        %v587 = vand.u32 %v585, 15
        %v588 = vsub.s32 0, %v587
        %v589 = vsel %vm583, %v588, %v587
        %vm590 = vcmp.lt.s32.totalorder %v516, 0
        %v591 = vsub.s32 0, %v516
        %v592 = vsel %vm590, %v591, %v516
        %v593 = vshrl.u32 %v592, 4
        %v594 = vand.u32 %v592, 15
        %v595 = vsub.s32 0, %v594
        %v596 = vsel %vm590, %v595, %v594
        %vm597 = vcmp.lt.s32.totalorder %v517, 0
        %v598 = vsub.s32 0, %v517
        %v599 = vsel %vm597, %v598, %v517
        %v600 = vshrl.u32 %v599, 4
        %v601 = vand.u32 %v599, 15
        %v602 = vsub.s32 0, %v601
        %v603 = vsel %vm597, %v602, %v601
        %vm604 = vcmp.lt.s32.totalorder %v518, 0
        %v605 = vsub.s32 0, %v518
        %v606 = vsel %vm604, %v605, %v518
        %v607 = vshrl.u32 %v606, 4
        %v608 = vand.u32 %v606, 15
        %v609 = vsub.s32 0, %v608
        %v610 = vsel %vm604, %v609, %v608
        %vm611 = vcmp.lt.s32.totalorder %v519, 0
        %v612 = vsub.s32 0, %v519
        %v613 = vsel %vm611, %v612, %v519
        %v614 = vshrl.u32 %v613, 4
        %v615 = vand.u32 %v613, 15
        %v616 = vsub.s32 0, %v615
        %v617 = vsel %vm611, %v616, %v615
        %vm618 = vcmp.lt.s32.totalorder %v520, 0
        %v619 = vsub.s32 0, %v520
        %v620 = vsel %vm618, %v619, %v520
        %v621 = vshrl.u32 %v620, 4
        %v622 = vand.u32 %v620, 15
        %v623 = vsub.s32 0, %v622
        %v624 = vsel %vm618, %v623, %v622
        %vm625 = vcmp.lt.s32.totalorder %v521, 0
        %v626 = vsub.s32 0, %v521
        %v627 = vsel %vm625, %v626, %v521
        %v628 = vshrl.u32 %v627, 4
        %v629 = vand.u32 %v627, 15
        %v630 = vsub.s32 0, %v629
        %v631 = vsel %vm625, %v630, %v629
        %vm632 = vcmp.lt.s32.totalorder %v522, 0
        %v633 = vsub.s32 0, %v522
        %v634 = vsel %vm632, %v633, %v522
        %v635 = vshrl.u32 %v634, 4
        %v636 = vand.u32 %v634, 15
        %v637 = vsub.s32 0, %v636
        %v638 = vsel %vm632, %v637, %v636
        %vm639 = vcmp.lt.s32.totalorder %v523, 0
        %v640 = vsub.s32 0, %v523
        %v641 = vsel %vm639, %v640, %v523
        %v642 = vshrl.u32 %v641, 4
        %v643 = vand.u32 %v641, 15
        %v644 = vsub.s32 0, %v643
        %v645 = vsel %vm639, %v644, %v643
        %vm646 = vcmp.lt.s32.totalorder %v524, 0
        %v647 = vsub.s32 0, %v524
        %v648 = vsel %vm646, %v647, %v524
        %v649 = vshrl.u32 %v648, 4
        %v650 = vand.u32 %v648, 15
        %v651 = vsub.s32 0, %v650
        %v652 = vsel %vm646, %v651, %v650
        %vm653 = vcmp.lt.s32.totalorder %v525, 0
        %v654 = vsub.s32 0, %v525
        %v655 = vsel %vm653, %v654, %v525
        %v656 = vshrl.u32 %v655, 4
        %v657 = vand.u32 %v655, 15
        %v658 = vsub.s32 0, %v657
        %v659 = vsel %vm653, %v658, %v657
        %vm660 = vcmp.lt.s32.totalorder %v526, 0
        %v661 = vsub.s32 0, %v526
        %v662 = vsel %vm660, %v661, %v526
        %v663 = vshrl.u32 %v662, 4
        %v664 = vand.u32 %v662, 15
        %v665 = vsub.s32 0, %v664
        %v666 = vsel %vm660, %v665, %v664
        %vm667 = vcmp.lt.s32.totalorder %v527, 0
        %v668 = vsub.s32 0, %v527
        %v669 = vsel %vm667, %v668, %v527
        %v670 = vshrl.u32 %v669, 4
        %v671 = vand.u32 %v669, 15
        %v672 = vsub.s32 0, %v671
        %v673 = vsel %vm667, %v672, %v671
        %vm674 = vcmp.lt.s32.totalorder %v528, 0
        %v675 = vsub.s32 0, %v528
        %v676 = vsel %vm674, %v675, %v528
        %v677 = vshrl.u32 %v676, 4
        %v678 = vand.u32 %v676, 15
        %v679 = vsub.s32 0, %v678
        %v680 = vsel %vm674, %v679, %v678
        %vm681 = vcmp.lt.s32.totalorder %v529, 0
        %v682 = vsub.s32 0, %v529
        %v683 = vsel %vm681, %v682, %v529
        %v684 = vshrl.u32 %v683, 4
        %v685 = vand.u32 %v683, 15
        %v686 = vsub.s32 0, %v685
        %v687 = vsel %vm681, %v686, %v685
        %vm688 = vcmp.lt.s32.totalorder %v530, 0
        %v689 = vsub.s32 0, %v530
        %v690 = vsel %vm688, %v689, %v530
        %v691 = vshrl.u32 %v690, 4
        %v692 = vand.u32 %v690, 15
        %v693 = vsub.s32 0, %v692
        %v694 = vsel %vm688, %v693, %v692
        %vm695 = vcmp.lt.s32.totalorder %v531, 0
        %v696 = vsub.s32 0, %v531
        %v697 = vsel %vm695, %v696, %v531
        %v698 = vshrl.u32 %v697, 4
        %v699 = vand.u32 %v697, 15
        %v700 = vsub.s32 0, %v699
        %v701 = vsel %vm695, %v700, %v699
        %vm702 = vcmp.lt.s32.totalorder %v532, 0
        %v703 = vsub.s32 0, %v532
        %v704 = vsel %vm702, %v703, %v532
        %v705 = vshrl.u32 %v704, 4
        %v706 = vand.u32 %v704, 15
        %v707 = vsub.s32 0, %v706
        %v708 = vsel %vm702, %v707, %v706
        %vm709 = vcmp.lt.s32.totalorder %v533, 0
        %v710 = vsub.s32 0, %v533
        %v711 = vsel %vm709, %v710, %v533
        %v712 = vshrl.u32 %v711, 4
        %v713 = vand.u32 %v711, 15
        %v714 = vsub.s32 0, %v713
        %v715 = vsel %vm709, %v714, %v713
        %vm716 = vcmp.lt.s32.totalorder %v534, 0
        %v717 = vsub.s32 0, %v534
        %v718 = vsel %vm716, %v717, %v534
        %v719 = vshrl.u32 %v718, 4
        %v720 = vand.u32 %v718, 15
        %v721 = vsub.s32 0, %v720
        %v722 = vsel %vm716, %v721, %v720
        %vm723 = vcmp.lt.s32.totalorder %v535, 0
        %v724 = vsub.s32 0, %v535
        %v725 = vsel %vm723, %v724, %v535
        %v726 = vshrl.u32 %v725, 4
        %v727 = vand.u32 %v725, 15
        %v728 = vsub.s32 0, %v727
        %v729 = vsel %vm723, %v728, %v727
        %vm730 = vcmp.lt.s32.totalorder %v536, 0
        %v731 = vsub.s32 0, %v536
        %v732 = vsel %vm730, %v731, %v536
        %v733 = vshrl.u32 %v732, 4
        %v734 = vand.u32 %v732, 15
        %v735 = vsub.s32 0, %v734
        %v736 = vsel %vm730, %v735, %v734
        %vm737 = vcmp.lt.s32.totalorder %v537, 0
        %v738 = vsub.s32 0, %v537
        %v739 = vsel %vm737, %v738, %v537
        %v740 = vshrl.u32 %v739, 4
        %v741 = vand.u32 %v739, 15
        %v742 = vsub.s32 0, %v741
        %v743 = vsel %vm737, %v742, %v741
        %vm744 = vcmp.lt.s32.totalorder %v538, 0
        %v745 = vsub.s32 0, %v538
        %v746 = vsel %vm744, %v745, %v538
        %v747 = vshrl.u32 %v746, 4
        %v748 = vand.u32 %v746, 15
        %v749 = vsub.s32 0, %v748
        %v750 = vsel %vm744, %v749, %v748
        %vm751 = vcmp.lt.s32.totalorder %v539, 0
        %v752 = vsub.s32 0, %v539
        %v753 = vsel %vm751, %v752, %v539
        %v754 = vshrl.u32 %v753, 4
        %v755 = vand.u32 %v753, 15
        %v756 = vsub.s32 0, %v755
        %v757 = vsel %vm751, %v756, %v755
        %vm758 = vcmp.lt.s32.totalorder %v540, 0
        %v759 = vsub.s32 0, %v540
        %v760 = vsel %vm758, %v759, %v540
        %v761 = vshrl.u32 %v760, 4
        %v762 = vand.u32 %v760, 15
        %v763 = vsub.s32 0, %v762
        %v764 = vsel %vm758, %v763, %v762
        %vm765 = vcmp.ne.s32.totalorder %v547, 0
        %vm766 = vcmp.ne.s32.totalorder %v554, 0
        %vm767 = vcmp.ne.s32.totalorder %v561, 0
        %vm768 = vcmp.ne.s32.totalorder %v568, 0
        %vm769 = vcmp.ne.s32.totalorder %v575, 0
        %vm770 = vcmp.ne.s32.totalorder %v582, 0
        %vm771 = vcmp.ne.s32.totalorder %v589, 0
        %vm772 = vcmp.ne.s32.totalorder %v596, 0
        %vm773 = vcmp.ne.s32.totalorder %v603, 0
        %vm774 = vcmp.ne.s32.totalorder %v610, 0
        %vm775 = vcmp.ne.s32.totalorder %v617, 0
        %vm776 = vcmp.ne.s32.totalorder %v624, 0
        %vm777 = vcmp.ne.s32.totalorder %v631, 0
        %vm778 = vcmp.ne.s32.totalorder %v638, 0
        %vm779 = vcmp.ne.s32.totalorder %v645, 0
        %vm780 = vcmp.ne.s32.totalorder %v652, 0
        %vm781 = vcmp.ne.s32.totalorder %v659, 0
        %vm782 = vcmp.ne.s32.totalorder %v666, 0
        %vm783 = vcmp.ne.s32.totalorder %v673, 0
        %vm784 = vcmp.ne.s32.totalorder %v680, 0
        %vm785 = vcmp.ne.s32.totalorder %v687, 0
        %vm786 = vcmp.ne.s32.totalorder %v694, 0
        %vm787 = vcmp.ne.s32.totalorder %v701, 0
        %vm788 = vcmp.ne.s32.totalorder %v708, 0
        %vm789 = vcmp.ne.s32.totalorder %v715, 0
        %vm790 = vcmp.ne.s32.totalorder %v722, 0
        %vm791 = vcmp.ne.s32.totalorder %v729, 0
        %vm792 = vcmp.ne.s32.totalorder %v736, 0
        %vm793 = vcmp.ne.s32.totalorder %v743, 0
        %vm794 = vcmp.ne.s32.totalorder %v750, 0
        %vm795 = vcmp.ne.s32.totalorder %v757, 0
        %vm796 = vcmp.ne.s32.totalorder %v764, 0
        %vm797 = vcmp.lt.s32.totalorder %v547, 0
        %vm798 = vcmp.lt.s32.totalorder %v554, 0
        %vm799 = vcmp.lt.s32.totalorder %v561, 0
        %vm800 = vcmp.lt.s32.totalorder %v568, 0
        %vm801 = vcmp.lt.s32.totalorder %v575, 0
        %vm802 = vcmp.lt.s32.totalorder %v582, 0
        %vm803 = vcmp.lt.s32.totalorder %v589, 0
        %vm804 = vcmp.lt.s32.totalorder %v596, 0
        %vm805 = vcmp.lt.s32.totalorder %v603, 0
        %vm806 = vcmp.lt.s32.totalorder %v610, 0
        %vm807 = vcmp.lt.s32.totalorder %v617, 0
        %vm808 = vcmp.lt.s32.totalorder %v624, 0
        %vm809 = vcmp.lt.s32.totalorder %v631, 0
        %vm810 = vcmp.lt.s32.totalorder %v638, 0
        %vm811 = vcmp.lt.s32.totalorder %v645, 0
        %vm812 = vcmp.lt.s32.totalorder %v652, 0
        %vm813 = vcmp.lt.s32.totalorder %v659, 0
        %vm814 = vcmp.lt.s32.totalorder %v666, 0
        %vm815 = vcmp.lt.s32.totalorder %v673, 0
        %vm816 = vcmp.lt.s32.totalorder %v680, 0
        %vm817 = vcmp.lt.s32.totalorder %v687, 0
        %vm818 = vcmp.lt.s32.totalorder %v694, 0
        %vm819 = vcmp.lt.s32.totalorder %v701, 0
        %vm820 = vcmp.lt.s32.totalorder %v708, 0
        %vm821 = vcmp.lt.s32.totalorder %v715, 0
        %vm822 = vcmp.lt.s32.totalorder %v722, 0
        %vm823 = vcmp.lt.s32.totalorder %v729, 0
        %vm824 = vcmp.lt.s32.totalorder %v736, 0
        %vm825 = vcmp.lt.s32.totalorder %v743, 0
        %vm826 = vcmp.lt.s32.totalorder %v750, 0
        %vm827 = vcmp.lt.s32.totalorder %v757, 0
        %vm828 = vcmp.lt.s32.totalorder %v764, 0
        %vm829 = vmand %vm797, %vm765
        %vm830 = vmand %vm798, %vm766
        %vm831 = vmand %vm799, %vm767
        %vm832 = vmand %vm800, %vm768
        %vm833 = vmand %vm801, %vm769
        %vm834 = vmand %vm802, %vm770
        %vm835 = vmand %vm803, %vm771
        %vm836 = vmand %vm804, %vm772
        %vm837 = vmand %vm805, %vm773
        %vm838 = vmand %vm806, %vm774
        %vm839 = vmand %vm807, %vm775
        %vm840 = vmand %vm808, %vm776
        %vm841 = vmand %vm809, %vm777
        %vm842 = vmand %vm810, %vm778
        %vm843 = vmand %vm811, %vm779
        %vm844 = vmand %vm812, %vm780
        %vm845 = vmand %vm813, %vm781
        %vm846 = vmand %vm814, %vm782
        %vm847 = vmand %vm815, %vm783
        %vm848 = vmand %vm816, %vm784
        %vm849 = vmand %vm817, %vm785
        %vm850 = vmand %vm818, %vm786
        %vm851 = vmand %vm819, %vm787
        %vm852 = vmand %vm820, %vm788
        %vm853 = vmand %vm821, %vm789
        %vm854 = vmand %vm822, %vm790
        %vm855 = vmand %vm823, %vm791
        %vm856 = vmand %vm824, %vm792
        %vm857 = vmand %vm825, %vm793
        %vm858 = vmand %vm826, %vm794
        %vm859 = vmand %vm827, %vm795
        %vm860 = vmand %vm828, %vm796
        %v861 = vadd.s32 %v547, 16
        %v862 = vadd.s32 %v554, 16
        %v863 = vadd.s32 %v561, 16
        %v864 = vadd.s32 %v568, 16
        %v865 = vadd.s32 %v575, 16
        %v866 = vadd.s32 %v582, 16
        %v867 = vadd.s32 %v589, 16
        %v868 = vadd.s32 %v596, 16
        %v869 = vadd.s32 %v603, 16
        %v870 = vadd.s32 %v610, 16
        %v871 = vadd.s32 %v617, 16
        %v872 = vadd.s32 %v624, 16
        %v873 = vadd.s32 %v631, 16
        %v874 = vadd.s32 %v638, 16
        %v875 = vadd.s32 %v645, 16
        %v876 = vadd.s32 %v652, 16
        %v877 = vadd.s32 %v659, 16
        %v878 = vadd.s32 %v666, 16
        %v879 = vadd.s32 %v673, 16
        %v880 = vadd.s32 %v680, 16
        %v881 = vadd.s32 %v687, 16
        %v882 = vadd.s32 %v694, 16
        %v883 = vadd.s32 %v701, 16
        %v884 = vadd.s32 %v708, 16
        %v885 = vadd.s32 %v715, 16
        %v886 = vadd.s32 %v722, 16
        %v887 = vadd.s32 %v729, 16
        %v888 = vadd.s32 %v736, 16
        %v889 = vadd.s32 %v743, 16
        %v890 = vadd.s32 %v750, 16
        %v891 = vadd.s32 %v757, 16
        %v892 = vadd.s32 %v764, 16
        %v893 = vsel %vm829, %v861, %v547
        %v894 = vsel %vm830, %v862, %v554
        %v895 = vsel %vm831, %v863, %v561
        %v896 = vsel %vm832, %v864, %v568
        %v897 = vsel %vm833, %v865, %v575
        %v898 = vsel %vm834, %v866, %v582
        %v899 = vsel %vm835, %v867, %v589
        %v900 = vsel %vm836, %v868, %v596
        %v901 = vsel %vm837, %v869, %v603
        %v902 = vsel %vm838, %v870, %v610
        %v903 = vsel %vm839, %v871, %v617
        %v904 = vsel %vm840, %v872, %v624
        %v905 = vsel %vm841, %v873, %v631
        %v906 = vsel %vm842, %v874, %v638
        %v907 = vsel %vm843, %v875, %v645
        %v908 = vsel %vm844, %v876, %v652
        %v909 = vsel %vm845, %v877, %v659
        %v910 = vsel %vm846, %v878, %v666
        %v911 = vsel %vm847, %v879, %v673
        %v912 = vsel %vm848, %v880, %v680
        %v913 = vsel %vm849, %v881, %v687
        %v914 = vsel %vm850, %v882, %v694
        %v915 = vsel %vm851, %v883, %v701
        %v916 = vsel %vm852, %v884, %v708
        %v917 = vsel %vm853, %v885, %v715
        %v918 = vsel %vm854, %v886, %v722
        %v919 = vsel %vm855, %v887, %v729
        %v920 = vsel %vm856, %v888, %v736
        %v921 = vsel %vm857, %v889, %v743
        %v922 = vsel %vm858, %v890, %v750
        %v923 = vsel %vm859, %v891, %v757
        %v924 = vsel %vm860, %v892, %v764
        %vm925 = vcmp.gt.s32.totalorder %v893, 0
        %vm926 = vcmp.gt.s32.totalorder %v894, 0
        %vm927 = vcmp.gt.s32.totalorder %v895, 0
        %vm928 = vcmp.gt.s32.totalorder %v896, 0
        %vm929 = vcmp.gt.s32.totalorder %v897, 0
        %vm930 = vcmp.gt.s32.totalorder %v898, 0
        %vm931 = vcmp.gt.s32.totalorder %v899, 0
        %vm932 = vcmp.gt.s32.totalorder %v900, 0
        %vm933 = vcmp.gt.s32.totalorder %v901, 0
        %vm934 = vcmp.gt.s32.totalorder %v902, 0
        %vm935 = vcmp.gt.s32.totalorder %v903, 0
        %vm936 = vcmp.gt.s32.totalorder %v904, 0
        %vm937 = vcmp.gt.s32.totalorder %v905, 0
        %vm938 = vcmp.gt.s32.totalorder %v906, 0
        %vm939 = vcmp.gt.s32.totalorder %v907, 0
        %vm940 = vcmp.gt.s32.totalorder %v908, 0
        %vm941 = vcmp.gt.s32.totalorder %v909, 0
        %vm942 = vcmp.gt.s32.totalorder %v910, 0
        %vm943 = vcmp.gt.s32.totalorder %v911, 0
        %vm944 = vcmp.gt.s32.totalorder %v912, 0
        %vm945 = vcmp.gt.s32.totalorder %v913, 0
        %vm946 = vcmp.gt.s32.totalorder %v914, 0
        %vm947 = vcmp.gt.s32.totalorder %v915, 0
        %vm948 = vcmp.gt.s32.totalorder %v916, 0
        %vm949 = vcmp.gt.s32.totalorder %v917, 0
        %vm950 = vcmp.gt.s32.totalorder %v918, 0
        %vm951 = vcmp.gt.s32.totalorder %v919, 0
        %vm952 = vcmp.gt.s32.totalorder %v920, 0
        %vm953 = vcmp.gt.s32.totalorder %v921, 0
        %vm954 = vcmp.gt.s32.totalorder %v922, 0
        %vm955 = vcmp.gt.s32.totalorder %v923, 0
        %vm956 = vcmp.gt.s32.totalorder %v924, 0
        %vm957 = vcmp.lt.s32.totalorder %v893, 15
        %vm958 = vcmp.lt.s32.totalorder %v894, 15
        %vm959 = vcmp.lt.s32.totalorder %v895, 15
        %vm960 = vcmp.lt.s32.totalorder %v896, 15
        %vm961 = vcmp.lt.s32.totalorder %v897, 15
        %vm962 = vcmp.lt.s32.totalorder %v898, 15
        %vm963 = vcmp.lt.s32.totalorder %v899, 15
        %vm964 = vcmp.lt.s32.totalorder %v900, 15
        %vm965 = vcmp.lt.s32.totalorder %v901, 15
        %vm966 = vcmp.lt.s32.totalorder %v902, 15
        %vm967 = vcmp.lt.s32.totalorder %v903, 15
        %vm968 = vcmp.lt.s32.totalorder %v904, 15
        %vm969 = vcmp.lt.s32.totalorder %v905, 15
        %vm970 = vcmp.lt.s32.totalorder %v906, 15
        %vm971 = vcmp.lt.s32.totalorder %v907, 15
        %vm972 = vcmp.lt.s32.totalorder %v908, 15
        %vm973 = vcmp.lt.s32.totalorder %v909, 15
        %vm974 = vcmp.lt.s32.totalorder %v910, 15
        %vm975 = vcmp.lt.s32.totalorder %v911, 15
        %vm976 = vcmp.lt.s32.totalorder %v912, 15
        %vm977 = vcmp.lt.s32.totalorder %v913, 15
        %vm978 = vcmp.lt.s32.totalorder %v914, 15
        %vm979 = vcmp.lt.s32.totalorder %v915, 15
        %vm980 = vcmp.lt.s32.totalorder %v916, 15
        %vm981 = vcmp.lt.s32.totalorder %v917, 15
        %vm982 = vcmp.lt.s32.totalorder %v918, 15
        %vm983 = vcmp.lt.s32.totalorder %v919, 15
        %vm984 = vcmp.lt.s32.totalorder %v920, 15
        %vm985 = vcmp.lt.s32.totalorder %v921, 15
        %vm986 = vcmp.lt.s32.totalorder %v922, 15
        %vm987 = vcmp.lt.s32.totalorder %v923, 15
        %vm988 = vcmp.lt.s32.totalorder %v924, 15
        %v989 = vld [vmem:[%s430] sm:$0xf]
        %v990 = vld [vmem:[%s430 + $0x4] sm:$0xf]
        %v991 = vld [vmem:[%s430 + $0x8] sm:$0xf]
        %v992 = vld [vmem:[%s430 + $0xc] sm:$0xf]
        %v993 = vld [vmem:[%s430 + $0x10] sm:$0xf]
        %v994 = vld [vmem:[%s430 + $0x14] sm:$0xf]
        %v995 = vld [vmem:[%s430 + $0x18] sm:$0xf]
        %v996 = vld [vmem:[%s430 + $0x1c] sm:$0xf]
        %v997 = vld [vmem:[%s430 + $0x20] sm:$0xf]
        %v998 = vld [vmem:[%s430 + $0x24] sm:$0xf]
        %v999 = vld [vmem:[%s430 + $0x28] sm:$0xf]
        %v1000 = vld [vmem:[%s430 + $0x2c] sm:$0xf]
        %v1001 = vld [vmem:[%s430 + $0x30] sm:$0xf]
        %v1002 = vld [vmem:[%s430 + $0x34] sm:$0xf]
        %v1003 = vld [vmem:[%s430 + $0x38] sm:$0xf]
        %v1004 = vld [vmem:[%s430 + $0x3c] sm:$0xf]
        %v1005 = vld [vmem:[%s430 + $0x40] sm:$0xf]
        %v1006 = vld [vmem:[%s430 + $0x44] sm:$0xf]
        %v1007 = vld [vmem:[%s430 + $0x48] sm:$0xf]
        %v1008 = vld [vmem:[%s430 + $0x4c] sm:$0xf]
        %v1009 = vld [vmem:[%s430 + $0x50] sm:$0xf]
        %v1010 = vld [vmem:[%s430 + $0x54] sm:$0xf]
        %v1011 = vld [vmem:[%s430 + $0x58] sm:$0xf]
        %v1012 = vld [vmem:[%s430 + $0x5c] sm:$0xf]
        %v1013 = vld [vmem:[%s430 + $0x60] sm:$0xf]
        %v1014 = vld [vmem:[%s430 + $0x64] sm:$0xf]
        %v1015 = vld [vmem:[%s430 + $0x68] sm:$0xf]
        %v1016 = vld [vmem:[%s430 + $0x6c] sm:$0xf]
        %v1017 = vld [vmem:[%s430 + $0x70] sm:$0xf]
        %v1018 = vld [vmem:[%s430 + $0x74] sm:$0xf]
        %v1019 = vld [vmem:[%s430 + $0x78] sm:$0xf]
        %v1020 = vld [vmem:[%s430 + $0x7c] sm:$0xf]
        %v1021 = vunpack.c.l.bf16 %v989
        %v1022 = vunpack.c.l.bf16 %v990
        %v1023 = vunpack.c.l.bf16 %v991
        %v1024 = vunpack.c.l.bf16 %v992
        %v1025 = vunpack.c.l.bf16 %v993
        %v1026 = vunpack.c.l.bf16 %v994
        %v1027 = vunpack.c.l.bf16 %v995
        %v1028 = vunpack.c.l.bf16 %v996
        %v1029 = vunpack.c.l.bf16 %v997
        %v1030 = vunpack.c.l.bf16 %v998
        %v1031 = vunpack.c.l.bf16 %v999
        %v1032 = vunpack.c.l.bf16 %v1000
        %v1033 = vunpack.c.l.bf16 %v1001
        %v1034 = vunpack.c.l.bf16 %v1002
        %v1035 = vunpack.c.l.bf16 %v1003
        %v1036 = vunpack.c.l.bf16 %v1004
        %v1037 = vunpack.c.l.bf16 %v1005
        %v1038 = vunpack.c.l.bf16 %v1006
        %v1039 = vunpack.c.l.bf16 %v1007
        %v1040 = vunpack.c.l.bf16 %v1008
        %v1041 = vunpack.c.l.bf16 %v1009
        %v1042 = vunpack.c.l.bf16 %v1010
        %v1043 = vunpack.c.l.bf16 %v1011
        %v1044 = vunpack.c.l.bf16 %v1012
        %v1045 = vunpack.c.l.bf16 %v1013
        %v1046 = vunpack.c.l.bf16 %v1014
        %v1047 = vunpack.c.l.bf16 %v1015
        %v1048 = vunpack.c.l.bf16 %v1016
        %v1049 = vunpack.c.l.bf16 %v1017
        %v1050 = vunpack.c.l.bf16 %v1018
        %v1051 = vunpack.c.l.bf16 %v1019
        %v1052 = vunpack.c.l.bf16 %v1020
        %1053 = vst [vmem:[#allocation2] sm:$0xff] 0
        %1054 = vst [vmem:[#allocation2 + $0x8] sm:$0xff] 0
        %1055 = vst [vmem:[#allocation2 + $0x10] sm:$0xff] 0
        %1056 = vst [vmem:[#allocation2 + $0x198] sm:$0xff] 0
        %1057 = vst [vmem:[#allocation2 + $0x1a0] sm:$0xff] 0
        %1058 = vst [vmem:[#allocation2 + $0x1a8] sm:$0xff] 0
        %v1059 = vrot.slane %v1021, 7
        %v1060 = vrot.slane %v1022, 7
        %v1061 = vrot.slane %v1023, 7
        %v1062 = vrot.slane %v1024, 7
        %v1063 = vrot.slane %v1025, 7
        %v1064 = vrot.slane %v1026, 7
        %v1065 = vrot.slane %v1027, 7
        %v1066 = vrot.slane %v1028, 7
        %v1067 = vrot.slane %v1029, 7
        %v1068 = vrot.slane %v1030, 7
        %v1069 = vrot.slane %v1031, 7
        %v1070 = vrot.slane %v1032, 7
        %v1071 = vrot.slane %v1033, 7
        %v1072 = vrot.slane %v1034, 7
        %v1073 = vrot.slane %v1035, 7
        %v1074 = vrot.slane %v1036, 7
        %v1075 = vrot.slane %v1037, 7
        %v1076 = vrot.slane %v1038, 7
        %v1077 = vrot.slane %v1039, 7
        %v1078 = vrot.slane %v1040, 7
        %v1079 = vrot.slane %v1041, 7
        %v1080 = vrot.slane %v1042, 7
        %v1081 = vrot.slane %v1043, 7
        %v1082 = vrot.slane %v1044, 7
        %v1083 = vrot.slane %v1045, 7
        %v1084 = vrot.slane %v1046, 7
        %v1085 = vrot.slane %v1047, 7
        %v1086 = vrot.slane %v1048, 7
        %v1087 = vrot.slane %v1049, 7
        %v1088 = vrot.slane %v1050, 7
        %v1089 = vrot.slane %v1051, 7
        %v1090 = vrot.slane %v1052, 7
        %vm1091 = vcmp.lt.s32.totalorder %v509, 1
        %v1092 = vsel %vm1091, %v1089, %v1090
        %v1093 = vsel %vm1091, %v1088, %v1089
        %v1094 = vsel %vm1091, %v1087, %v1088
        %v1095 = vsel %vm1091, %v1086, %v1087
        %v1096 = vsel %vm1091, %v1085, %v1086
        %v1097 = vsel %vm1091, %v1084, %v1085
        %v1098 = vsel %vm1091, %v1083, %v1084
        %v1099 = vsel %vm1091, %v1082, %v1083
        %v1100 = vsel %vm1091, %v1081, %v1082
        %v1101 = vsel %vm1091, %v1080, %v1081
        %v1102 = vsel %vm1091, %v1079, %v1080
        %v1103 = vsel %vm1091, %v1078, %v1079
        %v1104 = vsel %vm1091, %v1077, %v1078
        %v1105 = vsel %vm1091, %v1076, %v1077
        %v1106 = vsel %vm1091, %v1075, %v1076
        %v1107 = vsel %vm1091, %v1074, %v1075
        %v1108 = vsel %vm1091, %v1073, %v1074
        %v1109 = vsel %vm1091, %v1072, %v1073
        %v1110 = vsel %vm1091, %v1071, %v1072
        %v1111 = vsel %vm1091, %v1070, %v1071
        %v1112 = vsel %vm1091, %v1069, %v1070
        %v1113 = vsel %vm1091, %v1068, %v1069
        %v1114 = vsel %vm1091, %v1067, %v1068
        %v1115 = vsel %vm1091, %v1066, %v1067
        %v1116 = vsel %vm1091, %v1065, %v1066
        %v1117 = vsel %vm1091, %v1064, %v1065
        %v1118 = vsel %vm1091, %v1063, %v1064
        %v1119 = vsel %vm1091, %v1062, %v1063
        %v1120 = vsel %vm1091, %v1061, %v1062
        %v1121 = vsel %vm1091, %v1060, %v1061
        %v1122 = vsel %vm1091, %v1059, %v1060
        %v1123 = vsel %vm1091, %v1090, %v1059
        %v1124 = vsel %vm925, 1, 0
        %v1125 = vsel %vm926, 1, 0
        %v1126 = vsel %vm927, 1, 0
        %v1127 = vsel %vm928, 1, 0
        %v1128 = vsel %vm929, 1, 0
        %v1129 = vsel %vm930, 1, 0
        %v1130 = vsel %vm931, 1, 0
        %v1131 = vsel %vm932, 1, 0
        %v1132 = vsel %vm933, 1, 0
        %v1133 = vsel %vm934, 1, 0
        %v1134 = vsel %vm935, 1, 0
        %v1135 = vsel %vm936, 1, 0
        %v1136 = vsel %vm937, 1, 0
        %v1137 = vsel %vm938, 1, 0
        %v1138 = vsel %vm939, 1, 0
        %v1139 = vsel %vm940, 1, 0
        %v1140 = vsel %vm941, 1, 0
        %v1141 = vsel %vm942, 1, 0
        %v1142 = vsel %vm943, 1, 0
        %v1143 = vsel %vm944, 1, 0
        %v1144 = vsel %vm945, 1, 0
        %v1145 = vsel %vm946, 1, 0
        %v1146 = vsel %vm947, 1, 0
        %v1147 = vsel %vm948, 1, 0
        %v1148 = vsel %vm949, 1, 0
        %v1149 = vsel %vm950, 1, 0
        %v1150 = vsel %vm951, 1, 0
        %v1151 = vsel %vm952, 1, 0
        %v1152 = vsel %vm953, 1, 0
        %v1153 = vsel %vm954, 1, 0
        %v1154 = vsel %vm955, 1, 0
        %v1155 = vsel %vm956, 1, 0
        %vm1156 = vcmp.eq.s32.totalorder %v1124, 1
        %vm1157 = vcmp.eq.s32.totalorder %v1125, 1
        %vm1158 = vcmp.eq.s32.totalorder %v1126, 1
        %vm1159 = vcmp.eq.s32.totalorder %v1127, 1
        %vm1160 = vcmp.eq.s32.totalorder %v1128, 1
        %vm1161 = vcmp.eq.s32.totalorder %v1129, 1
        %vm1162 = vcmp.eq.s32.totalorder %v1130, 1
        %vm1163 = vcmp.eq.s32.totalorder %v1131, 1
        %vm1164 = vcmp.eq.s32.totalorder %v1132, 1
        %vm1165 = vcmp.eq.s32.totalorder %v1133, 1
        %vm1166 = vcmp.eq.s32.totalorder %v1134, 1
        %vm1167 = vcmp.eq.s32.totalorder %v1135, 1
        %vm1168 = vcmp.eq.s32.totalorder %v1136, 1
        %vm1169 = vcmp.eq.s32.totalorder %v1137, 1
        %vm1170 = vcmp.eq.s32.totalorder %v1138, 1
        %vm1171 = vcmp.eq.s32.totalorder %v1139, 1
        %vm1172 = vcmp.eq.s32.totalorder %v1140, 1
        %vm1173 = vcmp.eq.s32.totalorder %v1141, 1
        %vm1174 = vcmp.eq.s32.totalorder %v1142, 1
        %vm1175 = vcmp.eq.s32.totalorder %v1143, 1
        %vm1176 = vcmp.eq.s32.totalorder %v1144, 1
        %vm1177 = vcmp.eq.s32.totalorder %v1145, 1
        %vm1178 = vcmp.eq.s32.totalorder %v1146, 1
        %vm1179 = vcmp.eq.s32.totalorder %v1147, 1
        %vm1180 = vcmp.eq.s32.totalorder %v1148, 1
        %vm1181 = vcmp.eq.s32.totalorder %v1149, 1
        %vm1182 = vcmp.eq.s32.totalorder %v1150, 1
        %vm1183 = vcmp.eq.s32.totalorder %v1151, 1
        %vm1184 = vcmp.eq.s32.totalorder %v1152, 1
        %vm1185 = vcmp.eq.s32.totalorder %v1153, 1
        %vm1186 = vcmp.eq.s32.totalorder %v1154, 1
        %vm1187 = vcmp.eq.s32.totalorder %v1155, 1
        %v1188 = vsel %vm1156, %v1123, 0.0
        %v1189 = vsel %vm1157, %v1122, 0.0
        %v1190 = vsel %vm1158, %v1121, 0.0
        %v1191 = vsel %vm1159, %v1120, 0.0
        %v1192 = vsel %vm1160, %v1119, 0.0
        %v1193 = vsel %vm1161, %v1118, 0.0
        %v1194 = vsel %vm1162, %v1117, 0.0
        %v1195 = vsel %vm1163, %v1116, 0.0
        %v1196 = vsel %vm1164, %v1115, 0.0
        %v1197 = vsel %vm1165, %v1114, 0.0
        %v1198 = vsel %vm1166, %v1113, 0.0
        %v1199 = vsel %vm1167, %v1112, 0.0
        %v1200 = vsel %vm1168, %v1111, 0.0
        %v1201 = vsel %vm1169, %v1110, 0.0
        %v1202 = vsel %vm1170, %v1109, 0.0
        %v1203 = vsel %vm1171, %v1108, 0.0
        %v1204 = vsel %vm1172, %v1107, 0.0
        %v1205 = vsel %vm1173, %v1106, 0.0
        %v1206 = vsel %vm1174, %v1105, 0.0
        %v1207 = vsel %vm1175, %v1104, 0.0
        %v1208 = vsel %vm1176, %v1103, 0.0
        %v1209 = vsel %vm1177, %v1102, 0.0
        %v1210 = vsel %vm1178, %v1101, 0.0
        %v1211 = vsel %vm1179, %v1100, 0.0
        %v1212 = vsel %vm1180, %v1099, 0.0
        %v1213 = vsel %vm1181, %v1098, 0.0
        %v1214 = vsel %vm1182, %v1097, 0.0
        %v1215 = vsel %vm1183, %v1096, 0.0
        %v1216 = vsel %vm1184, %v1095, 0.0
        %v1217 = vsel %vm1185, %v1094, 0.0
        %v1218 = vsel %vm1186, %v1093, 0.0
        %v1219 = vsel %vm1187, %v1092, 0.0
        %v1220 = vrot.slane %v1021, 1
        %v1221 = vrot.slane %v1022, 1
        %v1222 = vrot.slane %v1023, 1
        %v1223 = vrot.slane %v1024, 1
        %v1224 = vrot.slane %v1025, 1
        %v1225 = vrot.slane %v1026, 1
        %v1226 = vrot.slane %v1027, 1
        %v1227 = vrot.slane %v1028, 1
        %v1228 = vrot.slane %v1029, 1
        %v1229 = vrot.slane %v1030, 1
        %v1230 = vrot.slane %v1031, 1
        %v1231 = vrot.slane %v1032, 1
        %v1232 = vrot.slane %v1033, 1
        %v1233 = vrot.slane %v1034, 1
        %v1234 = vrot.slane %v1035, 1
        %v1235 = vrot.slane %v1036, 1
        %v1236 = vrot.slane %v1037, 1
        %v1237 = vrot.slane %v1038, 1
        %v1238 = vrot.slane %v1039, 1
        %v1239 = vrot.slane %v1040, 1
        %v1240 = vrot.slane %v1041, 1
        %v1241 = vrot.slane %v1042, 1
        %v1242 = vrot.slane %v1043, 1
        %v1243 = vrot.slane %v1044, 1
        %v1244 = vrot.slane %v1045, 1
        %v1245 = vrot.slane %v1046, 1
        %v1246 = vrot.slane %v1047, 1
        %v1247 = vrot.slane %v1048, 1
        %v1248 = vrot.slane %v1049, 1
        %v1249 = vrot.slane %v1050, 1
        %v1250 = vrot.slane %v1051, 1
        %v1251 = vrot.slane %v1052, 1
        %vm1252 = vcmp.lt.s32.totalorder %v509, 7
        %v1253 = vsel %vm1252, %v1250, %v1251
        %v1254 = vsel %vm1252, %v1249, %v1250
        %v1255 = vsel %vm1252, %v1248, %v1249
        %v1256 = vsel %vm1252, %v1247, %v1248
        %v1257 = vsel %vm1252, %v1246, %v1247
        %v1258 = vsel %vm1252, %v1245, %v1246
        %v1259 = vsel %vm1252, %v1244, %v1245
        %v1260 = vsel %vm1252, %v1243, %v1244
        %v1261 = vsel %vm1252, %v1242, %v1243
        %v1262 = vsel %vm1252, %v1241, %v1242
        %v1263 = vsel %vm1252, %v1240, %v1241
        %v1264 = vsel %vm1252, %v1239, %v1240
        %v1265 = vsel %vm1252, %v1238, %v1239
        %v1266 = vsel %vm1252, %v1237, %v1238
        %v1267 = vsel %vm1252, %v1236, %v1237
        %v1268 = vsel %vm1252, %v1235, %v1236
        %v1269 = vsel %vm1252, %v1234, %v1235
        %v1270 = vsel %vm1252, %v1233, %v1234
        %v1271 = vsel %vm1252, %v1232, %v1233
        %v1272 = vsel %vm1252, %v1231, %v1232
        %v1273 = vsel %vm1252, %v1230, %v1231
        %v1274 = vsel %vm1252, %v1229, %v1230
        %v1275 = vsel %vm1252, %v1228, %v1229
        %v1276 = vsel %vm1252, %v1227, %v1228
        %v1277 = vsel %vm1252, %v1226, %v1227
        %v1278 = vsel %vm1252, %v1225, %v1226
        %v1279 = vsel %vm1252, %v1224, %v1225
        %v1280 = vsel %vm1252, %v1223, %v1224
        %v1281 = vsel %vm1252, %v1222, %v1223
        %v1282 = vsel %vm1252, %v1221, %v1222
        %v1283 = vsel %vm1252, %v1220, %v1221
        %v1284 = vsel %vm1252, %v1251, %v1220
        %v1285 = vsel %vm957, 1, 0
        %v1286 = vsel %vm958, 1, 0
        %v1287 = vsel %vm959, 1, 0
        %v1288 = vsel %vm960, 1, 0
        %v1289 = vsel %vm961, 1, 0
        %v1290 = vsel %vm962, 1, 0
        %v1291 = vsel %vm963, 1, 0
        %v1292 = vsel %vm964, 1, 0
        %v1293 = vsel %vm965, 1, 0
        %v1294 = vsel %vm966, 1, 0
        %v1295 = vsel %vm967, 1, 0
        %v1296 = vsel %vm968, 1, 0
        %v1297 = vsel %vm969, 1, 0
        %v1298 = vsel %vm970, 1, 0
        %v1299 = vsel %vm971, 1, 0
        %v1300 = vsel %vm972, 1, 0
        %v1301 = vsel %vm973, 1, 0
        %v1302 = vsel %vm974, 1, 0
        %v1303 = vsel %vm975, 1, 0
        %v1304 = vsel %vm976, 1, 0
        %v1305 = vsel %vm977, 1, 0
        %v1306 = vsel %vm978, 1, 0
        %v1307 = vsel %vm979, 1, 0
        %v1308 = vsel %vm980, 1, 0
        %v1309 = vsel %vm981, 1, 0
        %v1310 = vsel %vm982, 1, 0
        %v1311 = vsel %vm983, 1, 0
        %v1312 = vsel %vm984, 1, 0
        %v1313 = vsel %vm985, 1, 0
        %v1314 = vsel %vm986, 1, 0
        %v1315 = vsel %vm987, 1, 0
        %v1316 = vsel %vm988, 1, 0
        %vm1317 = vcmp.eq.s32.totalorder %v1285, 1
        %vm1318 = vcmp.eq.s32.totalorder %v1286, 1
        %vm1319 = vcmp.eq.s32.totalorder %v1287, 1
        %vm1320 = vcmp.eq.s32.totalorder %v1288, 1
        %vm1321 = vcmp.eq.s32.totalorder %v1289, 1
        %vm1322 = vcmp.eq.s32.totalorder %v1290, 1
        %vm1323 = vcmp.eq.s32.totalorder %v1291, 1
        %vm1324 = vcmp.eq.s32.totalorder %v1292, 1
        %vm1325 = vcmp.eq.s32.totalorder %v1293, 1
        %vm1326 = vcmp.eq.s32.totalorder %v1294, 1
        %vm1327 = vcmp.eq.s32.totalorder %v1295, 1
        %vm1328 = vcmp.eq.s32.totalorder %v1296, 1
        %vm1329 = vcmp.eq.s32.totalorder %v1297, 1
        %vm1330 = vcmp.eq.s32.totalorder %v1298, 1
        %vm1331 = vcmp.eq.s32.totalorder %v1299, 1
        %vm1332 = vcmp.eq.s32.totalorder %v1300, 1
        %vm1333 = vcmp.eq.s32.totalorder %v1301, 1
        %vm1334 = vcmp.eq.s32.totalorder %v1302, 1
        %vm1335 = vcmp.eq.s32.totalorder %v1303, 1
        %vm1336 = vcmp.eq.s32.totalorder %v1304, 1
        %vm1337 = vcmp.eq.s32.totalorder %v1305, 1
        %vm1338 = vcmp.eq.s32.totalorder %v1306, 1
        %vm1339 = vcmp.eq.s32.totalorder %v1307, 1
        %vm1340 = vcmp.eq.s32.totalorder %v1308, 1
        %vm1341 = vcmp.eq.s32.totalorder %v1309, 1
        %vm1342 = vcmp.eq.s32.totalorder %v1310, 1
        %vm1343 = vcmp.eq.s32.totalorder %v1311, 1
        %vm1344 = vcmp.eq.s32.totalorder %v1312, 1
        %vm1345 = vcmp.eq.s32.totalorder %v1313, 1
        %vm1346 = vcmp.eq.s32.totalorder %v1314, 1
        %vm1347 = vcmp.eq.s32.totalorder %v1315, 1
        %vm1348 = vcmp.eq.s32.totalorder %v1316, 1
        %v1349 = vsel %vm1317, %v1283, 0.0
        %v1350 = vsel %vm1318, %v1282, 0.0
        %v1351 = vsel %vm1319, %v1281, 0.0
        %v1352 = vsel %vm1320, %v1280, 0.0
        %v1353 = vsel %vm1321, %v1279, 0.0
        %v1354 = vsel %vm1322, %v1278, 0.0
        %v1355 = vsel %vm1323, %v1277, 0.0
        %v1356 = vsel %vm1324, %v1276, 0.0
        %v1357 = vsel %vm1325, %v1275, 0.0
        %v1358 = vsel %vm1326, %v1274, 0.0
        %v1359 = vsel %vm1327, %v1273, 0.0
        %v1360 = vsel %vm1328, %v1272, 0.0
        %v1361 = vsel %vm1329, %v1271, 0.0
        %v1362 = vsel %vm1330, %v1270, 0.0
        %v1363 = vsel %vm1331, %v1269, 0.0
        %v1364 = vsel %vm1332, %v1268, 0.0
        %v1365 = vsel %vm1333, %v1267, 0.0
        %v1366 = vsel %vm1334, %v1266, 0.0
        %v1367 = vsel %vm1335, %v1265, 0.0
        %v1368 = vsel %vm1336, %v1264, 0.0
        %v1369 = vsel %vm1337, %v1263, 0.0
        %v1370 = vsel %vm1338, %v1262, 0.0
        %v1371 = vsel %vm1339, %v1261, 0.0
        %v1372 = vsel %vm1340, %v1260, 0.0
        %v1373 = vsel %vm1341, %v1259, 0.0
        %v1374 = vsel %vm1342, %v1258, 0.0
        %v1375 = vsel %vm1343, %v1257, 0.0
        %v1376 = vsel %vm1344, %v1256, 0.0
        %v1377 = vsel %vm1345, %v1255, 0.0
        %v1378 = vsel %vm1346, %v1254, 0.0
        %v1379 = vsel %vm1347, %v1253, 0.0
        %v1380 = vsel %vm1348, %v1284, 0.0
        %v1381 = vpack.c.bf16 %v1189, %v1188
        %v1382 = vpack.c.bf16 %v1191, %v1190
        %v1383 = vpack.c.bf16 %v1193, %v1192
        %v1384 = vpack.c.bf16 %v1195, %v1194
        %v1385 = vpack.c.bf16 %v1197, %v1196
        %v1386 = vpack.c.bf16 %v1199, %v1198
        %v1387 = vpack.c.bf16 %v1201, %v1200
        %v1388 = vpack.c.bf16 %v1203, %v1202
        %v1389 = vpack.c.bf16 %v1205, %v1204
        %v1390 = vpack.c.bf16 %v1207, %v1206
        %v1391 = vpack.c.bf16 %v1209, %v1208
        %v1392 = vpack.c.bf16 %v1211, %v1210
        %v1393 = vpack.c.bf16 %v1213, %v1212
        %v1394 = vpack.c.bf16 %v1215, %v1214
        %v1395 = vpack.c.bf16 %v1217, %v1216
        %v1396 = vpack.c.bf16 %v1219, %v1218
        %1397 = vst [vmem:[#allocation2 + $0x18] sm:$0xff] %v1381
        %1398 = vst [vmem:[#allocation2 + $0x30] sm:$0xff] %v1382
        %1399 = vst [vmem:[#allocation2 + $0x48] sm:$0xff] %v1383
        %1400 = vst [vmem:[#allocation2 + $0x60] sm:$0xff] %v1384
        %1401 = vst [vmem:[#allocation2 + $0x78] sm:$0xff] %v1385
        %1402 = vst [vmem:[#allocation2 + $0x90] sm:$0xff] %v1386
        %1403 = vst [vmem:[#allocation2 + $0xa8] sm:$0xff] %v1387
        %1404 = vst [vmem:[#allocation2 + $0xc0] sm:$0xff] %v1388
        %1405 = vst [vmem:[#allocation2 + $0xd8] sm:$0xff] %v1389
        %1406 = vst [vmem:[#allocation2 + $0xf0] sm:$0xff] %v1390
        %1407 = vst [vmem:[#allocation2 + $0x108] sm:$0xff] %v1391
        %1408 = vst [vmem:[#allocation2 + $0x120] sm:$0xff] %v1392
        %1409 = vst [vmem:[#allocation2 + $0x138] sm:$0xff] %v1393
        %1410 = vst [vmem:[#allocation2 + $0x150] sm:$0xff] %v1394
        %1411 = vst [vmem:[#allocation2 + $0x168] sm:$0xff] %v1395
        %1412 = vst [vmem:[#allocation2 + $0x180] sm:$0xff] %v1396
        %v1445 = vunpack.c.l.b16 %v989
        %v1446 = vunpack.c.l.b16 %v990
        %v1447 = vunpack.c.l.b16 %v991
        %v1448 = vunpack.c.l.b16 %v992
        %v1449 = vunpack.c.l.b16 %v993
        %v1450 = vunpack.c.l.b16 %v994
        %v1451 = vunpack.c.l.b16 %v995
        %v1452 = vunpack.c.l.b16 %v996
        %v1453 = vunpack.c.l.b16 %v997
        %v1454 = vunpack.c.l.b16 %v998
        %v1455 = vunpack.c.l.b16 %v999
        %v1456 = vunpack.c.l.b16 %v1000
        %v1457 = vunpack.c.l.b16 %v1001
        %v1458 = vunpack.c.l.b16 %v1002
        %v1459 = vunpack.c.l.b16 %v1003
        %v1460 = vunpack.c.l.b16 %v1004
        %v1461 = vunpack.c.l.b16 %v1005
        %v1462 = vunpack.c.l.b16 %v1006
        %v1463 = vunpack.c.l.b16 %v1007
        %v1464 = vunpack.c.l.b16 %v1008
        %v1465 = vunpack.c.l.b16 %v1009
        %v1466 = vunpack.c.l.b16 %v1010
        %v1467 = vunpack.c.l.b16 %v1011
        %v1468 = vunpack.c.l.b16 %v1012
        %v1469 = vunpack.c.l.b16 %v1013
        %v1470 = vunpack.c.l.b16 %v1014
        %v1471 = vunpack.c.l.b16 %v1015
        %v1472 = vunpack.c.l.b16 %v1016
        %v1473 = vunpack.c.l.b16 %v1017
        %v1474 = vunpack.c.l.b16 %v1018
        %v1475 = vunpack.c.l.b16 %v1019
        %v1476 = vunpack.c.l.b16 %v1020
        %v1477 = vpack.c.b16 %v1446, %v1445
        %v1478 = vpack.c.b16 %v1448, %v1447
        %v1479 = vpack.c.b16 %v1450, %v1449
        %v1480 = vpack.c.b16 %v1452, %v1451
        %v1481 = vpack.c.b16 %v1454, %v1453
        %v1482 = vpack.c.b16 %v1456, %v1455
        %v1483 = vpack.c.b16 %v1458, %v1457
        %v1484 = vpack.c.b16 %v1460, %v1459
        %v1485 = vpack.c.b16 %v1462, %v1461
        %v1486 = vpack.c.b16 %v1464, %v1463
        %v1487 = vpack.c.b16 %v1466, %v1465
        %v1488 = vpack.c.b16 %v1468, %v1467
        %v1489 = vpack.c.b16 %v1470, %v1469
        %v1490 = vpack.c.b16 %v1472, %v1471
        %v1491 = vpack.c.b16 %v1474, %v1473
        %v1492 = vpack.c.b16 %v1476, %v1475
        %1509 = vst [vmem:[#allocation2 + $0x20] sm:$0xff] %v1477
        %1510 = vst [vmem:[#allocation2 + $0x38] sm:$0xff] %v1478
        %1511 = vst [vmem:[#allocation2 + $0x50] sm:$0xff] %v1479
        %1512 = vst [vmem:[#allocation2 + $0x68] sm:$0xff] %v1480
        %1513 = vst [vmem:[#allocation2 + $0x80] sm:$0xff] %v1481
        %1514 = vst [vmem:[#allocation2 + $0x98] sm:$0xff] %v1482
        %1515 = vst [vmem:[#allocation2 + $0xb0] sm:$0xff] %v1483
        %1516 = vst [vmem:[#allocation2 + $0xc8] sm:$0xff] %v1484
        %1517 = vst [vmem:[#allocation2 + $0xe0] sm:$0xff] %v1485
        %1518 = vst [vmem:[#allocation2 + $0xf8] sm:$0xff] %v1486
        %1519 = vst [vmem:[#allocation2 + $0x110] sm:$0xff] %v1487
        %1520 = vst [vmem:[#allocation2 + $0x128] sm:$0xff] %v1488
        %1521 = vst [vmem:[#allocation2 + $0x140] sm:$0xff] %v1489
        %1522 = vst [vmem:[#allocation2 + $0x158] sm:$0xff] %v1490
        %1523 = vst [vmem:[#allocation2 + $0x170] sm:$0xff] %v1491
        %1524 = vst [vmem:[#allocation2 + $0x188] sm:$0xff] %v1492
        %v1525 = vpack.c.bf16 %v1350, %v1349
        %v1526 = vpack.c.bf16 %v1352, %v1351
        %v1527 = vpack.c.bf16 %v1354, %v1353
        %v1528 = vpack.c.bf16 %v1356, %v1355
        %v1529 = vpack.c.bf16 %v1358, %v1357
        %v1530 = vpack.c.bf16 %v1360, %v1359
        %v1531 = vpack.c.bf16 %v1362, %v1361
        %v1532 = vpack.c.bf16 %v1364, %v1363
        %v1533 = vpack.c.bf16 %v1366, %v1365
        %v1534 = vpack.c.bf16 %v1368, %v1367
        %v1535 = vpack.c.bf16 %v1370, %v1369
        %v1536 = vpack.c.bf16 %v1372, %v1371
        %v1537 = vpack.c.bf16 %v1374, %v1373
        %v1538 = vpack.c.bf16 %v1376, %v1375
        %v1539 = vpack.c.bf16 %v1378, %v1377
        %v1540 = vpack.c.bf16 %v1380, %v1379
        %1541 = vst [vmem:[#allocation2 + $0x28] sm:$0xff] %v1525
        %1542 = vst [vmem:[#allocation2 + $0x40] sm:$0xff] %v1526
        %1543 = vst [vmem:[#allocation2 + $0x58] sm:$0xff] %v1527
        %1544 = vst [vmem:[#allocation2 + $0x70] sm:$0xff] %v1528
        %1545 = vst [vmem:[#allocation2 + $0x88] sm:$0xff] %v1529
        %1546 = vst [vmem:[#allocation2 + $0xa0] sm:$0xff] %v1530
        %1547 = vst [vmem:[#allocation2 + $0xb8] sm:$0xff] %v1531
        %1548 = vst [vmem:[#allocation2 + $0xd0] sm:$0xff] %v1532
        %1549 = vst [vmem:[#allocation2 + $0xe8] sm:$0xff] %v1533
        %1550 = vst [vmem:[#allocation2 + $0x100] sm:$0xff] %v1534
        %1551 = vst [vmem:[#allocation2 + $0x118] sm:$0xff] %v1535
        %1552 = vst [vmem:[#allocation2 + $0x130] sm:$0xff] %v1536
        %1553 = vst [vmem:[#allocation2 + $0x148] sm:$0xff] %v1537
        %1554 = vst [vmem:[#allocation2 + $0x160] sm:$0xff] %v1538
        %1555 = vst [vmem:[#allocation2 + $0x178] sm:$0xff] %v1539
        %1556 = vst [vmem:[#allocation2 + $0x190] sm:$0xff] %v1540
        %v1557 = vld [vmem:[#allocation2] sm:$0xff]
        %v1558 = vld [vmem:[#allocation2 + $0x8] sm:$0xff]
        %v1559 = vld [vmem:[#allocation2 + $0x10] sm:$0xff]
        %v1560 = vld [vmem:[#allocation2 + $0x18] sm:$0xff]
        %v1561 = vld [vmem:[#allocation2 + $0x20] sm:$0xff]
        %v1562 = vld [vmem:[#allocation2 + $0x28] sm:$0xff]
        %v1563 = vld [vmem:[#allocation2 + $0x30] sm:$0xff]
        %v1564 = vld [vmem:[#allocation2 + $0x38] sm:$0xff]
        %v1565 = vld [vmem:[#allocation2 + $0x40] sm:$0xff]
        %v1566 = vld [vmem:[#allocation2 + $0x48] sm:$0xff]
        %v1567 = vld [vmem:[#allocation2 + $0x50] sm:$0xff]
        %v1568 = vld [vmem:[#allocation2 + $0x58] sm:$0xff]
        %v1569 = vld [vmem:[#allocation2 + $0x60] sm:$0xff]
        %v1570 = vld [vmem:[#allocation2 + $0x68] sm:$0xff]
        %v1571 = vld [vmem:[#allocation2 + $0x70] sm:$0xff]
        %v1572 = vld [vmem:[#allocation2 + $0x78] sm:$0xff]
        %v1573 = vld [vmem:[#allocation2 + $0x80] sm:$0xff]
        %v1574 = vld [vmem:[#allocation2 + $0x88] sm:$0xff]
        %v1575 = vld [vmem:[#allocation2 + $0x90] sm:$0xff]
        %v1576 = vld [vmem:[#allocation2 + $0x98] sm:$0xff]
        %v1577 = vld [vmem:[#allocation2 + $0xa0] sm:$0xff]
        %v1578 = vld [vmem:[#allocation2 + $0xa8] sm:$0xff]
        %v1579 = vld [vmem:[#allocation2 + $0xb0] sm:$0xff]
        %v1580 = vld [vmem:[#allocation2 + $0xb8] sm:$0xff]
        %v1581 = vld [vmem:[#allocation2 + $0xc0] sm:$0xff]
        %v1582 = vld [vmem:[#allocation2 + $0xc8] sm:$0xff]
        %v1583 = vld [vmem:[#allocation2 + $0xd0] sm:$0xff]
        %v1584 = vld [vmem:[#allocation2 + $0xd8] sm:$0xff]
        %v1585 = vld [vmem:[#allocation2 + $0xe0] sm:$0xff]
        %v1586 = vld [vmem:[#allocation2 + $0xe8] sm:$0xff]
        %v1587 = vld [vmem:[#allocation2 + $0xf0] sm:$0xff]
        %v1588 = vld [vmem:[#allocation2 + $0xf8] sm:$0xff]
        %v1589 = vld [vmem:[#allocation2 + $0x100] sm:$0xff]
        %v1590 = vld [vmem:[#allocation2 + $0x108] sm:$0xff]
        %v1591 = vld [vmem:[#allocation2 + $0x110] sm:$0xff]
        %v1592 = vld [vmem:[#allocation2 + $0x118] sm:$0xff]
        %v1593 = vld [vmem:[#allocation2 + $0x120] sm:$0xff]
        %v1594 = vld [vmem:[#allocation2 + $0x128] sm:$0xff]
        %v1595 = vld [vmem:[#allocation2 + $0x130] sm:$0xff]
        %v1596 = vld [vmem:[#allocation2 + $0x138] sm:$0xff]
        %v1597 = vld [vmem:[#allocation2 + $0x140] sm:$0xff]
        %v1598 = vld [vmem:[#allocation2 + $0x148] sm:$0xff]
        %v1599 = vld [vmem:[#allocation2 + $0x150] sm:$0xff]
        %v1600 = vld [vmem:[#allocation2 + $0x158] sm:$0xff]
        %v1601 = vld [vmem:[#allocation2 + $0x160] sm:$0xff]
        %v1602 = vld [vmem:[#allocation2 + $0x168] sm:$0xff]
        %v1603 = vld [vmem:[#allocation2 + $0x170] sm:$0xff]
        %v1604 = vld [vmem:[#allocation2 + $0x178] sm:$0xff]
        %v1605 = vld [vmem:[#allocation7] sm:$0xf]
        %v1606 = vld [vmem:[#allocation7 + $0x4] sm:$0xf]
        %v1607 = vld [vmem:[#allocation7 + $0x8] sm:$0xf]
        %v1608 = vld [vmem:[#allocation7 + $0xc] sm:$0xf]
        %v1609 = vld [vmem:[#allocation7 + $0x10] sm:$0xf]
        %v1610 = vld [vmem:[#allocation7 + $0x14] sm:$0xf]
        %v1611 = vld [vmem:[#allocation7 + $0x18] sm:$0xf]
        %v1612 = vld [vmem:[#allocation7 + $0x1c] sm:$0xf]
        %v1613 = vld [vmem:[#allocation7 + $0x20] sm:$0xf]
        %v1614 = vld [vmem:[#allocation7 + $0x24] sm:$0xf]
        %v1615 = vld [vmem:[#allocation7 + $0x28] sm:$0xf]
        %v1616 = vld [vmem:[#allocation7 + $0x2c] sm:$0xf]
        %v1617 = vld [vmem:[#allocation7 + $0x30] sm:$0xf]
        %v1618 = vld [vmem:[#allocation7 + $0x34] sm:$0xf]
        %v1619 = vld [vmem:[#allocation7 + $0x38] sm:$0xf]
        %v1620 = vld [vmem:[#allocation7 + $0x3c] sm:$0xf]
        %v1621 = vld [vmem:[#allocation7 + $0x40] sm:$0xf]
        %v1622 = vld [vmem:[#allocation7 + $0x44] sm:$0xf]
        %v1623 = vld [vmem:[#allocation7 + $0x48] sm:$0xf]
        %v1624 = vld [vmem:[#allocation7 + $0x4c] sm:$0xf]
        %v1625 = vld [vmem:[#allocation7 + $0x50] sm:$0xf]
        %v1626 = vld [vmem:[#allocation7 + $0x54] sm:$0xf]
        %v1627 = vld [vmem:[#allocation7 + $0x58] sm:$0xf]
        %v1628 = vld [vmem:[#allocation7 + $0x5c] sm:$0xf]
        %v1629 = vld [vmem:[#allocation7 + $0x60] sm:$0xf]
        %v1630 = vld [vmem:[#allocation7 + $0x64] sm:$0xf]
        %v1631 = vld [vmem:[#allocation7 + $0x68] sm:$0xf]
        %v1632 = vld [vmem:[#allocation7 + $0x6c] sm:$0xf]
        %v1633 = vld [vmem:[#allocation7 + $0x70] sm:$0xf]
        %v1634 = vld [vmem:[#allocation7 + $0x74] sm:$0xf]
        %v1635 = vld [vmem:[#allocation7 + $0x78] sm:$0xf]
        %v1636 = vld [vmem:[#allocation7 + $0x7c] sm:$0xf]
        %v1637 = vld [vmem:[#allocation7 + $0x80] sm:$0xf]
        %v1638 = vld [vmem:[#allocation7 + $0x84] sm:$0xf]
        %v1639 = vld [vmem:[#allocation7 + $0x88] sm:$0xf]
        %v1640 = vld [vmem:[#allocation7 + $0x8c] sm:$0xf]
        %v1641 = vld [vmem:[#allocation7 + $0x90] sm:$0xf]
        %v1642 = vld [vmem:[#allocation7 + $0x94] sm:$0xf]
        %v1643 = vld [vmem:[#allocation7 + $0x98] sm:$0xf]
        %v1644 = vld [vmem:[#allocation7 + $0x9c] sm:$0xf]
        %v1645 = vld [vmem:[#allocation7 + $0xa0] sm:$0xf]
        %v1646 = vld [vmem:[#allocation7 + $0xa4] sm:$0xf]
        %v1647 = vld [vmem:[#allocation7 + $0xa8] sm:$0xf]
        %v1648 = vld [vmem:[#allocation7 + $0xac] sm:$0xf]
        %v1649 = vld [vmem:[#allocation7 + $0xb0] sm:$0xf]
        %v1650 = vld [vmem:[#allocation7 + $0xb4] sm:$0xf]
        %v1651 = vld [vmem:[#allocation7 + $0xb8] sm:$0xf]
        %v1652 = vld [vmem:[#allocation7 + $0xbc] sm:$0xf]
        %v1653 = vld [vmem:[#allocation2 + $0x180] sm:$0xff]
        %v1654 = vld [vmem:[#allocation2 + $0x188] sm:$0xff]
        %v1655 = vld [vmem:[#allocation2 + $0x190] sm:$0xff]
        %s1656 = scalar_lea.vmem [#allocation7], 192
        %v1657 = vld [vmem:[%s1656] sm:$0xf]
        %v1658 = vld [vmem:[%s1656 + $0x4] sm:$0xf]
        %v1659 = vld [vmem:[%s1656 + $0x8] sm:$0xf]
        %v1660 = vld [vmem:[%s1656 + $0xc] sm:$0xf]
        %v1661 = vld [vmem:[%s1656 + $0x10] sm:$0xf]
        %v1662 = vld [vmem:[%s1656 + $0x14] sm:$0xf]
        %v1663 = vld [vmem:[%s1656 + $0x18] sm:$0xf]
        %v1664 = vld [vmem:[%s1656 + $0x1c] sm:$0xf]
        %v1665 = vld [vmem:[%s1656 + $0x20] sm:$0xf]
        %v1666 = vld [vmem:[%s1656 + $0x24] sm:$0xf]
        %v1667 = vld [vmem:[%s1656 + $0x28] sm:$0xf]
        %v1668 = vld [vmem:[%s1656 + $0x2c] sm:$0xf]
        %v1669 = vld [vmem:[%s1656 + $0x30] sm:$0xf]
        %v1670 = vld [vmem:[%s1656 + $0x34] sm:$0xf]
        %v1671 = vld [vmem:[%s1656 + $0x38] sm:$0xf]
        %v1672 = vld [vmem:[%s1656 + $0x3c] sm:$0xf]
        %v1673 = vld [vmem:[%s1656 + $0x40] sm:$0xf]
        %v1674 = vld [vmem:[%s1656 + $0x44] sm:$0xf]
        %v1675 = vld [vmem:[%s1656 + $0x48] sm:$0xf]
        %v1676 = vld [vmem:[%s1656 + $0x4c] sm:$0xf]
        %v1677 = vld [vmem:[%s1656 + $0x50] sm:$0xf]
        %v1678 = vld [vmem:[%s1656 + $0x54] sm:$0xf]
        %v1679 = vld [vmem:[%s1656 + $0x58] sm:$0xf]
        %v1680 = vld [vmem:[%s1656 + $0x5c] sm:$0xf]
        %v1681 = vld [vmem:[%s1656 + $0x60] sm:$0xf]
        %v1682 = vld [vmem:[%s1656 + $0x64] sm:$0xf]
        %v1683 = vld [vmem:[%s1656 + $0x68] sm:$0xf]
        %v1684 = vld [vmem:[%s1656 + $0x6c] sm:$0xf]
        %v1685 = vld [vmem:[%s1656 + $0x70] sm:$0xf]
        %v1686 = vld [vmem:[%s1656 + $0x74] sm:$0xf]
        %v1687 = vld [vmem:[%s1656 + $0x78] sm:$0xf]
        %v1688 = vld [vmem:[%s1656 + $0x7c] sm:$0xf]
        %v1689 = vld [vmem:[%s1656 + $0x80] sm:$0xf]
        %v1690 = vld [vmem:[%s1656 + $0x84] sm:$0xf]
        %v1691 = vld [vmem:[%s1656 + $0x88] sm:$0xf]
        %v1692 = vld [vmem:[%s1656 + $0x8c] sm:$0xf]
        %v1693 = vld [vmem:[%s1656 + $0x90] sm:$0xf]
        %v1694 = vld [vmem:[%s1656 + $0x94] sm:$0xf]
        %v1695 = vld [vmem:[%s1656 + $0x98] sm:$0xf]
        %v1696 = vld [vmem:[%s1656 + $0x9c] sm:$0xf]
        %v1697 = vld [vmem:[%s1656 + $0xa0] sm:$0xf]
        %v1698 = vld [vmem:[%s1656 + $0xa4] sm:$0xf]
        %v1699 = vld [vmem:[%s1656 + $0xa8] sm:$0xf]
        %v1700 = vld [vmem:[%s1656 + $0xac] sm:$0xf]
        %v1701 = vld [vmem:[%s1656 + $0xb0] sm:$0xf]
        %v1702 = vld [vmem:[%s1656 + $0xb4] sm:$0xf]
        %v1703 = vld [vmem:[%s1656 + $0xb8] sm:$0xf]
        %v1704 = vld [vmem:[%s1656 + $0xbc] sm:$0xf]
        %v1753 = vunpack.c.l.b16 %v1657
        %v1754 = vunpack.c.l.b16 %v1658
        %v1755 = vunpack.c.l.b16 %v1659
        %v1756 = vunpack.c.l.b16 %v1660
        %v1757 = vunpack.c.l.b16 %v1661
        %v1758 = vunpack.c.l.b16 %v1662
        %v1759 = vunpack.c.l.b16 %v1663
        %v1760 = vunpack.c.l.b16 %v1664
        %v1761 = vunpack.c.l.b16 %v1665
        %v1762 = vunpack.c.l.b16 %v1666
        %v1763 = vunpack.c.l.b16 %v1667
        %v1764 = vunpack.c.l.b16 %v1668
        %v1765 = vunpack.c.l.b16 %v1669
        %v1766 = vunpack.c.l.b16 %v1670
        %v1767 = vunpack.c.l.b16 %v1671
        %v1768 = vunpack.c.l.b16 %v1672
        %v1769 = vunpack.c.l.b16 %v1673
        %v1770 = vunpack.c.l.b16 %v1674
        %v1771 = vunpack.c.l.b16 %v1675
        %v1772 = vunpack.c.l.b16 %v1676
        %v1773 = vunpack.c.l.b16 %v1677
        %v1774 = vunpack.c.l.b16 %v1678
        %v1775 = vunpack.c.l.b16 %v1679
        %v1776 = vunpack.c.l.b16 %v1680
        %v1777 = vunpack.c.l.b16 %v1681
        %v1778 = vunpack.c.l.b16 %v1682
        %v1779 = vunpack.c.l.b16 %v1683
        %v1780 = vunpack.c.l.b16 %v1684
        %v1781 = vunpack.c.l.b16 %v1685
        %v1782 = vunpack.c.l.b16 %v1686
        %v1783 = vunpack.c.l.b16 %v1687
        %v1784 = vunpack.c.l.b16 %v1688
        %v1785 = vunpack.c.l.b16 %v1689
        %v1786 = vunpack.c.l.b16 %v1690
        %v1787 = vunpack.c.l.b16 %v1691
        %v1788 = vunpack.c.l.b16 %v1692
        %v1789 = vunpack.c.l.b16 %v1693
        %v1790 = vunpack.c.l.b16 %v1694
        %v1791 = vunpack.c.l.b16 %v1695
        %v1792 = vunpack.c.l.b16 %v1696
        %v1793 = vunpack.c.l.b16 %v1697
        %v1794 = vunpack.c.l.b16 %v1698
        %v1795 = vunpack.c.l.b16 %v1699
        %v1796 = vunpack.c.l.b16 %v1700
        %v1797 = vunpack.c.l.b16 %v1701
        %v1798 = vunpack.c.l.b16 %v1702
        %v1799 = vunpack.c.l.b16 %v1703
        %v1800 = vunpack.c.l.b16 %v1704
        %v1801 = vpack.c.b16 %v1754, %v1753
        %v1802 = vpack.c.b16 %v1756, %v1755
        %v1803 = vpack.c.b16 %v1758, %v1757
        %v1804 = vpack.c.b16 %v1760, %v1759
        %v1805 = vpack.c.b16 %v1762, %v1761
        %v1806 = vpack.c.b16 %v1764, %v1763
        %v1807 = vpack.c.b16 %v1766, %v1765
        %v1808 = vpack.c.b16 %v1768, %v1767
        %v1809 = vpack.c.b16 %v1770, %v1769
        %v1810 = vpack.c.b16 %v1772, %v1771
        %v1811 = vpack.c.b16 %v1774, %v1773
        %v1812 = vpack.c.b16 %v1776, %v1775
        %v1813 = vpack.c.b16 %v1778, %v1777
        %v1814 = vpack.c.b16 %v1780, %v1779
        %v1815 = vpack.c.b16 %v1782, %v1781
        %v1816 = vpack.c.b16 %v1784, %v1783
        %v1817 = vpack.c.b16 %v1786, %v1785
        %v1818 = vpack.c.b16 %v1788, %v1787
        %v1819 = vpack.c.b16 %v1790, %v1789
        %v1820 = vpack.c.b16 %v1792, %v1791
        %v1821 = vpack.c.b16 %v1794, %v1793
        %v1822 = vpack.c.b16 %v1796, %v1795
        %v1823 = vpack.c.b16 %v1798, %v1797
        %v1824 = vpack.c.b16 %v1800, %v1799
        %1849 = vmatprep.subr.bf16.mxu0 0
        %1850 = vmatpush1.bf16.msra.mxu0 %v1801
        %1851 = vmatprep.subr.bf16.mxu0 0
        %1852 = vmatpush1.bf16.msra.mxu0 %v1802
        %1853 = vmatprep.subr.bf16.mxu0 0
        %1854 = vmatpush1.bf16.msra.mxu0 %v1803
        %1855 = vmatprep.subr.bf16.mxu0 0
        %1856 = vmatpush1.bf16.msra.mxu0 %v1804
        %1857 = vmatprep.subr.bf16.mxu0 0
        %1858 = vmatpush1.bf16.msra.mxu0 %v1805
        %1859 = vmatprep.subr.bf16.mxu0 0
        %1860 = vmatpush1.bf16.msra.mxu0 %v1806
        %1861 = vmatprep.subr.bf16.mxu0 0
        %1862 = vmatpush1.bf16.msra.mxu0 %v1807
        %1863 = vmatprep.subr.bf16.mxu0 0
        %1864 = vmatpush1.bf16.msra.mxu0 %v1808
        %1865 = vmatprep.subr.bf16.mxu0 0
        %1866 = vmatpush1.bf16.msra.mxu0 %v1809
        %1867 = vmatprep.subr.bf16.mxu0 0
        %1868 = vmatpush1.bf16.msra.mxu0 %v1810
        %1869 = vmatprep.subr.bf16.mxu0 0
        %1870 = vmatpush1.bf16.msra.mxu0 %v1811
        %1871 = vmatprep.subr.bf16.mxu0 0
        %1872 = vmatpush1.bf16.msra.mxu0 %v1812
        %1873 = vmatprep.subr.bf16.mxu0 0
        %1874 = vmatpush1.bf16.msra.mxu0 %v1813
        %1875 = vmatprep.subr.bf16.mxu0 0
        %1876 = vmatpush1.bf16.msra.mxu0 %v1814
        %1877 = vmatprep.subr.bf16.mxu0 0
        %1878 = vmatpush1.bf16.msra.mxu0 %v1815
        %1879 = vmatprep.subr.bf16.mxu0 0
        %1880 = vmatpush1.bf16.msra.mxu0 %v1816
        %1881 = vmatprep.mubr.bf16.mxu0 %v1561
        %1882 = vmatmul.mubr.bf16.gmra.mrb[0].mxu0 %v1560
        %v1883 = vpop.f32.mrb[0].mxu0
        %v1884 = vadd.f32 0.0, %v1883
        %v1885 = vpop.f32.mrb[0].mxu0
        %v1886 = vpop.f32.mrb[0].mxu0
        %v1887 = vadd.f32 0.0, %v1886
        %v1888 = vpop.f32.mrb[0].mxu0
        %1889 = vmatprep.mubr.bf16.mxu0 %v1564
        %1890 = vmatmul.mubr.bf16.gmra.mrb[0].mxu0 %v1563
        %v1891 = vpop.f32.mrb[0].mxu0
        %v1892 = vadd.f32 0.0, %v1891
        %v1893 = vpop.f32.mrb[0].mxu0
        %v1894 = vpop.f32.mrb[0].mxu0
        %v1895 = vadd.f32 0.0, %v1894
        %v1896 = vpop.f32.mrb[0].mxu0
        %1897 = vmatprep.mubr.bf16.mxu0 %v1567
        %1898 = vmatmul.mubr.bf16.gmra.mrb[0].mxu0 %v1566
        %v1899 = vpop.f32.mrb[0].mxu0
        %v1900 = vadd.f32 0.0, %v1899
        %v1901 = vpop.f32.mrb[0].mxu0
        %v1902 = vpop.f32.mrb[0].mxu0
        %v1903 = vadd.f32 0.0, %v1902
        %v1904 = vpop.f32.mrb[0].mxu0
        %1905 = vmatprep.mubr.bf16.mxu0 %v1570
        %1906 = vmatmul.mubr.bf16.gmra.mrb[0].mxu0 %v1569
        %v1907 = vpop.f32.mrb[0].mxu0
        %v1908 = vadd.f32 0.0, %v1907
        %v1909 = vpop.f32.mrb[0].mxu0
        %v1910 = vpop.f32.mrb[0].mxu0
        %v1911 = vadd.f32 0.0, %v1910
        %v1912 = vpop.f32.mrb[0].mxu0
        %1913 = vmatprep.mubr.bf16.mxu0 %v1573
        %1914 = vmatmul.mubr.bf16.gmra.mrb[0].mxu0 %v1572
        %v1915 = vpop.f32.mrb[0].mxu0
        %v1916 = vadd.f32 0.0, %v1915
        %v1917 = vpop.f32.mrb[0].mxu0
        %v1918 = vpop.f32.mrb[0].mxu0
        %v1919 = vadd.f32 0.0, %v1918
        %v1920 = vpop.f32.mrb[0].mxu0
        %1921 = vmatprep.mubr.bf16.mxu0 %v1576
        %1922 = vmatmul.mubr.bf16.gmra.mrb[0].mxu0 %v1575
        %v1923 = vpop.f32.mrb[0].mxu0
        %v1924 = vadd.f32 0.0, %v1923
        %v1925 = vpop.f32.mrb[0].mxu0
        %v1926 = vpop.f32.mrb[0].mxu0
        %v1927 = vadd.f32 0.0, %v1926
        %v1928 = vpop.f32.mrb[0].mxu0
        %1929 = vmatprep.mubr.bf16.mxu0 %v1579
        %1930 = vmatmul.mubr.bf16.gmra.mrb[0].mxu0 %v1578
        %v1931 = vpop.f32.mrb[0].mxu0
        %v1932 = vadd.f32 0.0, %v1931
        %v1933 = vpop.f32.mrb[0].mxu0
        %v1934 = vpop.f32.mrb[0].mxu0
        %v1935 = vadd.f32 0.0, %v1934
        %v1936 = vpop.f32.mrb[0].mxu0
        %1937 = vmatprep.mubr.bf16.mxu0 %v1582
        %1938 = vmatmul.mubr.bf16.gmra.mrb[0].mxu0 %v1581
        %v1939 = vpop.f32.mrb[0].mxu0
        %v1940 = vadd.f32 0.0, %v1939
        %v1941 = vpop.f32.mrb[0].mxu0
        %v1942 = vpop.f32.mrb[0].mxu0
        %v1943 = vadd.f32 0.0, %v1942
        %v1944 = vpop.f32.mrb[0].mxu0
        %1945 = vmatprep.mubr.bf16.mxu0 %v1585
        %1946 = vmatmul.mubr.bf16.gmra.mrb[0].mxu0 %v1584
        %v1947 = vpop.f32.mrb[0].mxu0
        %v1948 = vadd.f32 0.0, %v1947
        %v1949 = vpop.f32.mrb[0].mxu0
        %v1950 = vpop.f32.mrb[0].mxu0
        %v1951 = vadd.f32 0.0, %v1950
        %v1952 = vpop.f32.mrb[0].mxu0
        %1953 = vmatprep.mubr.bf16.mxu0 %v1588
        %1954 = vmatmul.mubr.bf16.gmra.mrb[0].mxu0 %v1587
        %v1955 = vpop.f32.mrb[0].mxu0
        %v1956 = vadd.f32 0.0, %v1955
        %v1957 = vpop.f32.mrb[0].mxu0
        %v1958 = vpop.f32.mrb[0].mxu0
        %v1959 = vadd.f32 0.0, %v1958
        %v1960 = vpop.f32.mrb[0].mxu0
        %1961 = vmatprep.mubr.bf16.mxu0 %v1591
        %1962 = vmatmul.mubr.bf16.gmra.mrb[0].mxu0 %v1590
        %v1963 = vpop.f32.mrb[0].mxu0
        %v1964 = vadd.f32 0.0, %v1963
        %v1965 = vpop.f32.mrb[0].mxu0
        %v1966 = vpop.f32.mrb[0].mxu0
        %v1967 = vadd.f32 0.0, %v1966
        %v1968 = vpop.f32.mrb[0].mxu0
        %1969 = vmatprep.mubr.bf16.mxu0 %v1594
        %1970 = vmatmul.mubr.bf16.gmra.mrb[0].mxu0 %v1593
        %v1971 = vpop.f32.mrb[0].mxu0
        %v1972 = vadd.f32 0.0, %v1971
        %v1973 = vpop.f32.mrb[0].mxu0
        %v1974 = vpop.f32.mrb[0].mxu0
        %v1975 = vadd.f32 0.0, %v1974
        %v1976 = vpop.f32.mrb[0].mxu0
        %1977 = vmatprep.mubr.bf16.mxu0 %v1597
        %1978 = vmatmul.mubr.bf16.gmra.mrb[0].mxu0 %v1596
        %v1979 = vpop.f32.mrb[0].mxu0
        %v1980 = vadd.f32 0.0, %v1979
        %v1981 = vpop.f32.mrb[0].mxu0
        %v1982 = vpop.f32.mrb[0].mxu0
        %v1983 = vadd.f32 0.0, %v1982
        %v1984 = vpop.f32.mrb[0].mxu0
        %1985 = vmatprep.mubr.bf16.mxu0 %v1600
        %1986 = vmatmul.mubr.bf16.gmra.mrb[0].mxu0 %v1599
        %v1987 = vpop.f32.mrb[0].mxu0
        %v1988 = vadd.f32 0.0, %v1987
        %v1989 = vpop.f32.mrb[0].mxu0
        %v1990 = vpop.f32.mrb[0].mxu0
        %v1991 = vadd.f32 0.0, %v1990
        %v1992 = vpop.f32.mrb[0].mxu0
        %1993 = vmatprep.mubr.bf16.mxu0 %v1603
        %1994 = vmatmul.mubr.bf16.gmra.mrb[0].mxu0 %v1602
        %v1995 = vpop.f32.mrb[0].mxu0
        %v1996 = vadd.f32 0.0, %v1995
        %v1997 = vpop.f32.mrb[0].mxu0
        %v1998 = vpop.f32.mrb[0].mxu0
        %v1999 = vadd.f32 0.0, %v1998
        %v2000 = vpop.f32.mrb[0].mxu0
        %2001 = vmatprep.mubr.bf16.mxu0 %v1654
        %2002 = vmatmul.mubr.bf16.gmra.mrb[0].mxu0 %v1653
        %v2003 = vpop.f32.mrb[0].mxu0
        %v2004 = vadd.f32 0.0, %v2003
        %v2005 = vpop.f32.mrb[0].mxu0
        %v2006 = vpop.f32.mrb[0].mxu0
        %v2007 = vadd.f32 0.0, %v2006
        %v2008 = vpop.f32.mrb[0].mxu0
        %2009 = vdwg.mxu0
        %2010 = vmatprep.subr.bf16.mxu0 0
        %2011 = vmatpush1.bf16.msra.mxu0 %v1817
        %2012 = vmatprep.subr.bf16.mxu0 0
        %2013 = vmatpush1.bf16.msra.mxu0 %v1818
        %2014 = vmatprep.subr.bf16.mxu0 0
        %2015 = vmatpush1.bf16.msra.mxu0 %v1819
        %2016 = vmatprep.subr.bf16.mxu0 0
        %2017 = vmatpush1.bf16.msra.mxu0 %v1820
        %2018 = vmatprep.subr.bf16.mxu0 0
        %2019 = vmatpush1.bf16.msra.mxu0 %v1821
        %2020 = vmatprep.subr.bf16.mxu0 0
        %2021 = vmatpush1.bf16.msra.mxu0 %v1822
        %2022 = vmatprep.subr.bf16.mxu0 0
        %2023 = vmatpush1.bf16.msra.mxu0 %v1823
        %2024 = vmatprep.subr.bf16.mxu0 0
        %2025 = vmatpush1.bf16.msra.mxu0 %v1824
        %2026 = vmatprep.subr.bf16.mxu0 0
        %2027 = vmatpush1.bf16.msra.mxu0 0
        %2028 = vmatprep.subr.bf16.mxu0 0
        %2029 = vmatpush1.bf16.msra.mxu0 0
        %2030 = vmatprep.subr.bf16.mxu0 0
        %2031 = vmatpush1.bf16.msra.mxu0 0
        %2032 = vmatprep.subr.bf16.mxu0 0
        %2033 = vmatpush1.bf16.msra.mxu0 0
        %2034 = vmatprep.subr.bf16.mxu0 0
        %2035 = vmatpush1.bf16.msra.mxu0 0
        %2036 = vmatprep.subr.bf16.mxu0 0
        %2037 = vmatpush1.bf16.msra.mxu0 0
        %2038 = vmatprep.subr.bf16.mxu0 0
        %2039 = vmatpush1.bf16.msra.mxu0 0
        %2040 = vmatprep.subr.bf16.mxu0 0
        %2041 = vmatpush1.bf16.msra.mxu0 0
        %2042 = vmatprep.mubr.bf16.mxu0 0
        %2043 = vmatmul.mubr.bf16.gmra.mrb[0].mxu0 %v1562
        %v2044 = vpop.f32.mrb[0].mxu0
        %v2045 = vadd.f32 %v1884, %v2044
        %v2046 = vpop.f32.mrb[0].mxu0
        %v2047 = vpop.f32.mrb[0].mxu0
        %v2048 = vadd.f32 %v1887, %v2047
        %v2049 = vpop.f32.mrb[0].mxu0
        %2050 = vmatprep.mubr.bf16.mxu0 0
        %2051 = vmatmul.mubr.bf16.gmra.mrb[0].mxu0 %v1565
        %v2052 = vpop.f32.mrb[0].mxu0
        %v2053 = vadd.f32 %v1892, %v2052
        %v2054 = vpop.f32.mrb[0].mxu0
        %v2055 = vpop.f32.mrb[0].mxu0
        %v2056 = vadd.f32 %v1895, %v2055
        %v2057 = vpop.f32.mrb[0].mxu0
        %2058 = vmatprep.mubr.bf16.mxu0 0
        %2059 = vmatmul.mubr.bf16.gmra.mrb[0].mxu0 %v1568
        %v2060 = vpop.f32.mrb[0].mxu0
        %v2061 = vadd.f32 %v1900, %v2060
        %v2062 = vpop.f32.mrb[0].mxu0
        %v2063 = vpop.f32.mrb[0].mxu0
        %v2064 = vadd.f32 %v1903, %v2063
        %v2065 = vpop.f32.mrb[0].mxu0
        %2066 = vmatprep.mubr.bf16.mxu0 0
        %2067 = vmatmul.mubr.bf16.gmra.mrb[0].mxu0 %v1571
        %v2068 = vpop.f32.mrb[0].mxu0
        %v2069 = vadd.f32 %v1908, %v2068
        %v2070 = vpop.f32.mrb[0].mxu0
        %v2071 = vpop.f32.mrb[0].mxu0
        %v2072 = vadd.f32 %v1911, %v2071
        %v2073 = vpop.f32.mrb[0].mxu0
        %2074 = vmatprep.mubr.bf16.mxu0 0
        %2075 = vmatmul.mubr.bf16.gmra.mrb[0].mxu0 %v1574
        %v2076 = vpop.f32.mrb[0].mxu0
        %v2077 = vadd.f32 %v1916, %v2076
        %v2078 = vpop.f32.mrb[0].mxu0
        %v2079 = vpop.f32.mrb[0].mxu0
        %v2080 = vadd.f32 %v1919, %v2079
        %v2081 = vpop.f32.mrb[0].mxu0
        %2082 = vmatprep.mubr.bf16.mxu0 0
        %2083 = vmatmul.mubr.bf16.gmra.mrb[0].mxu0 %v1577
        %v2084 = vpop.f32.mrb[0].mxu0
        %v2085 = vadd.f32 %v1924, %v2084
        %v2086 = vpop.f32.mrb[0].mxu0
        %v2087 = vpop.f32.mrb[0].mxu0
        %v2088 = vadd.f32 %v1927, %v2087
        %v2089 = vpop.f32.mrb[0].mxu0
        %2090 = vmatprep.mubr.bf16.mxu0 0
        %2091 = vmatmul.mubr.bf16.gmra.mrb[0].mxu0 %v1580
        %v2092 = vpop.f32.mrb[0].mxu0
        %v2093 = vadd.f32 %v1932, %v2092
        %v2094 = vpop.f32.mrb[0].mxu0
        %v2095 = vpop.f32.mrb[0].mxu0
        %v2096 = vadd.f32 %v1935, %v2095
        %v2097 = vpop.f32.mrb[0].mxu0
        %2098 = vmatprep.mubr.bf16.mxu0 0
        %2099 = vmatmul.mubr.bf16.gmra.mrb[0].mxu0 %v1583
        %v2100 = vpop.f32.mrb[0].mxu0
        %v2101 = vadd.f32 %v1940, %v2100
        %v2102 = vpop.f32.mrb[0].mxu0
        %v2103 = vpop.f32.mrb[0].mxu0
        %v2104 = vadd.f32 %v1943, %v2103
        %v2105 = vpop.f32.mrb[0].mxu0
        %2106 = vmatprep.mubr.bf16.mxu0 0
        %2107 = vmatmul.mubr.bf16.gmra.mrb[0].mxu0 %v1586
        %v2108 = vpop.f32.mrb[0].mxu0
        %v2109 = vadd.f32 %v1948, %v2108
        %v2110 = vpop.f32.mrb[0].mxu0
        %v2111 = vpop.f32.mrb[0].mxu0
        %v2112 = vadd.f32 %v1951, %v2111
        %v2113 = vpop.f32.mrb[0].mxu0
        %2114 = vmatprep.mubr.bf16.mxu0 0
        %2115 = vmatmul.mubr.bf16.gmra.mrb[0].mxu0 %v1589
        %v2116 = vpop.f32.mrb[0].mxu0
        %v2117 = vadd.f32 %v1956, %v2116
        %v2118 = vpop.f32.mrb[0].mxu0
        %v2119 = vpop.f32.mrb[0].mxu0
        %v2120 = vadd.f32 %v1959, %v2119
        %v2121 = vpop.f32.mrb[0].mxu0
        %2122 = vmatprep.mubr.bf16.mxu0 0
        %2123 = vmatmul.mubr.bf16.gmra.mrb[0].mxu0 %v1592
        %v2124 = vpop.f32.mrb[0].mxu0
        %v2125 = vadd.f32 %v1964, %v2124
        %v2126 = vpop.f32.mrb[0].mxu0
        %v2127 = vpop.f32.mrb[0].mxu0
        %v2128 = vadd.f32 %v1967, %v2127
        %v2129 = vpop.f32.mrb[0].mxu0
        %2130 = vmatprep.mubr.bf16.mxu0 0
        %2131 = vmatmul.mubr.bf16.gmra.mrb[0].mxu0 %v1595
        %v2132 = vpop.f32.mrb[0].mxu0
        %v2133 = vadd.f32 %v1972, %v2132
        %v2134 = vpop.f32.mrb[0].mxu0
        %v2135 = vpop.f32.mrb[0].mxu0
        %v2136 = vadd.f32 %v1975, %v2135
        %v2137 = vpop.f32.mrb[0].mxu0
        %2138 = vmatprep.mubr.bf16.mxu0 0
        %2139 = vmatmul.mubr.bf16.gmra.mrb[0].mxu0 %v1598
        %v2140 = vpop.f32.mrb[0].mxu0
        %v2141 = vadd.f32 %v1980, %v2140
        %v2142 = vpop.f32.mrb[0].mxu0
        %v2143 = vpop.f32.mrb[0].mxu0
        %v2144 = vadd.f32 %v1983, %v2143
        %v2145 = vpop.f32.mrb[0].mxu0
        %2146 = vmatprep.mubr.bf16.mxu0 0
        %2147 = vmatmul.mubr.bf16.gmra.mrb[0].mxu0 %v1601
        %v2148 = vpop.f32.mrb[0].mxu0
        %v2149 = vadd.f32 %v1988, %v2148
        %v2150 = vpop.f32.mrb[0].mxu0
        %v2151 = vpop.f32.mrb[0].mxu0
        %v2152 = vadd.f32 %v1991, %v2151
        %v2153 = vpop.f32.mrb[0].mxu0
        %2154 = vmatprep.mubr.bf16.mxu0 0
        %2155 = vmatmul.mubr.bf16.gmra.mrb[0].mxu0 %v1604
        %v2156 = vpop.f32.mrb[0].mxu0
        %v2157 = vadd.f32 %v1996, %v2156
        %v2158 = vpop.f32.mrb[0].mxu0
        %v2159 = vpop.f32.mrb[0].mxu0
        %v2160 = vadd.f32 %v1999, %v2159
        %v2161 = vpop.f32.mrb[0].mxu0
        %2162 = vmatprep.mubr.bf16.mxu0 0
        %2163 = vmatmul.mubr.bf16.gmra.mrb[0].mxu0 %v1655
        %v2164 = vpop.f32.mrb[0].mxu0
        %v2165 = vadd.f32 %v2004, %v2164
        %v2166 = vpop.f32.mrb[0].mxu0
        %v2167 = vpop.f32.mrb[0].mxu0
        %v2168 = vadd.f32 %v2007, %v2167
        %v2169 = vpop.f32.mrb[0].mxu0
        %2170 = vdwg.mxu0
        %v2219 = vunpack.c.l.b16 %v1605
        %v2220 = vunpack.c.l.b16 %v1606
        %v2221 = vunpack.c.l.b16 %v1607
        %v2222 = vunpack.c.l.b16 %v1608
        %v2223 = vunpack.c.l.b16 %v1609
        %v2224 = vunpack.c.l.b16 %v1610
        %v2225 = vunpack.c.l.b16 %v1611
        %v2226 = vunpack.c.l.b16 %v1612
        %v2227 = vunpack.c.l.b16 %v1613
        %v2228 = vunpack.c.l.b16 %v1614
        %v2229 = vunpack.c.l.b16 %v1615
        %v2230 = vunpack.c.l.b16 %v1616
        %v2231 = vunpack.c.l.b16 %v1617
        %v2232 = vunpack.c.l.b16 %v1618
        %v2233 = vunpack.c.l.b16 %v1619
        %v2234 = vunpack.c.l.b16 %v1620
        %v2235 = vunpack.c.l.b16 %v1621
        %v2236 = vunpack.c.l.b16 %v1622
        %v2237 = vunpack.c.l.b16 %v1623
        %v2238 = vunpack.c.l.b16 %v1624
        %v2239 = vunpack.c.l.b16 %v1625
        %v2240 = vunpack.c.l.b16 %v1626
        %v2241 = vunpack.c.l.b16 %v1627
        %v2242 = vunpack.c.l.b16 %v1628
        %v2243 = vunpack.c.l.b16 %v1629
        %v2244 = vunpack.c.l.b16 %v1630
        %v2245 = vunpack.c.l.b16 %v1631
        %v2246 = vunpack.c.l.b16 %v1632
        %v2247 = vunpack.c.l.b16 %v1633
        %v2248 = vunpack.c.l.b16 %v1634
        %v2249 = vunpack.c.l.b16 %v1635
        %v2250 = vunpack.c.l.b16 %v1636
        %v2251 = vunpack.c.l.b16 %v1637
        %v2252 = vunpack.c.l.b16 %v1638
        %v2253 = vunpack.c.l.b16 %v1639
        %v2254 = vunpack.c.l.b16 %v1640
        %v2255 = vunpack.c.l.b16 %v1641
        %v2256 = vunpack.c.l.b16 %v1642
        %v2257 = vunpack.c.l.b16 %v1643
        %v2258 = vunpack.c.l.b16 %v1644
        %v2259 = vunpack.c.l.b16 %v1645
        %v2260 = vunpack.c.l.b16 %v1646
        %v2261 = vunpack.c.l.b16 %v1647
        %v2262 = vunpack.c.l.b16 %v1648
        %v2263 = vunpack.c.l.b16 %v1649
        %v2264 = vunpack.c.l.b16 %v1650
        %v2265 = vunpack.c.l.b16 %v1651
        %v2266 = vunpack.c.l.b16 %v1652
        %v2267 = vpack.c.b16 %v2220, %v2219
        %v2268 = vpack.c.b16 %v2222, %v2221
        %v2269 = vpack.c.b16 %v2224, %v2223
        %v2270 = vpack.c.b16 %v2226, %v2225
        %v2271 = vpack.c.b16 %v2228, %v2227
        %v2272 = vpack.c.b16 %v2230, %v2229
        %v2273 = vpack.c.b16 %v2232, %v2231
        %v2274 = vpack.c.b16 %v2234, %v2233
        %v2275 = vpack.c.b16 %v2236, %v2235
        %v2276 = vpack.c.b16 %v2238, %v2237
        %v2277 = vpack.c.b16 %v2240, %v2239
        %v2278 = vpack.c.b16 %v2242, %v2241
        %v2279 = vpack.c.b16 %v2244, %v2243
        %v2280 = vpack.c.b16 %v2246, %v2245
        %v2281 = vpack.c.b16 %v2248, %v2247
        %v2282 = vpack.c.b16 %v2250, %v2249
        %v2283 = vpack.c.b16 %v2252, %v2251
        %v2284 = vpack.c.b16 %v2254, %v2253
        %v2285 = vpack.c.b16 %v2256, %v2255
        %v2286 = vpack.c.b16 %v2258, %v2257
        %v2287 = vpack.c.b16 %v2260, %v2259
        %v2288 = vpack.c.b16 %v2262, %v2261
        %v2289 = vpack.c.b16 %v2264, %v2263
        %v2290 = vpack.c.b16 %v2266, %v2265
        %2315 = vmatprep.subr.bf16.mxu0 0
        %2316 = vmatpush1.bf16.msra.mxu0 %v2267
        %2317 = vmatprep.subr.bf16.mxu0 0
        %2318 = vmatpush1.bf16.msra.mxu0 %v2268
        %2319 = vmatprep.subr.bf16.mxu0 0
        %2320 = vmatpush1.bf16.msra.mxu0 %v2269
        %2321 = vmatprep.subr.bf16.mxu0 0
        %2322 = vmatpush1.bf16.msra.mxu0 %v2270
        %2323 = vmatprep.subr.bf16.mxu0 0
        %2324 = vmatpush1.bf16.msra.mxu0 %v2271
        %2325 = vmatprep.subr.bf16.mxu0 0
        %2326 = vmatpush1.bf16.msra.mxu0 %v2272
        %2327 = vmatprep.subr.bf16.mxu0 0
        %2328 = vmatpush1.bf16.msra.mxu0 %v2273
        %2329 = vmatprep.subr.bf16.mxu0 0
        %2330 = vmatpush1.bf16.msra.mxu0 %v2274
        %2331 = vmatprep.subr.bf16.mxu0 0
        %2332 = vmatpush1.bf16.msra.mxu0 %v2275
        %2333 = vmatprep.subr.bf16.mxu0 0
        %2334 = vmatpush1.bf16.msra.mxu0 %v2276
        %2335 = vmatprep.subr.bf16.mxu0 0
        %2336 = vmatpush1.bf16.msra.mxu0 %v2277
        %2337 = vmatprep.subr.bf16.mxu0 0
        %2338 = vmatpush1.bf16.msra.mxu0 %v2278
        %2339 = vmatprep.subr.bf16.mxu0 0
        %2340 = vmatpush1.bf16.msra.mxu0 %v2279
        %2341 = vmatprep.subr.bf16.mxu0 0
        %2342 = vmatpush1.bf16.msra.mxu0 %v2280
        %2343 = vmatprep.subr.bf16.mxu0 0
        %2344 = vmatpush1.bf16.msra.mxu0 %v2281
        %2345 = vmatprep.subr.bf16.mxu0 0
        %2346 = vmatpush1.bf16.msra.mxu0 %v2282
        %2347 = vmatprep.mubr.bf16.mxu0 %v1558
        %2348 = vmatmul.mubr.bf16.gmra.mrb[0].mxu0 %v1557
        %v2349 = vpop.f32.mrb[0].mxu0
        %v2350 = vadd.f32 %v2045, %v2349
        %v2351 = vpop.f32.mrb[0].mxu0
        %v2352 = vpop.f32.mrb[0].mxu0
        %v2353 = vadd.f32 %v2048, %v2352
        %v2354 = vpop.f32.mrb[0].mxu0
        %2355 = vmatprep.mubr.bf16.mxu0 %v1561
        %2356 = vmatmul.mubr.bf16.gmra.mrb[0].mxu0 %v1560
        %v2357 = vpop.f32.mrb[0].mxu0
        %v2358 = vadd.f32 %v2053, %v2357
        %v2359 = vpop.f32.mrb[0].mxu0
        %v2360 = vpop.f32.mrb[0].mxu0
        %v2361 = vadd.f32 %v2056, %v2360
        %v2362 = vpop.f32.mrb[0].mxu0
        %2363 = vmatprep.mubr.bf16.mxu0 %v1564
        %2364 = vmatmul.mubr.bf16.gmra.mrb[0].mxu0 %v1563
        %v2365 = vpop.f32.mrb[0].mxu0
        %v2366 = vadd.f32 %v2061, %v2365
        %v2367 = vpop.f32.mrb[0].mxu0
        %v2368 = vpop.f32.mrb[0].mxu0
        %v2369 = vadd.f32 %v2064, %v2368
        %v2370 = vpop.f32.mrb[0].mxu0
        %2371 = vmatprep.mubr.bf16.mxu0 %v1567
        %2372 = vmatmul.mubr.bf16.gmra.mrb[0].mxu0 %v1566
        %v2373 = vpop.f32.mrb[0].mxu0
        %v2374 = vadd.f32 %v2069, %v2373
        %v2375 = vpop.f32.mrb[0].mxu0
        %v2376 = vpop.f32.mrb[0].mxu0
        %v2377 = vadd.f32 %v2072, %v2376
        %v2378 = vpop.f32.mrb[0].mxu0
        %2379 = vmatprep.mubr.bf16.mxu0 %v1570
        %2380 = vmatmul.mubr.bf16.gmra.mrb[0].mxu0 %v1569
        %v2381 = vpop.f32.mrb[0].mxu0
        %v2382 = vadd.f32 %v2077, %v2381
        %v2383 = vpop.f32.mrb[0].mxu0
        %v2384 = vpop.f32.mrb[0].mxu0
        %v2385 = vadd.f32 %v2080, %v2384
        %v2386 = vpop.f32.mrb[0].mxu0
        %2387 = vmatprep.mubr.bf16.mxu0 %v1573
        %2388 = vmatmul.mubr.bf16.gmra.mrb[0].mxu0 %v1572
        %v2389 = vpop.f32.mrb[0].mxu0
        %v2390 = vadd.f32 %v2085, %v2389
        %v2391 = vpop.f32.mrb[0].mxu0
        %v2392 = vpop.f32.mrb[0].mxu0
        %v2393 = vadd.f32 %v2088, %v2392
        %v2394 = vpop.f32.mrb[0].mxu0
        %2395 = vmatprep.mubr.bf16.mxu0 %v1576
        %2396 = vmatmul.mubr.bf16.gmra.mrb[0].mxu0 %v1575
        %v2397 = vpop.f32.mrb[0].mxu0
        %v2398 = vadd.f32 %v2093, %v2397
        %v2399 = vpop.f32.mrb[0].mxu0
        %v2400 = vpop.f32.mrb[0].mxu0
        %v2401 = vadd.f32 %v2096, %v2400
        %v2402 = vpop.f32.mrb[0].mxu0
        %2403 = vmatprep.mubr.bf16.mxu0 %v1579
        %2404 = vmatmul.mubr.bf16.gmra.mrb[0].mxu0 %v1578
        %v2405 = vpop.f32.mrb[0].mxu0
        %v2406 = vadd.f32 %v2101, %v2405
        %v2407 = vpop.f32.mrb[0].mxu0
        %v2408 = vpop.f32.mrb[0].mxu0
        %v2409 = vadd.f32 %v2104, %v2408
        %v2410 = vpop.f32.mrb[0].mxu0
        %2411 = vmatprep.mubr.bf16.mxu0 %v1582
        %2412 = vmatmul.mubr.bf16.gmra.mrb[0].mxu0 %v1581
        %v2413 = vpop.f32.mrb[0].mxu0
        %v2414 = vadd.f32 %v2109, %v2413
        %v2415 = vpop.f32.mrb[0].mxu0
        %v2416 = vpop.f32.mrb[0].mxu0
        %v2417 = vadd.f32 %v2112, %v2416
        %v2418 = vpop.f32.mrb[0].mxu0
        %2419 = vmatprep.mubr.bf16.mxu0 %v1585
        %2420 = vmatmul.mubr.bf16.gmra.mrb[0].mxu0 %v1584
        %v2421 = vpop.f32.mrb[0].mxu0
        %v2422 = vadd.f32 %v2117, %v2421
        %v2423 = vpop.f32.mrb[0].mxu0
        %v2424 = vpop.f32.mrb[0].mxu0
        %v2425 = vadd.f32 %v2120, %v2424
        %v2426 = vpop.f32.mrb[0].mxu0
        %2427 = vmatprep.mubr.bf16.mxu0 %v1588
        %2428 = vmatmul.mubr.bf16.gmra.mrb[0].mxu0 %v1587
        %v2429 = vpop.f32.mrb[0].mxu0
        %v2430 = vadd.f32 %v2125, %v2429
        %v2431 = vpop.f32.mrb[0].mxu0
        %v2432 = vpop.f32.mrb[0].mxu0
        %v2433 = vadd.f32 %v2128, %v2432
        %v2434 = vpop.f32.mrb[0].mxu0
        %2435 = vmatprep.mubr.bf16.mxu0 %v1591
        %2436 = vmatmul.mubr.bf16.gmra.mrb[0].mxu0 %v1590
        %v2437 = vpop.f32.mrb[0].mxu0
        %v2438 = vadd.f32 %v2133, %v2437
        %v2439 = vpop.f32.mrb[0].mxu0
        %v2440 = vpop.f32.mrb[0].mxu0
        %v2441 = vadd.f32 %v2136, %v2440
        %v2442 = vpop.f32.mrb[0].mxu0
        %2443 = vmatprep.mubr.bf16.mxu0 %v1594
        %2444 = vmatmul.mubr.bf16.gmra.mrb[0].mxu0 %v1593
        %v2445 = vpop.f32.mrb[0].mxu0
        %v2446 = vadd.f32 %v2141, %v2445
        %v2447 = vpop.f32.mrb[0].mxu0
        %v2448 = vpop.f32.mrb[0].mxu0
        %v2449 = vadd.f32 %v2144, %v2448
        %v2450 = vpop.f32.mrb[0].mxu0
        %2451 = vmatprep.mubr.bf16.mxu0 %v1597
        %2452 = vmatmul.mubr.bf16.gmra.mrb[0].mxu0 %v1596
        %v2453 = vpop.f32.mrb[0].mxu0
        %v2454 = vadd.f32 %v2149, %v2453
        %v2455 = vpop.f32.mrb[0].mxu0
        %v2456 = vpop.f32.mrb[0].mxu0
        %v2457 = vadd.f32 %v2152, %v2456
        %v2458 = vpop.f32.mrb[0].mxu0
        %2459 = vmatprep.mubr.bf16.mxu0 %v1600
        %2460 = vmatmul.mubr.bf16.gmra.mrb[0].mxu0 %v1599
        %v2461 = vpop.f32.mrb[0].mxu0
        %v2462 = vadd.f32 %v2157, %v2461
        %v2463 = vpop.f32.mrb[0].mxu0
        %v2464 = vpop.f32.mrb[0].mxu0
        %v2465 = vadd.f32 %v2160, %v2464
        %v2466 = vpop.f32.mrb[0].mxu0
        %2467 = vmatprep.mubr.bf16.mxu0 %v1603
        %2468 = vmatmul.mubr.bf16.gmra.mrb[0].mxu0 %v1602
        %v2469 = vpop.f32.mrb[0].mxu0
        %v2470 = vadd.f32 %v2165, %v2469
        %v2471 = vpop.f32.mrb[0].mxu0
        %v2472 = vpop.f32.mrb[0].mxu0
        %v2473 = vadd.f32 %v2168, %v2472
        %v2474 = vpop.f32.mrb[0].mxu0
        %2475 = vdwg.mxu0
        %2476 = vmatprep.subr.bf16.mxu0 0
        %2477 = vmatpush1.bf16.msra.mxu0 %v2283
        %2478 = vmatprep.subr.bf16.mxu0 0
        %2479 = vmatpush1.bf16.msra.mxu0 %v2284
        %2480 = vmatprep.subr.bf16.mxu0 0
        %2481 = vmatpush1.bf16.msra.mxu0 %v2285
        %2482 = vmatprep.subr.bf16.mxu0 0
        %2483 = vmatpush1.bf16.msra.mxu0 %v2286
        %2484 = vmatprep.subr.bf16.mxu0 0
        %2485 = vmatpush1.bf16.msra.mxu0 %v2287
        %2486 = vmatprep.subr.bf16.mxu0 0
        %2487 = vmatpush1.bf16.msra.mxu0 %v2288
        %2488 = vmatprep.subr.bf16.mxu0 0
        %2489 = vmatpush1.bf16.msra.mxu0 %v2289
        %2490 = vmatprep.subr.bf16.mxu0 0
        %2491 = vmatpush1.bf16.msra.mxu0 %v2290
        %2492 = vmatprep.subr.bf16.mxu0 0
        %2493 = vmatpush1.bf16.msra.mxu0 0
        %2494 = vmatprep.subr.bf16.mxu0 0
        %2495 = vmatpush1.bf16.msra.mxu0 0
        %2496 = vmatprep.subr.bf16.mxu0 0
        %2497 = vmatpush1.bf16.msra.mxu0 0
        %2498 = vmatprep.subr.bf16.mxu0 0
        %2499 = vmatpush1.bf16.msra.mxu0 0
        %2500 = vmatprep.subr.bf16.mxu0 0
        %2501 = vmatpush1.bf16.msra.mxu0 0
        %2502 = vmatprep.subr.bf16.mxu0 0
        %2503 = vmatpush1.bf16.msra.mxu0 0
        %2504 = vmatprep.subr.bf16.mxu0 0
        %2505 = vmatpush1.bf16.msra.mxu0 0
        %2506 = vmatprep.subr.bf16.mxu0 0
        %2507 = vmatpush1.bf16.msra.mxu0 0
        %2508 = vmatprep.mubr.bf16.mxu0 0
        %2509 = vmatmul.mubr.bf16.gmra.mrb[0].mxu0 %v1559
        %v2510 = vpop.f32.mrb[0].mxu0
        %v2511 = vadd.f32 %v2350, %v2510
        %v2512 = vpop.f32.mrb[0].mxu0
        %v2513 = vpop.f32.mrb[0].mxu0
        %v2514 = vadd.f32 %v2353, %v2513
        %v2515 = vpop.f32.mrb[0].mxu0
        %2516 = vmatprep.mubr.bf16.mxu0 0
        %2517 = vmatmul.mubr.bf16.gmra.mrb[0].mxu0 %v1562
        %v2518 = vpop.f32.mrb[0].mxu0
        %v2519 = vadd.f32 %v2358, %v2518
        %v2520 = vpop.f32.mrb[0].mxu0
        %v2521 = vpop.f32.mrb[0].mxu0
        %v2522 = vadd.f32 %v2361, %v2521
        %v2523 = vpop.f32.mrb[0].mxu0
        %2524 = vmatprep.mubr.bf16.mxu0 0
        %2525 = vmatmul.mubr.bf16.gmra.mrb[0].mxu0 %v1565
        %v2526 = vpop.f32.mrb[0].mxu0
        %v2527 = vadd.f32 %v2366, %v2526
        %v2528 = vpop.f32.mrb[0].mxu0
        %v2529 = vpop.f32.mrb[0].mxu0
        %v2530 = vadd.f32 %v2369, %v2529
        %v2531 = vpop.f32.mrb[0].mxu0
        %2532 = vmatprep.mubr.bf16.mxu0 0
        %2533 = vmatmul.mubr.bf16.gmra.mrb[0].mxu0 %v1568
        %v2534 = vpop.f32.mrb[0].mxu0
        %v2535 = vadd.f32 %v2374, %v2534
        %v2536 = vpop.f32.mrb[0].mxu0
        %v2537 = vpop.f32.mrb[0].mxu0
        %v2538 = vadd.f32 %v2377, %v2537
        %v2539 = vpop.f32.mrb[0].mxu0
        %2540 = vmatprep.mubr.bf16.mxu0 0
        %2541 = vmatmul.mubr.bf16.gmra.mrb[0].mxu0 %v1571
        %v2542 = vpop.f32.mrb[0].mxu0
        %v2543 = vadd.f32 %v2382, %v2542
        %v2544 = vpop.f32.mrb[0].mxu0
        %v2545 = vpop.f32.mrb[0].mxu0
        %v2546 = vadd.f32 %v2385, %v2545
        %v2547 = vpop.f32.mrb[0].mxu0
        %2548 = vmatprep.mubr.bf16.mxu0 0
        %2549 = vmatmul.mubr.bf16.gmra.mrb[0].mxu0 %v1574
        %v2550 = vpop.f32.mrb[0].mxu0
        %v2551 = vadd.f32 %v2390, %v2550
        %v2552 = vpop.f32.mrb[0].mxu0
        %v2553 = vpop.f32.mrb[0].mxu0
        %v2554 = vadd.f32 %v2393, %v2553
        %v2555 = vpop.f32.mrb[0].mxu0
        %2556 = vmatprep.mubr.bf16.mxu0 0
        %2557 = vmatmul.mubr.bf16.gmra.mrb[0].mxu0 %v1577
        %v2558 = vpop.f32.mrb[0].mxu0
        %v2559 = vadd.f32 %v2398, %v2558
        %v2560 = vpop.f32.mrb[0].mxu0
        %v2561 = vpop.f32.mrb[0].mxu0
        %v2562 = vadd.f32 %v2401, %v2561
        %v2563 = vpop.f32.mrb[0].mxu0
        %2564 = vmatprep.mubr.bf16.mxu0 0
        %2565 = vmatmul.mubr.bf16.gmra.mrb[0].mxu0 %v1580
        %v2566 = vpop.f32.mrb[0].mxu0
        %v2567 = vadd.f32 %v2406, %v2566
        %v2568 = vpop.f32.mrb[0].mxu0
        %v2569 = vpop.f32.mrb[0].mxu0
        %v2570 = vadd.f32 %v2409, %v2569
        %v2571 = vpop.f32.mrb[0].mxu0
        %2572 = vmatprep.mubr.bf16.mxu0 0
        %2573 = vmatmul.mubr.bf16.gmra.mrb[0].mxu0 %v1583
        %v2574 = vpop.f32.mrb[0].mxu0
        %v2575 = vadd.f32 %v2414, %v2574
        %v2576 = vpop.f32.mrb[0].mxu0
        %v2577 = vpop.f32.mrb[0].mxu0
        %v2578 = vadd.f32 %v2417, %v2577
        %v2579 = vpop.f32.mrb[0].mxu0
        %2580 = vmatprep.mubr.bf16.mxu0 0
        %2581 = vmatmul.mubr.bf16.gmra.mrb[0].mxu0 %v1586
        %v2582 = vpop.f32.mrb[0].mxu0
        %v2583 = vadd.f32 %v2422, %v2582
        %v2584 = vpop.f32.mrb[0].mxu0
        %v2585 = vpop.f32.mrb[0].mxu0
        %v2586 = vadd.f32 %v2425, %v2585
        %v2587 = vpop.f32.mrb[0].mxu0
        %2588 = vmatprep.mubr.bf16.mxu0 0
        %2589 = vmatmul.mubr.bf16.gmra.mrb[0].mxu0 %v1589
        %v2590 = vpop.f32.mrb[0].mxu0
        %v2591 = vadd.f32 %v2430, %v2590
        %v2592 = vpop.f32.mrb[0].mxu0
        %v2593 = vpop.f32.mrb[0].mxu0
        %v2594 = vadd.f32 %v2433, %v2593
        %v2595 = vpop.f32.mrb[0].mxu0
        %2596 = vmatprep.mubr.bf16.mxu0 0
        %2597 = vmatmul.mubr.bf16.gmra.mrb[0].mxu0 %v1592
        %v2598 = vpop.f32.mrb[0].mxu0
        %v2599 = vadd.f32 %v2438, %v2598
        %v2600 = vpop.f32.mrb[0].mxu0
        %v2601 = vpop.f32.mrb[0].mxu0
        %v2602 = vadd.f32 %v2441, %v2601
        %v2603 = vpop.f32.mrb[0].mxu0
        %2604 = vmatprep.mubr.bf16.mxu0 0
        %2605 = vmatmul.mubr.bf16.gmra.mrb[0].mxu0 %v1595
        %v2606 = vpop.f32.mrb[0].mxu0
        %v2607 = vadd.f32 %v2446, %v2606
        %v2608 = vpop.f32.mrb[0].mxu0
        %v2609 = vpop.f32.mrb[0].mxu0
        %v2610 = vadd.f32 %v2449, %v2609
        %v2611 = vpop.f32.mrb[0].mxu0
        %2612 = vmatprep.mubr.bf16.mxu0 0
        %2613 = vmatmul.mubr.bf16.gmra.mrb[0].mxu0 %v1598
        %v2614 = vpop.f32.mrb[0].mxu0
        %v2615 = vadd.f32 %v2454, %v2614
        %v2616 = vpop.f32.mrb[0].mxu0
        %v2617 = vpop.f32.mrb[0].mxu0
        %v2618 = vadd.f32 %v2457, %v2617
        %v2619 = vpop.f32.mrb[0].mxu0
        %2620 = vmatprep.mubr.bf16.mxu0 0
        %2621 = vmatmul.mubr.bf16.gmra.mrb[0].mxu0 %v1601
        %v2622 = vpop.f32.mrb[0].mxu0
        %v2623 = vadd.f32 %v2462, %v2622
        %v2624 = vpop.f32.mrb[0].mxu0
        %v2625 = vpop.f32.mrb[0].mxu0
        %v2626 = vadd.f32 %v2465, %v2625
        %v2627 = vpop.f32.mrb[0].mxu0
        %2628 = vmatprep.mubr.bf16.mxu0 0
        %2629 = vmatmul.mubr.bf16.gmra.mrb[0].mxu0 %v1604
        %v2630 = vpop.f32.mrb[0].mxu0
        %v2631 = vadd.f32 %v2470, %v2630
        %v2632 = vpop.f32.mrb[0].mxu0
        %v2633 = vpop.f32.mrb[0].mxu0
        %v2634 = vadd.f32 %v2473, %v2633
        %v2635 = vpop.f32.mrb[0].mxu0
        %2636 = vdwg.mxu0
        %v2637 = vld [vmem:[#allocation2 + $0x30] sm:$0xff]
        %v2638 = vld [vmem:[#allocation2 + $0x38] sm:$0xff]
        %v2639 = vld [vmem:[#allocation2 + $0x40] sm:$0xff]
        %v2640 = vld [vmem:[#allocation2 + $0x48] sm:$0xff]
        %v2641 = vld [vmem:[#allocation2 + $0x50] sm:$0xff]
        %v2642 = vld [vmem:[#allocation2 + $0x58] sm:$0xff]
        %v2643 = vld [vmem:[#allocation2 + $0x60] sm:$0xff]
        %v2644 = vld [vmem:[#allocation2 + $0x68] sm:$0xff]
        %v2645 = vld [vmem:[#allocation2 + $0x70] sm:$0xff]
        %v2646 = vld [vmem:[#allocation2 + $0x78] sm:$0xff]
        %v2647 = vld [vmem:[#allocation2 + $0x80] sm:$0xff]
        %v2648 = vld [vmem:[#allocation2 + $0x88] sm:$0xff]
        %v2649 = vld [vmem:[#allocation2 + $0x90] sm:$0xff]
        %v2650 = vld [vmem:[#allocation2 + $0x98] sm:$0xff]
        %v2651 = vld [vmem:[#allocation2 + $0xa0] sm:$0xff]
        %v2652 = vld [vmem:[#allocation2 + $0xa8] sm:$0xff]
        %v2653 = vld [vmem:[#allocation2 + $0xb0] sm:$0xff]
        %v2654 = vld [vmem:[#allocation2 + $0xb8] sm:$0xff]
        %v2655 = vld [vmem:[#allocation2 + $0xc0] sm:$0xff]
        %v2656 = vld [vmem:[#allocation2 + $0xc8] sm:$0xff]
        %v2657 = vld [vmem:[#allocation2 + $0xd0] sm:$0xff]
        %v2658 = vld [vmem:[#allocation2 + $0xd8] sm:$0xff]
        %v2659 = vld [vmem:[#allocation2 + $0xe0] sm:$0xff]
        %v2660 = vld [vmem:[#allocation2 + $0xe8] sm:$0xff]
        %v2661 = vld [vmem:[#allocation2 + $0xf0] sm:$0xff]
        %v2662 = vld [vmem:[#allocation2 + $0xf8] sm:$0xff]
        %v2663 = vld [vmem:[#allocation2 + $0x100] sm:$0xff]
        %v2664 = vld [vmem:[#allocation2 + $0x108] sm:$0xff]
        %v2665 = vld [vmem:[#allocation2 + $0x110] sm:$0xff]
        %v2666 = vld [vmem:[#allocation2 + $0x118] sm:$0xff]
        %v2667 = vld [vmem:[#allocation2 + $0x120] sm:$0xff]
        %v2668 = vld [vmem:[#allocation2 + $0x128] sm:$0xff]
        %v2669 = vld [vmem:[#allocation2 + $0x130] sm:$0xff]
        %v2670 = vld [vmem:[#allocation2 + $0x138] sm:$0xff]
        %v2671 = vld [vmem:[#allocation2 + $0x140] sm:$0xff]
        %v2672 = vld [vmem:[#allocation2 + $0x148] sm:$0xff]
        %v2673 = vld [vmem:[#allocation2 + $0x150] sm:$0xff]
        %v2674 = vld [vmem:[#allocation2 + $0x158] sm:$0xff]
        %v2675 = vld [vmem:[#allocation2 + $0x160] sm:$0xff]
        %v2676 = vld [vmem:[#allocation2 + $0x168] sm:$0xff]
        %v2677 = vld [vmem:[#allocation2 + $0x170] sm:$0xff]
        %v2678 = vld [vmem:[#allocation2 + $0x178] sm:$0xff]
        %v2679 = vld [vmem:[#allocation2 + $0x180] sm:$0xff]
        %v2680 = vld [vmem:[#allocation2 + $0x188] sm:$0xff]
        %v2681 = vld [vmem:[#allocation2 + $0x190] sm:$0xff]
        %v2682 = vld [vmem:[#allocation2 + $0x198] sm:$0xff]
        %v2683 = vld [vmem:[#allocation2 + $0x1a0] sm:$0xff]
        %v2684 = vld [vmem:[#allocation2 + $0x1a8] sm:$0xff]
        %s2685 = scalar_lea.vmem [#allocation7], 384
        %v2686 = vld [vmem:[%s2685] sm:$0xf]
        %v2687 = vld [vmem:[%s2685 + $0x4] sm:$0xf]
        %v2688 = vld [vmem:[%s2685 + $0x8] sm:$0xf]
        %v2689 = vld [vmem:[%s2685 + $0xc] sm:$0xf]
        %v2690 = vld [vmem:[%s2685 + $0x10] sm:$0xf]
        %v2691 = vld [vmem:[%s2685 + $0x14] sm:$0xf]
        %v2692 = vld [vmem:[%s2685 + $0x18] sm:$0xf]
        %v2693 = vld [vmem:[%s2685 + $0x1c] sm:$0xf]
        %v2694 = vld [vmem:[%s2685 + $0x20] sm:$0xf]
        %v2695 = vld [vmem:[%s2685 + $0x24] sm:$0xf]
        %v2696 = vld [vmem:[%s2685 + $0x28] sm:$0xf]
        %v2697 = vld [vmem:[%s2685 + $0x2c] sm:$0xf]
        %v2698 = vld [vmem:[%s2685 + $0x30] sm:$0xf]
        %v2699 = vld [vmem:[%s2685 + $0x34] sm:$0xf]
        %v2700 = vld [vmem:[%s2685 + $0x38] sm:$0xf]
        %v2701 = vld [vmem:[%s2685 + $0x3c] sm:$0xf]
        %v2702 = vld [vmem:[%s2685 + $0x40] sm:$0xf]
        %v2703 = vld [vmem:[%s2685 + $0x44] sm:$0xf]
        %v2704 = vld [vmem:[%s2685 + $0x48] sm:$0xf]
        %v2705 = vld [vmem:[%s2685 + $0x4c] sm:$0xf]
        %v2706 = vld [vmem:[%s2685 + $0x50] sm:$0xf]
        %v2707 = vld [vmem:[%s2685 + $0x54] sm:$0xf]
        %v2708 = vld [vmem:[%s2685 + $0x58] sm:$0xf]
        %v2709 = vld [vmem:[%s2685 + $0x5c] sm:$0xf]
        %v2710 = vld [vmem:[%s2685 + $0x60] sm:$0xf]
        %v2711 = vld [vmem:[%s2685 + $0x64] sm:$0xf]
        %v2712 = vld [vmem:[%s2685 + $0x68] sm:$0xf]
        %v2713 = vld [vmem:[%s2685 + $0x6c] sm:$0xf]
        %v2714 = vld [vmem:[%s2685 + $0x70] sm:$0xf]
        %v2715 = vld [vmem:[%s2685 + $0x74] sm:$0xf]
        %v2716 = vld [vmem:[%s2685 + $0x78] sm:$0xf]
        %v2717 = vld [vmem:[%s2685 + $0x7c] sm:$0xf]
        %v2718 = vld [vmem:[%s2685 + $0x80] sm:$0xf]
        %v2719 = vld [vmem:[%s2685 + $0x84] sm:$0xf]
        %v2720 = vld [vmem:[%s2685 + $0x88] sm:$0xf]
        %v2721 = vld [vmem:[%s2685 + $0x8c] sm:$0xf]
        %v2722 = vld [vmem:[%s2685 + $0x90] sm:$0xf]
        %v2723 = vld [vmem:[%s2685 + $0x94] sm:$0xf]
        %v2724 = vld [vmem:[%s2685 + $0x98] sm:$0xf]
        %v2725 = vld [vmem:[%s2685 + $0x9c] sm:$0xf]
        %v2726 = vld [vmem:[%s2685 + $0xa0] sm:$0xf]
        %v2727 = vld [vmem:[%s2685 + $0xa4] sm:$0xf]
        %v2728 = vld [vmem:[%s2685 + $0xa8] sm:$0xf]
        %v2729 = vld [vmem:[%s2685 + $0xac] sm:$0xf]
        %v2730 = vld [vmem:[%s2685 + $0xb0] sm:$0xf]
        %v2731 = vld [vmem:[%s2685 + $0xb4] sm:$0xf]
        %v2732 = vld [vmem:[%s2685 + $0xb8] sm:$0xf]
        %v2733 = vld [vmem:[%s2685 + $0xbc] sm:$0xf]
        %v2782 = vunpack.c.l.b16 %v2686
        %v2783 = vunpack.c.l.b16 %v2687
        %v2784 = vunpack.c.l.b16 %v2688
        %v2785 = vunpack.c.l.b16 %v2689
        %v2786 = vunpack.c.l.b16 %v2690
        %v2787 = vunpack.c.l.b16 %v2691
        %v2788 = vunpack.c.l.b16 %v2692
        %v2789 = vunpack.c.l.b16 %v2693
        %v2790 = vunpack.c.l.b16 %v2694
        %v2791 = vunpack.c.l.b16 %v2695
        %v2792 = vunpack.c.l.b16 %v2696
        %v2793 = vunpack.c.l.b16 %v2697
        %v2794 = vunpack.c.l.b16 %v2698
        %v2795 = vunpack.c.l.b16 %v2699
        %v2796 = vunpack.c.l.b16 %v2700
        %v2797 = vunpack.c.l.b16 %v2701
        %v2798 = vunpack.c.l.b16 %v2702
        %v2799 = vunpack.c.l.b16 %v2703
        %v2800 = vunpack.c.l.b16 %v2704
        %v2801 = vunpack.c.l.b16 %v2705
        %v2802 = vunpack.c.l.b16 %v2706
        %v2803 = vunpack.c.l.b16 %v2707
        %v2804 = vunpack.c.l.b16 %v2708
        %v2805 = vunpack.c.l.b16 %v2709
        %v2806 = vunpack.c.l.b16 %v2710
        %v2807 = vunpack.c.l.b16 %v2711
        %v2808 = vunpack.c.l.b16 %v2712
        %v2809 = vunpack.c.l.b16 %v2713
        %v2810 = vunpack.c.l.b16 %v2714
        %v2811 = vunpack.c.l.b16 %v2715
        %v2812 = vunpack.c.l.b16 %v2716
        %v2813 = vunpack.c.l.b16 %v2717
        %v2814 = vunpack.c.l.b16 %v2718
        %v2815 = vunpack.c.l.b16 %v2719
        %v2816 = vunpack.c.l.b16 %v2720
        %v2817 = vunpack.c.l.b16 %v2721
        %v2818 = vunpack.c.l.b16 %v2722
        %v2819 = vunpack.c.l.b16 %v2723
        %v2820 = vunpack.c.l.b16 %v2724
        %v2821 = vunpack.c.l.b16 %v2725
        %v2822 = vunpack.c.l.b16 %v2726
        %v2823 = vunpack.c.l.b16 %v2727
        %v2824 = vunpack.c.l.b16 %v2728
        %v2825 = vunpack.c.l.b16 %v2729
        %v2826 = vunpack.c.l.b16 %v2730
        %v2827 = vunpack.c.l.b16 %v2731
        %v2828 = vunpack.c.l.b16 %v2732
        %v2829 = vunpack.c.l.b16 %v2733
        %v2830 = vpack.c.b16 %v2783, %v2782
        %v2831 = vpack.c.b16 %v2785, %v2784
        %v2832 = vpack.c.b16 %v2787, %v2786
        %v2833 = vpack.c.b16 %v2789, %v2788
        %v2834 = vpack.c.b16 %v2791, %v2790
        %v2835 = vpack.c.b16 %v2793, %v2792
        %v2836 = vpack.c.b16 %v2795, %v2794
        %v2837 = vpack.c.b16 %v2797, %v2796
        %v2838 = vpack.c.b16 %v2799, %v2798
        %v2839 = vpack.c.b16 %v2801, %v2800
        %v2840 = vpack.c.b16 %v2803, %v2802
        %v2841 = vpack.c.b16 %v2805, %v2804
        %v2842 = vpack.c.b16 %v2807, %v2806
        %v2843 = vpack.c.b16 %v2809, %v2808
        %v2844 = vpack.c.b16 %v2811, %v2810
        %v2845 = vpack.c.b16 %v2813, %v2812
        %v2846 = vpack.c.b16 %v2815, %v2814
        %v2847 = vpack.c.b16 %v2817, %v2816
        %v2848 = vpack.c.b16 %v2819, %v2818
        %v2849 = vpack.c.b16 %v2821, %v2820
        %v2850 = vpack.c.b16 %v2823, %v2822
        %v2851 = vpack.c.b16 %v2825, %v2824
        %v2852 = vpack.c.b16 %v2827, %v2826
        %v2853 = vpack.c.b16 %v2829, %v2828
        %2878 = vmatprep.subr.bf16.mxu0 0
        %2879 = vmatpush1.bf16.msra.mxu0 %v2830
        %2880 = vmatprep.subr.bf16.mxu0 0
        %2881 = vmatpush1.bf16.msra.mxu0 %v2831
        %2882 = vmatprep.subr.bf16.mxu0 0
        %2883 = vmatpush1.bf16.msra.mxu0 %v2832
        %2884 = vmatprep.subr.bf16.mxu0 0
        %2885 = vmatpush1.bf16.msra.mxu0 %v2833
        %2886 = vmatprep.subr.bf16.mxu0 0
        %2887 = vmatpush1.bf16.msra.mxu0 %v2834
        %2888 = vmatprep.subr.bf16.mxu0 0
        %2889 = vmatpush1.bf16.msra.mxu0 %v2835
        %2890 = vmatprep.subr.bf16.mxu0 0
        %2891 = vmatpush1.bf16.msra.mxu0 %v2836
        %2892 = vmatprep.subr.bf16.mxu0 0
        %2893 = vmatpush1.bf16.msra.mxu0 %v2837
        %2894 = vmatprep.subr.bf16.mxu0 0
        %2895 = vmatpush1.bf16.msra.mxu0 %v2838
        %2896 = vmatprep.subr.bf16.mxu0 0
        %2897 = vmatpush1.bf16.msra.mxu0 %v2839
        %2898 = vmatprep.subr.bf16.mxu0 0
        %2899 = vmatpush1.bf16.msra.mxu0 %v2840
        %2900 = vmatprep.subr.bf16.mxu0 0
        %2901 = vmatpush1.bf16.msra.mxu0 %v2841
        %2902 = vmatprep.subr.bf16.mxu0 0
        %2903 = vmatpush1.bf16.msra.mxu0 %v2842
        %2904 = vmatprep.subr.bf16.mxu0 0
        %2905 = vmatpush1.bf16.msra.mxu0 %v2843
        %2906 = vmatprep.subr.bf16.mxu0 0
        %2907 = vmatpush1.bf16.msra.mxu0 %v2844
        %2908 = vmatprep.subr.bf16.mxu0 0
        %2909 = vmatpush1.bf16.msra.mxu0 %v2845
        %2910 = vmatprep.mubr.bf16.mxu0 %v2638
        %2911 = vmatmul.mubr.bf16.gmra.mrb[0].mxu0 %v2637
        %v2912 = vpop.f32.mrb[0].mxu0
        %v2913 = vadd.f32 0.0, %v2912
        %v2914 = vpop.f32.mrb[0].mxu0
        %v2915 = vpop.f32.mrb[0].mxu0
        %v2916 = vadd.f32 0.0, %v2915
        %v2917 = vpop.f32.mrb[0].mxu0
        %2918 = vmatprep.mubr.bf16.mxu0 %v2641
        %2919 = vmatmul.mubr.bf16.gmra.mrb[0].mxu0 %v2640
        %v2920 = vpop.f32.mrb[0].mxu0
        %v2921 = vadd.f32 0.0, %v2920
        %v2922 = vpop.f32.mrb[0].mxu0
        %v2923 = vpop.f32.mrb[0].mxu0
        %v2924 = vadd.f32 0.0, %v2923
        %v2925 = vpop.f32.mrb[0].mxu0
        %2926 = vmatprep.mubr.bf16.mxu0 %v2644
        %2927 = vmatmul.mubr.bf16.gmra.mrb[0].mxu0 %v2643
        %v2928 = vpop.f32.mrb[0].mxu0
        %v2929 = vadd.f32 0.0, %v2928
        %v2930 = vpop.f32.mrb[0].mxu0
        %v2931 = vpop.f32.mrb[0].mxu0
        %v2932 = vadd.f32 0.0, %v2931
        %v2933 = vpop.f32.mrb[0].mxu0
        %2934 = vmatprep.mubr.bf16.mxu0 %v2647
        %2935 = vmatmul.mubr.bf16.gmra.mrb[0].mxu0 %v2646
        %v2936 = vpop.f32.mrb[0].mxu0
        %v2937 = vadd.f32 0.0, %v2936
        %v2938 = vpop.f32.mrb[0].mxu0
        %v2939 = vpop.f32.mrb[0].mxu0
        %v2940 = vadd.f32 0.0, %v2939
        %v2941 = vpop.f32.mrb[0].mxu0
        %2942 = vmatprep.mubr.bf16.mxu0 %v2650
        %2943 = vmatmul.mubr.bf16.gmra.mrb[0].mxu0 %v2649
        %v2944 = vpop.f32.mrb[0].mxu0
        %v2945 = vadd.f32 0.0, %v2944
        %v2946 = vpop.f32.mrb[0].mxu0
        %v2947 = vpop.f32.mrb[0].mxu0
        %v2948 = vadd.f32 0.0, %v2947
        %v2949 = vpop.f32.mrb[0].mxu0
        %2950 = vmatprep.mubr.bf16.mxu0 %v2653
        %2951 = vmatmul.mubr.bf16.gmra.mrb[0].mxu0 %v2652
        %v2952 = vpop.f32.mrb[0].mxu0
        %v2953 = vadd.f32 0.0, %v2952
        %v2954 = vpop.f32.mrb[0].mxu0
        %v2955 = vpop.f32.mrb[0].mxu0
        %v2956 = vadd.f32 0.0, %v2955
        %v2957 = vpop.f32.mrb[0].mxu0
        %2958 = vmatprep.mubr.bf16.mxu0 %v2656
        %2959 = vmatmul.mubr.bf16.gmra.mrb[0].mxu0 %v2655
        %v2960 = vpop.f32.mrb[0].mxu0
        %v2961 = vadd.f32 0.0, %v2960
        %v2962 = vpop.f32.mrb[0].mxu0
        %v2963 = vpop.f32.mrb[0].mxu0
        %v2964 = vadd.f32 0.0, %v2963
        %v2965 = vpop.f32.mrb[0].mxu0
        %2966 = vmatprep.mubr.bf16.mxu0 %v2659
        %2967 = vmatmul.mubr.bf16.gmra.mrb[0].mxu0 %v2658
        %v2968 = vpop.f32.mrb[0].mxu0
        %v2969 = vadd.f32 0.0, %v2968
        %v2970 = vpop.f32.mrb[0].mxu0
        %v2971 = vpop.f32.mrb[0].mxu0
        %v2972 = vadd.f32 0.0, %v2971
        %v2973 = vpop.f32.mrb[0].mxu0
        %2974 = vmatprep.mubr.bf16.mxu0 %v2662
        %2975 = vmatmul.mubr.bf16.gmra.mrb[0].mxu0 %v2661
        %v2976 = vpop.f32.mrb[0].mxu0
        %v2977 = vadd.f32 0.0, %v2976
        %v2978 = vpop.f32.mrb[0].mxu0
        %v2979 = vpop.f32.mrb[0].mxu0
        %v2980 = vadd.f32 0.0, %v2979
        %v2981 = vpop.f32.mrb[0].mxu0
        %2982 = vmatprep.mubr.bf16.mxu0 %v2665
        %2983 = vmatmul.mubr.bf16.gmra.mrb[0].mxu0 %v2664
        %v2984 = vpop.f32.mrb[0].mxu0
        %v2985 = vadd.f32 0.0, %v2984
        %v2986 = vpop.f32.mrb[0].mxu0
        %v2987 = vpop.f32.mrb[0].mxu0
        %v2988 = vadd.f32 0.0, %v2987
        %v2989 = vpop.f32.mrb[0].mxu0
        %2990 = vmatprep.mubr.bf16.mxu0 %v2668
        %2991 = vmatmul.mubr.bf16.gmra.mrb[0].mxu0 %v2667
        %v2992 = vpop.f32.mrb[0].mxu0
        %v2993 = vadd.f32 0.0, %v2992
        %v2994 = vpop.f32.mrb[0].mxu0
        %v2995 = vpop.f32.mrb[0].mxu0
        %v2996 = vadd.f32 0.0, %v2995
        %v2997 = vpop.f32.mrb[0].mxu0
        %2998 = vmatprep.mubr.bf16.mxu0 %v2671
        %2999 = vmatmul.mubr.bf16.gmra.mrb[0].mxu0 %v2670
        %v3000 = vpop.f32.mrb[0].mxu0
        %v3001 = vadd.f32 0.0, %v3000
        %v3002 = vpop.f32.mrb[0].mxu0
        %v3003 = vpop.f32.mrb[0].mxu0
        %v3004 = vadd.f32 0.0, %v3003
        %v3005 = vpop.f32.mrb[0].mxu0
        %3006 = vmatprep.mubr.bf16.mxu0 %v2674
        %3007 = vmatmul.mubr.bf16.gmra.mrb[0].mxu0 %v2673
        %v3008 = vpop.f32.mrb[0].mxu0
        %v3009 = vadd.f32 0.0, %v3008
        %v3010 = vpop.f32.mrb[0].mxu0
        %v3011 = vpop.f32.mrb[0].mxu0
        %v3012 = vadd.f32 0.0, %v3011
        %v3013 = vpop.f32.mrb[0].mxu0
        %3014 = vmatprep.mubr.bf16.mxu0 %v2677
        %3015 = vmatmul.mubr.bf16.gmra.mrb[0].mxu0 %v2676
        %v3016 = vpop.f32.mrb[0].mxu0
        %v3017 = vadd.f32 0.0, %v3016
        %v3018 = vpop.f32.mrb[0].mxu0
        %v3019 = vpop.f32.mrb[0].mxu0
        %v3020 = vadd.f32 0.0, %v3019
        %v3021 = vpop.f32.mrb[0].mxu0
        %3022 = vmatprep.mubr.bf16.mxu0 %v2680
        %3023 = vmatmul.mubr.bf16.gmra.mrb[0].mxu0 %v2679
        %v3024 = vpop.f32.mrb[0].mxu0
        %v3025 = vadd.f32 0.0, %v3024
        %v3026 = vpop.f32.mrb[0].mxu0
        %v3027 = vpop.f32.mrb[0].mxu0
        %v3028 = vadd.f32 0.0, %v3027
        %v3029 = vpop.f32.mrb[0].mxu0
        %3030 = vmatprep.mubr.bf16.mxu0 %v2683
        %3031 = vmatmul.mubr.bf16.gmra.mrb[0].mxu0 %v2682
        %v3032 = vpop.f32.mrb[0].mxu0
        %v3033 = vadd.f32 0.0, %v3032
        %v3034 = vpop.f32.mrb[0].mxu0
        %v3035 = vpop.f32.mrb[0].mxu0
        %v3036 = vadd.f32 0.0, %v3035
        %v3037 = vpop.f32.mrb[0].mxu0
        %3038 = vdwg.mxu0
        %3039 = vmatprep.subr.bf16.mxu0 0
        %3040 = vmatpush1.bf16.msra.mxu0 %v2846
        %3041 = vmatprep.subr.bf16.mxu0 0
        %3042 = vmatpush1.bf16.msra.mxu0 %v2847
        %3043 = vmatprep.subr.bf16.mxu0 0
        %3044 = vmatpush1.bf16.msra.mxu0 %v2848
        %3045 = vmatprep.subr.bf16.mxu0 0
        %3046 = vmatpush1.bf16.msra.mxu0 %v2849
        %3047 = vmatprep.subr.bf16.mxu0 0
        %3048 = vmatpush1.bf16.msra.mxu0 %v2850
        %3049 = vmatprep.subr.bf16.mxu0 0
        %3050 = vmatpush1.bf16.msra.mxu0 %v2851
        %3051 = vmatprep.subr.bf16.mxu0 0
        %3052 = vmatpush1.bf16.msra.mxu0 %v2852
        %3053 = vmatprep.subr.bf16.mxu0 0
        %3054 = vmatpush1.bf16.msra.mxu0 %v2853
        %3055 = vmatprep.subr.bf16.mxu0 0
        %3056 = vmatpush1.bf16.msra.mxu0 0
        %3057 = vmatprep.subr.bf16.mxu0 0
        %3058 = vmatpush1.bf16.msra.mxu0 0
        %3059 = vmatprep.subr.bf16.mxu0 0
        %3060 = vmatpush1.bf16.msra.mxu0 0
        %3061 = vmatprep.subr.bf16.mxu0 0
        %3062 = vmatpush1.bf16.msra.mxu0 0
        %3063 = vmatprep.subr.bf16.mxu0 0
        %3064 = vmatpush1.bf16.msra.mxu0 0
        %3065 = vmatprep.subr.bf16.mxu0 0
        %3066 = vmatpush1.bf16.msra.mxu0 0
        %3067 = vmatprep.subr.bf16.mxu0 0
        %3068 = vmatpush1.bf16.msra.mxu0 0
        %3069 = vmatprep.subr.bf16.mxu0 0
        %3070 = vmatpush1.bf16.msra.mxu0 0
        %3071 = vmatprep.mubr.bf16.mxu0 0
        %3072 = vmatmul.mubr.bf16.gmra.mrb[0].mxu0 %v2639
        %v3073 = vpop.f32.mrb[0].mxu0
        %v3074 = vadd.f32 %v2913, %v3073
        %v3075 = vpop.f32.mrb[0].mxu0
        %v3076 = vpop.f32.mrb[0].mxu0
        %v3077 = vadd.f32 %v2916, %v3076
        %v3078 = vpop.f32.mrb[0].mxu0
        %3079 = vmatprep.mubr.bf16.mxu0 0
        %3080 = vmatmul.mubr.bf16.gmra.mrb[0].mxu0 %v2642
        %v3081 = vpop.f32.mrb[0].mxu0
        %v3082 = vadd.f32 %v2921, %v3081
        %v3083 = vpop.f32.mrb[0].mxu0
        %v3084 = vpop.f32.mrb[0].mxu0
        %v3085 = vadd.f32 %v2924, %v3084
        %v3086 = vpop.f32.mrb[0].mxu0
        %3087 = vmatprep.mubr.bf16.mxu0 0
        %3088 = vmatmul.mubr.bf16.gmra.mrb[0].mxu0 %v2645
        %v3089 = vpop.f32.mrb[0].mxu0
        %v3090 = vadd.f32 %v2929, %v3089
        %v3091 = vpop.f32.mrb[0].mxu0
        %v3092 = vpop.f32.mrb[0].mxu0
        %v3093 = vadd.f32 %v2932, %v3092
        %v3094 = vpop.f32.mrb[0].mxu0
        %3095 = vmatprep.mubr.bf16.mxu0 0
        %3096 = vmatmul.mubr.bf16.gmra.mrb[0].mxu0 %v2648
        %v3097 = vpop.f32.mrb[0].mxu0
        %v3098 = vadd.f32 %v2937, %v3097
        %v3099 = vpop.f32.mrb[0].mxu0
        %v3100 = vpop.f32.mrb[0].mxu0
        %v3101 = vadd.f32 %v2940, %v3100
        %v3102 = vpop.f32.mrb[0].mxu0
        %3103 = vmatprep.mubr.bf16.mxu0 0
        %3104 = vmatmul.mubr.bf16.gmra.mrb[0].mxu0 %v2651
        %v3105 = vpop.f32.mrb[0].mxu0
        %v3106 = vadd.f32 %v2945, %v3105
        %v3107 = vpop.f32.mrb[0].mxu0
        %v3108 = vpop.f32.mrb[0].mxu0
        %v3109 = vadd.f32 %v2948, %v3108
        %v3110 = vpop.f32.mrb[0].mxu0
        %3111 = vmatprep.mubr.bf16.mxu0 0
        %3112 = vmatmul.mubr.bf16.gmra.mrb[0].mxu0 %v2654
        %v3113 = vpop.f32.mrb[0].mxu0
        %v3114 = vadd.f32 %v2953, %v3113
        %v3115 = vpop.f32.mrb[0].mxu0
        %v3116 = vpop.f32.mrb[0].mxu0
        %v3117 = vadd.f32 %v2956, %v3116
        %v3118 = vpop.f32.mrb[0].mxu0
        %3119 = vmatprep.mubr.bf16.mxu0 0
        %3120 = vmatmul.mubr.bf16.gmra.mrb[0].mxu0 %v2657
        %v3121 = vpop.f32.mrb[0].mxu0
        %v3122 = vadd.f32 %v2961, %v3121
        %v3123 = vpop.f32.mrb[0].mxu0
        %v3124 = vpop.f32.mrb[0].mxu0
        %v3125 = vadd.f32 %v2964, %v3124
        %v3126 = vpop.f32.mrb[0].mxu0
        %3127 = vmatprep.mubr.bf16.mxu0 0
        %3128 = vmatmul.mubr.bf16.gmra.mrb[0].mxu0 %v2660
        %v3129 = vpop.f32.mrb[0].mxu0
        %v3130 = vadd.f32 %v2969, %v3129
        %v3131 = vpop.f32.mrb[0].mxu0
        %v3132 = vpop.f32.mrb[0].mxu0
        %v3133 = vadd.f32 %v2972, %v3132
        %v3134 = vpop.f32.mrb[0].mxu0
        %3135 = vmatprep.mubr.bf16.mxu0 0
        %3136 = vmatmul.mubr.bf16.gmra.mrb[0].mxu0 %v2663
        %v3137 = vpop.f32.mrb[0].mxu0
        %v3138 = vadd.f32 %v2977, %v3137
        %v3139 = vpop.f32.mrb[0].mxu0
        %v3140 = vpop.f32.mrb[0].mxu0
        %v3141 = vadd.f32 %v2980, %v3140
        %v3142 = vpop.f32.mrb[0].mxu0
        %3143 = vmatprep.mubr.bf16.mxu0 0
        %3144 = vmatmul.mubr.bf16.gmra.mrb[0].mxu0 %v2666
        %v3145 = vpop.f32.mrb[0].mxu0
        %v3146 = vadd.f32 %v2985, %v3145
        %v3147 = vpop.f32.mrb[0].mxu0
        %v3148 = vpop.f32.mrb[0].mxu0
        %v3149 = vadd.f32 %v2988, %v3148
        %v3150 = vpop.f32.mrb[0].mxu0
        %3151 = vmatprep.mubr.bf16.mxu0 0
        %3152 = vmatmul.mubr.bf16.gmra.mrb[0].mxu0 %v2669
        %v3153 = vpop.f32.mrb[0].mxu0
        %v3154 = vadd.f32 %v2993, %v3153
        %v3155 = vpop.f32.mrb[0].mxu0
        %v3156 = vpop.f32.mrb[0].mxu0
        %v3157 = vadd.f32 %v2996, %v3156
        %v3158 = vpop.f32.mrb[0].mxu0
        %3159 = vmatprep.mubr.bf16.mxu0 0
        %3160 = vmatmul.mubr.bf16.gmra.mrb[0].mxu0 %v2672
        %v3161 = vpop.f32.mrb[0].mxu0
        %v3162 = vadd.f32 %v3001, %v3161
        %v3163 = vpop.f32.mrb[0].mxu0
        %v3164 = vpop.f32.mrb[0].mxu0
        %v3165 = vadd.f32 %v3004, %v3164
        %v3166 = vpop.f32.mrb[0].mxu0
        %3167 = vmatprep.mubr.bf16.mxu0 0
        %3168 = vmatmul.mubr.bf16.gmra.mrb[0].mxu0 %v2675
        %v3169 = vpop.f32.mrb[0].mxu0
        %v3170 = vadd.f32 %v3009, %v3169
        %v3171 = vpop.f32.mrb[0].mxu0
        %v3172 = vpop.f32.mrb[0].mxu0
        %v3173 = vadd.f32 %v3012, %v3172
        %v3174 = vpop.f32.mrb[0].mxu0
        %3175 = vmatprep.mubr.bf16.mxu0 0
        %3176 = vmatmul.mubr.bf16.gmra.mrb[0].mxu0 %v2678
        %v3177 = vpop.f32.mrb[0].mxu0
        %v3178 = vadd.f32 %v3017, %v3177
        %v3179 = vpop.f32.mrb[0].mxu0
        %v3180 = vpop.f32.mrb[0].mxu0
        %v3181 = vadd.f32 %v3020, %v3180
        %v3182 = vpop.f32.mrb[0].mxu0
        %3183 = vmatprep.mubr.bf16.mxu0 0
        %3184 = vmatmul.mubr.bf16.gmra.mrb[0].mxu0 %v2681
        %v3185 = vpop.f32.mrb[0].mxu0
        %v3186 = vadd.f32 %v3025, %v3185
        %v3187 = vpop.f32.mrb[0].mxu0
        %v3188 = vpop.f32.mrb[0].mxu0
        %v3189 = vadd.f32 %v3028, %v3188
        %v3190 = vpop.f32.mrb[0].mxu0
        %3191 = vmatprep.mubr.bf16.mxu0 0
        %3192 = vmatmul.mubr.bf16.gmra.mrb[0].mxu0 %v2684
        %v3193 = vpop.f32.mrb[0].mxu0
        %v3194 = vadd.f32 %v3033, %v3193
        %v3195 = vpop.f32.mrb[0].mxu0
        %v3196 = vpop.f32.mrb[0].mxu0
        %v3197 = vadd.f32 %v3036, %v3196
        %v3198 = vpop.f32.mrb[0].mxu0
        %3199 = vdwg.mxu0
        %v3200 = vadd.f32 %v2511, %v3074
        %v3201 = vadd.f32 %v2514, %v3077
        %v3202 = vadd.f32 %v2519, %v3082
        %v3203 = vadd.f32 %v2522, %v3085
        %v3204 = vadd.f32 %v2527, %v3090
        %v3205 = vadd.f32 %v2530, %v3093
        %v3206 = vadd.f32 %v2535, %v3098
        %v3207 = vadd.f32 %v2538, %v3101
        %v3208 = vadd.f32 %v2543, %v3106
        %v3209 = vadd.f32 %v2546, %v3109
        %v3210 = vadd.f32 %v2551, %v3114
        %v3211 = vadd.f32 %v2554, %v3117
        %v3212 = vadd.f32 %v2559, %v3122
        %v3213 = vadd.f32 %v2562, %v3125
        %v3214 = vadd.f32 %v2567, %v3130
        %v3215 = vadd.f32 %v2570, %v3133
        %v3216 = vadd.f32 %v2575, %v3138
        %v3217 = vadd.f32 %v2578, %v3141
        %v3218 = vadd.f32 %v2583, %v3146
        %v3219 = vadd.f32 %v2586, %v3149
        %v3220 = vadd.f32 %v2591, %v3154
        %v3221 = vadd.f32 %v2594, %v3157
        %v3222 = vadd.f32 %v2599, %v3162
        %v3223 = vadd.f32 %v2602, %v3165
        %v3224 = vadd.f32 %v2607, %v3170
        %v3225 = vadd.f32 %v2610, %v3173
        %v3226 = vadd.f32 %v2615, %v3178
        %v3227 = vadd.f32 %v2618, %v3181
        %v3228 = vadd.f32 %v2623, %v3186
        %v3229 = vadd.f32 %v2626, %v3189
        %v3230 = vadd.f32 %v2631, %v3194
        %v3231 = vadd.f32 %v2634, %v3197
        %v3232 = vld [vmem:[%s497] sm:$0x1]
        %v3234 = vlaneseq
        %v3235 = vshrl.u32 %v3234, 7
        %v3236 = vsub.s32 0, %v3235
        %v3237 = vrot.slane %v3232, %v3236
        %v3239 = vmul.f32 %v3200, %v3237
        %v3240 = vmul.f32 %v3201, %v3237
        %v3241 = vmul.f32 %v3202, %v3237
        %v3242 = vmul.f32 %v3203, %v3237
        %v3243 = vmul.f32 %v3204, %v3237
        %v3244 = vmul.f32 %v3205, %v3237
        %v3245 = vmul.f32 %v3206, %v3237
        %v3246 = vmul.f32 %v3207, %v3237
        %v3247 = vmul.f32 %v3208, %v3237
        %v3248 = vmul.f32 %v3209, %v3237
        %v3249 = vmul.f32 %v3210, %v3237
        %v3250 = vmul.f32 %v3211, %v3237
        %v3251 = vmul.f32 %v3212, %v3237
        %v3252 = vmul.f32 %v3213, %v3237
        %v3253 = vmul.f32 %v3214, %v3237
        %v3254 = vmul.f32 %v3215, %v3237
        %v3255 = vmul.f32 %v3216, %v3237
        %v3256 = vmul.f32 %v3217, %v3237
        %v3257 = vmul.f32 %v3218, %v3237
        %v3258 = vmul.f32 %v3219, %v3237
        %v3259 = vmul.f32 %v3220, %v3237
        %v3260 = vmul.f32 %v3221, %v3237
        %v3261 = vmul.f32 %v3222, %v3237
        %v3262 = vmul.f32 %v3223, %v3237
        %v3263 = vmul.f32 %v3224, %v3237
        %v3264 = vmul.f32 %v3225, %v3237
        %v3265 = vmul.f32 %v3226, %v3237
        %v3266 = vmul.f32 %v3227, %v3237
        %v3267 = vmul.f32 %v3228, %v3237
        %v3268 = vmul.f32 %v3229, %v3237
        %v3269 = vmul.f32 %v3230, %v3237
        %v3270 = vmul.f32 %v3231, %v3237
        %v3271 = vld [vmem:[%s500] sm:$0x1]
        %v3273 = vlaneseq
        %v3274 = vshrl.u32 %v3273, 7
        %v3275 = vsub.s32 0, %v3274
        %v3276 = vrot.slane %v3271, %v3275
        %v3278 = vadd.f32 %v3239, %v3276
        %v3279 = vadd.f32 %v3240, %v3276
        %v3280 = vadd.f32 %v3241, %v3276
        %v3281 = vadd.f32 %v3242, %v3276
        %v3282 = vadd.f32 %v3243, %v3276
        %v3283 = vadd.f32 %v3244, %v3276
        %v3284 = vadd.f32 %v3245, %v3276
        %v3285 = vadd.f32 %v3246, %v3276
        %v3286 = vadd.f32 %v3247, %v3276
        %v3287 = vadd.f32 %v3248, %v3276
        %v3288 = vadd.f32 %v3249, %v3276
        %v3289 = vadd.f32 %v3250, %v3276
        %v3290 = vadd.f32 %v3251, %v3276
        %v3291 = vadd.f32 %v3252, %v3276
        %v3292 = vadd.f32 %v3253, %v3276
        %v3293 = vadd.f32 %v3254, %v3276
        %v3294 = vadd.f32 %v3255, %v3276
        %v3295 = vadd.f32 %v3256, %v3276
        %v3296 = vadd.f32 %v3257, %v3276
        %v3297 = vadd.f32 %v3258, %v3276
        %v3298 = vadd.f32 %v3259, %v3276
        %v3299 = vadd.f32 %v3260, %v3276
        %v3300 = vadd.f32 %v3261, %v3276
        %v3301 = vadd.f32 %v3262, %v3276
        %v3302 = vadd.f32 %v3263, %v3276
        %v3303 = vadd.f32 %v3264, %v3276
        %v3304 = vadd.f32 %v3265, %v3276
        %v3305 = vadd.f32 %v3266, %v3276
        %v3306 = vadd.f32 %v3267, %v3276
        %v3307 = vadd.f32 %v3268, %v3276
        %v3308 = vadd.f32 %v3269, %v3276
        %v3309 = vadd.f32 %v3270, %v3276
        %v3310 = vmax.f32 %v3278, 0.0
        %v3311 = vmax.f32 %v3279, 0.0
        %v3312 = vmax.f32 %v3280, 0.0
        %v3313 = vmax.f32 %v3281, 0.0
        %v3314 = vmax.f32 %v3282, 0.0
        %v3315 = vmax.f32 %v3283, 0.0
        %v3316 = vmax.f32 %v3284, 0.0
        %v3317 = vmax.f32 %v3285, 0.0
        %v3318 = vmax.f32 %v3286, 0.0
        %v3319 = vmax.f32 %v3287, 0.0
        %v3320 = vmax.f32 %v3288, 0.0
        %v3321 = vmax.f32 %v3289, 0.0
        %v3322 = vmax.f32 %v3290, 0.0
        %v3323 = vmax.f32 %v3291, 0.0
        %v3324 = vmax.f32 %v3292, 0.0
        %v3325 = vmax.f32 %v3293, 0.0
        %v3326 = vmax.f32 %v3294, 0.0
        %v3327 = vmax.f32 %v3295, 0.0
        %v3328 = vmax.f32 %v3296, 0.0
        %v3329 = vmax.f32 %v3297, 0.0
        %v3330 = vmax.f32 %v3298, 0.0
        %v3331 = vmax.f32 %v3299, 0.0
        %v3332 = vmax.f32 %v3300, 0.0
        %v3333 = vmax.f32 %v3301, 0.0
        %v3334 = vmax.f32 %v3302, 0.0
        %v3335 = vmax.f32 %v3303, 0.0
        %v3336 = vmax.f32 %v3304, 0.0
        %v3337 = vmax.f32 %v3305, 0.0
        %v3338 = vmax.f32 %v3306, 0.0
        %v3339 = vmax.f32 %v3307, 0.0
        %v3340 = vmax.f32 %v3308, 0.0
        %v3341 = vmax.f32 %v3309, 0.0
        %3342 = vst [vmem:[#allocation3] sm:$0xff] 0
        %3343 = vst [vmem:[#allocation3 + $0x8] sm:$0xff] 0
        %3344 = vst [vmem:[#allocation3 + $0x10] sm:$0xff] 0
        %3345 = vst [vmem:[#allocation3 + $0x198] sm:$0xff] 0
        %3346 = vst [vmem:[#allocation3 + $0x1a0] sm:$0xff] 0
        %3347 = vst [vmem:[#allocation3 + $0x1a8] sm:$0xff] 0
        %v3348 = vrot.slane %v3310, 7
        %v3349 = vrot.slane %v3311, 7
        %v3350 = vrot.slane %v3312, 7
        %v3351 = vrot.slane %v3313, 7
        %v3352 = vrot.slane %v3314, 7
        %v3353 = vrot.slane %v3315, 7
        %v3354 = vrot.slane %v3316, 7
        %v3355 = vrot.slane %v3317, 7
        %v3356 = vrot.slane %v3318, 7
        %v3357 = vrot.slane %v3319, 7
        %v3358 = vrot.slane %v3320, 7
        %v3359 = vrot.slane %v3321, 7
        %v3360 = vrot.slane %v3322, 7
        %v3361 = vrot.slane %v3323, 7
        %v3362 = vrot.slane %v3324, 7
        %v3363 = vrot.slane %v3325, 7
        %v3364 = vrot.slane %v3326, 7
        %v3365 = vrot.slane %v3327, 7
        %v3366 = vrot.slane %v3328, 7
        %v3367 = vrot.slane %v3329, 7
        %v3368 = vrot.slane %v3330, 7
        %v3369 = vrot.slane %v3331, 7
        %v3370 = vrot.slane %v3332, 7
        %v3371 = vrot.slane %v3333, 7
        %v3372 = vrot.slane %v3334, 7
        %v3373 = vrot.slane %v3335, 7
        %v3374 = vrot.slane %v3336, 7
        %v3375 = vrot.slane %v3337, 7
        %v3376 = vrot.slane %v3338, 7
        %v3377 = vrot.slane %v3339, 7
        %v3378 = vrot.slane %v3340, 7
        %v3379 = vrot.slane %v3341, 7
        %v3380 = vsel %vm1091, %v3378, %v3379
        %v3381 = vsel %vm1091, %v3377, %v3378
        %v3382 = vsel %vm1091, %v3376, %v3377
        %v3383 = vsel %vm1091, %v3375, %v3376
        %v3384 = vsel %vm1091, %v3374, %v3375
        %v3385 = vsel %vm1091, %v3373, %v3374
        %v3386 = vsel %vm1091, %v3372, %v3373
        %v3387 = vsel %vm1091, %v3371, %v3372
        %v3388 = vsel %vm1091, %v3370, %v3371
        %v3389 = vsel %vm1091, %v3369, %v3370
        %v3390 = vsel %vm1091, %v3368, %v3369
        %v3391 = vsel %vm1091, %v3367, %v3368
        %v3392 = vsel %vm1091, %v3366, %v3367
        %v3393 = vsel %vm1091, %v3365, %v3366
        %v3394 = vsel %vm1091, %v3364, %v3365
        %v3395 = vsel %vm1091, %v3363, %v3364
        %v3396 = vsel %vm1091, %v3362, %v3363
        %v3397 = vsel %vm1091, %v3361, %v3362
        %v3398 = vsel %vm1091, %v3360, %v3361
        %v3399 = vsel %vm1091, %v3359, %v3360
        %v3400 = vsel %vm1091, %v3358, %v3359
        %v3401 = vsel %vm1091, %v3357, %v3358
        %v3402 = vsel %vm1091, %v3356, %v3357
        %v3403 = vsel %vm1091, %v3355, %v3356
        %v3404 = vsel %vm1091, %v3354, %v3355
        %v3405 = vsel %vm1091, %v3353, %v3354
        %v3406 = vsel %vm1091, %v3352, %v3353
        %v3407 = vsel %vm1091, %v3351, %v3352
        %v3408 = vsel %vm1091, %v3350, %v3351
        %v3409 = vsel %vm1091, %v3349, %v3350
        %v3410 = vsel %vm1091, %v3348, %v3349
        %v3411 = vsel %vm1091, %v3379, %v3348
        %v3412 = vsel %vm1156, %v3411, 0.0
        %v3413 = vsel %vm1157, %v3410, 0.0
        %v3414 = vsel %vm1158, %v3409, 0.0
        %v3415 = vsel %vm1159, %v3408, 0.0
        %v3416 = vsel %vm1160, %v3407, 0.0
        %v3417 = vsel %vm1161, %v3406, 0.0
        %v3418 = vsel %vm1162, %v3405, 0.0
        %v3419 = vsel %vm1163, %v3404, 0.0
        %v3420 = vsel %vm1164, %v3403, 0.0
        %v3421 = vsel %vm1165, %v3402, 0.0
        %v3422 = vsel %vm1166, %v3401, 0.0
        %v3423 = vsel %vm1167, %v3400, 0.0
        %v3424 = vsel %vm1168, %v3399, 0.0
        %v3425 = vsel %vm1169, %v3398, 0.0
        %v3426 = vsel %vm1170, %v3397, 0.0
        %v3427 = vsel %vm1171, %v3396, 0.0
        %v3428 = vsel %vm1172, %v3395, 0.0
        %v3429 = vsel %vm1173, %v3394, 0.0
        %v3430 = vsel %vm1174, %v3393, 0.0
        %v3431 = vsel %vm1175, %v3392, 0.0
        %v3432 = vsel %vm1176, %v3391, 0.0
        %v3433 = vsel %vm1177, %v3390, 0.0
        %v3434 = vsel %vm1178, %v3389, 0.0
        %v3435 = vsel %vm1179, %v3388, 0.0
        %v3436 = vsel %vm1180, %v3387, 0.0
        %v3437 = vsel %vm1181, %v3386, 0.0
        %v3438 = vsel %vm1182, %v3385, 0.0
        %v3439 = vsel %vm1183, %v3384, 0.0
        %v3440 = vsel %vm1184, %v3383, 0.0
        %v3441 = vsel %vm1185, %v3382, 0.0
        %v3442 = vsel %vm1186, %v3381, 0.0
        %v3443 = vsel %vm1187, %v3380, 0.0
        %v3444 = vrot.slane %v3310, 1
        %v3445 = vrot.slane %v3311, 1
        %v3446 = vrot.slane %v3312, 1
        %v3447 = vrot.slane %v3313, 1
        %v3448 = vrot.slane %v3314, 1
        %v3449 = vrot.slane %v3315, 1
        %v3450 = vrot.slane %v3316, 1
        %v3451 = vrot.slane %v3317, 1
        %v3452 = vrot.slane %v3318, 1
        %v3453 = vrot.slane %v3319, 1
        %v3454 = vrot.slane %v3320, 1
        %v3455 = vrot.slane %v3321, 1
        %v3456 = vrot.slane %v3322, 1
        %v3457 = vrot.slane %v3323, 1
        %v3458 = vrot.slane %v3324, 1
        %v3459 = vrot.slane %v3325, 1
        %v3460 = vrot.slane %v3326, 1
        %v3461 = vrot.slane %v3327, 1
        %v3462 = vrot.slane %v3328, 1
        %v3463 = vrot.slane %v3329, 1
        %v3464 = vrot.slane %v3330, 1
        %v3465 = vrot.slane %v3331, 1
        %v3466 = vrot.slane %v3332, 1
        %v3467 = vrot.slane %v3333, 1
        %v3468 = vrot.slane %v3334, 1
        %v3469 = vrot.slane %v3335, 1
        %v3470 = vrot.slane %v3336, 1
        %v3471 = vrot.slane %v3337, 1
        %v3472 = vrot.slane %v3338, 1
        %v3473 = vrot.slane %v3339, 1
        %v3474 = vrot.slane %v3340, 1
        %v3475 = vrot.slane %v3341, 1
        %v3476 = vsel %vm1252, %v3474, %v3475
        %v3477 = vsel %vm1252, %v3473, %v3474
        %v3478 = vsel %vm1252, %v3472, %v3473
        %v3479 = vsel %vm1252, %v3471, %v3472
        %v3480 = vsel %vm1252, %v3470, %v3471
        %v3481 = vsel %vm1252, %v3469, %v3470
        %v3482 = vsel %vm1252, %v3468, %v3469
        %v3483 = vsel %vm1252, %v3467, %v3468
        %v3484 = vsel %vm1252, %v3466, %v3467
        %v3485 = vsel %vm1252, %v3465, %v3466
        %v3486 = vsel %vm1252, %v3464, %v3465
        %v3487 = vsel %vm1252, %v3463, %v3464
        %v3488 = vsel %vm1252, %v3462, %v3463
        %v3489 = vsel %vm1252, %v3461, %v3462
        %v3490 = vsel %vm1252, %v3460, %v3461
        %v3491 = vsel %vm1252, %v3459, %v3460
        %v3492 = vsel %vm1252, %v3458, %v3459
        %v3493 = vsel %vm1252, %v3457, %v3458
        %v3494 = vsel %vm1252, %v3456, %v3457
        %v3495 = vsel %vm1252, %v3455, %v3456
        %v3496 = vsel %vm1252, %v3454, %v3455
        %v3497 = vsel %vm1252, %v3453, %v3454
        %v3498 = vsel %vm1252, %v3452, %v3453
        %v3499 = vsel %vm1252, %v3451, %v3452
        %v3500 = vsel %vm1252, %v3450, %v3451
        %v3501 = vsel %vm1252, %v3449, %v3450
        %v3502 = vsel %vm1252, %v3448, %v3449
        %v3503 = vsel %vm1252, %v3447, %v3448
        %v3504 = vsel %vm1252, %v3446, %v3447
        %v3505 = vsel %vm1252, %v3445, %v3446
        %v3506 = vsel %vm1252, %v3444, %v3445
        %v3507 = vsel %vm1252, %v3475, %v3444
        %v3508 = vsel %vm1317, %v3506, 0.0
        %v3509 = vsel %vm1318, %v3505, 0.0
        %v3510 = vsel %vm1319, %v3504, 0.0
        %v3511 = vsel %vm1320, %v3503, 0.0
        %v3512 = vsel %vm1321, %v3502, 0.0
        %v3513 = vsel %vm1322, %v3501, 0.0
        %v3514 = vsel %vm1323, %v3500, 0.0
        %v3515 = vsel %vm1324, %v3499, 0.0
        %v3516 = vsel %vm1325, %v3498, 0.0
        %v3517 = vsel %vm1326, %v3497, 0.0
        %v3518 = vsel %vm1327, %v3496, 0.0
        %v3519 = vsel %vm1328, %v3495, 0.0
        %v3520 = vsel %vm1329, %v3494, 0.0
        %v3521 = vsel %vm1330, %v3493, 0.0
        %v3522 = vsel %vm1331, %v3492, 0.0
        %v3523 = vsel %vm1332, %v3491, 0.0
        %v3524 = vsel %vm1333, %v3490, 0.0
        %v3525 = vsel %vm1334, %v3489, 0.0
        %v3526 = vsel %vm1335, %v3488, 0.0
        %v3527 = vsel %vm1336, %v3487, 0.0
        %v3528 = vsel %vm1337, %v3486, 0.0
        %v3529 = vsel %vm1338, %v3485, 0.0
        %v3530 = vsel %vm1339, %v3484, 0.0
        %v3531 = vsel %vm1340, %v3483, 0.0
        %v3532 = vsel %vm1341, %v3482, 0.0
        %v3533 = vsel %vm1342, %v3481, 0.0
        %v3534 = vsel %vm1343, %v3480, 0.0
        %v3535 = vsel %vm1344, %v3479, 0.0
        %v3536 = vsel %vm1345, %v3478, 0.0
        %v3537 = vsel %vm1346, %v3477, 0.0
        %v3538 = vsel %vm1347, %v3476, 0.0
        %v3539 = vsel %vm1348, %v3507, 0.0
        %v3540 = vpack.c.bf16 %v3413, %v3412
        %v3541 = vpack.c.bf16 %v3415, %v3414
        %v3542 = vpack.c.bf16 %v3417, %v3416
        %v3543 = vpack.c.bf16 %v3419, %v3418
        %v3544 = vpack.c.bf16 %v3421, %v3420
        %v3545 = vpack.c.bf16 %v3423, %v3422
        %v3546 = vpack.c.bf16 %v3425, %v3424
        %v3547 = vpack.c.bf16 %v3427, %v3426
        %v3548 = vpack.c.bf16 %v3429, %v3428
        %v3549 = vpack.c.bf16 %v3431, %v3430
        %v3550 = vpack.c.bf16 %v3433, %v3432
        %v3551 = vpack.c.bf16 %v3435, %v3434
        %v3552 = vpack.c.bf16 %v3437, %v3436
        %v3553 = vpack.c.bf16 %v3439, %v3438
        %v3554 = vpack.c.bf16 %v3441, %v3440
        %v3555 = vpack.c.bf16 %v3443, %v3442
        %3556 = vst [vmem:[#allocation3 + $0x18] sm:$0xff] %v3540
        %3557 = vst [vmem:[#allocation3 + $0x30] sm:$0xff] %v3541
        %3558 = vst [vmem:[#allocation3 + $0x48] sm:$0xff] %v3542
        %3559 = vst [vmem:[#allocation3 + $0x60] sm:$0xff] %v3543
        %3560 = vst [vmem:[#allocation3 + $0x78] sm:$0xff] %v3544
        %3561 = vst [vmem:[#allocation3 + $0x90] sm:$0xff] %v3545
        %3562 = vst [vmem:[#allocation3 + $0xa8] sm:$0xff] %v3546
        %3563 = vst [vmem:[#allocation3 + $0xc0] sm:$0xff] %v3547
        %3564 = vst [vmem:[#allocation3 + $0xd8] sm:$0xff] %v3548
        %3565 = vst [vmem:[#allocation3 + $0xf0] sm:$0xff] %v3549
        %3566 = vst [vmem:[#allocation3 + $0x108] sm:$0xff] %v3550
        %3567 = vst [vmem:[#allocation3 + $0x120] sm:$0xff] %v3551
        %3568 = vst [vmem:[#allocation3 + $0x138] sm:$0xff] %v3552
        %3569 = vst [vmem:[#allocation3 + $0x150] sm:$0xff] %v3553
        %3570 = vst [vmem:[#allocation3 + $0x168] sm:$0xff] %v3554
        %3571 = vst [vmem:[#allocation3 + $0x180] sm:$0xff] %v3555
        %v3572 = vpack.c.bf16 %v3311, %v3310
        %v3573 = vpack.c.bf16 %v3313, %v3312
        %v3574 = vpack.c.bf16 %v3315, %v3314
        %v3575 = vpack.c.bf16 %v3317, %v3316
        %v3576 = vpack.c.bf16 %v3319, %v3318
        %v3577 = vpack.c.bf16 %v3321, %v3320
        %v3578 = vpack.c.bf16 %v3323, %v3322
        %v3579 = vpack.c.bf16 %v3325, %v3324
        %v3580 = vpack.c.bf16 %v3327, %v3326
        %v3581 = vpack.c.bf16 %v3329, %v3328
        %v3582 = vpack.c.bf16 %v3331, %v3330
        %v3583 = vpack.c.bf16 %v3333, %v3332
        %v3584 = vpack.c.bf16 %v3335, %v3334
        %v3585 = vpack.c.bf16 %v3337, %v3336
        %v3586 = vpack.c.bf16 %v3339, %v3338
        %v3587 = vpack.c.bf16 %v3341, %v3340
        %3588 = vst [vmem:[#allocation3 + $0x20] sm:$0xff] %v3572
        %3589 = vst [vmem:[#allocation3 + $0x38] sm:$0xff] %v3573
        %3590 = vst [vmem:[#allocation3 + $0x50] sm:$0xff] %v3574
        %3591 = vst [vmem:[#allocation3 + $0x68] sm:$0xff] %v3575
        %3592 = vst [vmem:[#allocation3 + $0x80] sm:$0xff] %v3576
        %3593 = vst [vmem:[#allocation3 + $0x98] sm:$0xff] %v3577
        %3594 = vst [vmem:[#allocation3 + $0xb0] sm:$0xff] %v3578
        %3595 = vst [vmem:[#allocation3 + $0xc8] sm:$0xff] %v3579
        %3596 = vst [vmem:[#allocation3 + $0xe0] sm:$0xff] %v3580
        %3597 = vst [vmem:[#allocation3 + $0xf8] sm:$0xff] %v3581
        %3598 = vst [vmem:[#allocation3 + $0x110] sm:$0xff] %v3582
        %3599 = vst [vmem:[#allocation3 + $0x128] sm:$0xff] %v3583
        %3600 = vst [vmem:[#allocation3 + $0x140] sm:$0xff] %v3584
        %3601 = vst [vmem:[#allocation3 + $0x158] sm:$0xff] %v3585
        %3602 = vst [vmem:[#allocation3 + $0x170] sm:$0xff] %v3586
        %3603 = vst [vmem:[#allocation3 + $0x188] sm:$0xff] %v3587
        %v3604 = vpack.c.bf16 %v3509, %v3508
        %v3605 = vpack.c.bf16 %v3511, %v3510
        %v3606 = vpack.c.bf16 %v3513, %v3512
        %v3607 = vpack.c.bf16 %v3515, %v3514
        %v3608 = vpack.c.bf16 %v3517, %v3516
        %v3609 = vpack.c.bf16 %v3519, %v3518
        %v3610 = vpack.c.bf16 %v3521, %v3520
        %v3611 = vpack.c.bf16 %v3523, %v3522
        %v3612 = vpack.c.bf16 %v3525, %v3524
        %v3613 = vpack.c.bf16 %v3527, %v3526
        %v3614 = vpack.c.bf16 %v3529, %v3528
        %v3615 = vpack.c.bf16 %v3531, %v3530
        %v3616 = vpack.c.bf16 %v3533, %v3532
        %v3617 = vpack.c.bf16 %v3535, %v3534
        %v3618 = vpack.c.bf16 %v3537, %v3536
        %v3619 = vpack.c.bf16 %v3539, %v3538
        %3620 = vst [vmem:[#allocation3 + $0x28] sm:$0xff] %v3604
        %3621 = vst [vmem:[#allocation3 + $0x40] sm:$0xff] %v3605
        %3622 = vst [vmem:[#allocation3 + $0x58] sm:$0xff] %v3606
        %3623 = vst [vmem:[#allocation3 + $0x70] sm:$0xff] %v3607
        %3624 = vst [vmem:[#allocation3 + $0x88] sm:$0xff] %v3608
        %3625 = vst [vmem:[#allocation3 + $0xa0] sm:$0xff] %v3609
        %3626 = vst [vmem:[#allocation3 + $0xb8] sm:$0xff] %v3610
        %3627 = vst [vmem:[#allocation3 + $0xd0] sm:$0xff] %v3611
        %3628 = vst [vmem:[#allocation3 + $0xe8] sm:$0xff] %v3612
        %3629 = vst [vmem:[#allocation3 + $0x100] sm:$0xff] %v3613
        %3630 = vst [vmem:[#allocation3 + $0x118] sm:$0xff] %v3614
        %3631 = vst [vmem:[#allocation3 + $0x130] sm:$0xff] %v3615
        %3632 = vst [vmem:[#allocation3 + $0x148] sm:$0xff] %v3616
        %3633 = vst [vmem:[#allocation3 + $0x160] sm:$0xff] %v3617
        %3634 = vst [vmem:[#allocation3 + $0x178] sm:$0xff] %v3618
        %3635 = vst [vmem:[#allocation3 + $0x190] sm:$0xff] %v3619
        %v3636 = vld [vmem:[#allocation3] sm:$0xff]
        %v3637 = vld [vmem:[#allocation3 + $0x8] sm:$0xff]
        %v3638 = vld [vmem:[#allocation3 + $0x10] sm:$0xff]
        %v3639 = vld [vmem:[#allocation3 + $0x18] sm:$0xff]
        %v3640 = vld [vmem:[#allocation3 + $0x20] sm:$0xff]
        %v3641 = vld [vmem:[#allocation3 + $0x28] sm:$0xff]
        %v3642 = vld [vmem:[#allocation3 + $0x30] sm:$0xff]
        %v3643 = vld [vmem:[#allocation3 + $0x38] sm:$0xff]
        %v3644 = vld [vmem:[#allocation3 + $0x40] sm:$0xff]
        %v3645 = vld [vmem:[#allocation3 + $0x48] sm:$0xff]
        %v3646 = vld [vmem:[#allocation3 + $0x50] sm:$0xff]
        %v3647 = vld [vmem:[#allocation3 + $0x58] sm:$0xff]
        %v3648 = vld [vmem:[#allocation3 + $0x60] sm:$0xff]
        %v3649 = vld [vmem:[#allocation3 + $0x68] sm:$0xff]
        %v3650 = vld [vmem:[#allocation3 + $0x70] sm:$0xff]
        %v3651 = vld [vmem:[#allocation3 + $0x78] sm:$0xff]
        %v3652 = vld [vmem:[#allocation3 + $0x80] sm:$0xff]
        %v3653 = vld [vmem:[#allocation3 + $0x88] sm:$0xff]
        %v3654 = vld [vmem:[#allocation3 + $0x90] sm:$0xff]
        %v3655 = vld [vmem:[#allocation3 + $0x98] sm:$0xff]
        %v3656 = vld [vmem:[#allocation3 + $0xa0] sm:$0xff]
        %v3657 = vld [vmem:[#allocation3 + $0xa8] sm:$0xff]
        %v3658 = vld [vmem:[#allocation3 + $0xb0] sm:$0xff]
        %v3659 = vld [vmem:[#allocation3 + $0xb8] sm:$0xff]
        %v3660 = vld [vmem:[#allocation3 + $0xc0] sm:$0xff]
        %v3661 = vld [vmem:[#allocation3 + $0xc8] sm:$0xff]
        %v3662 = vld [vmem:[#allocation3 + $0xd0] sm:$0xff]
        %v3663 = vld [vmem:[#allocation3 + $0xd8] sm:$0xff]
        %v3664 = vld [vmem:[#allocation3 + $0xe0] sm:$0xff]
        %v3665 = vld [vmem:[#allocation3 + $0xe8] sm:$0xff]
        %v3666 = vld [vmem:[#allocation3 + $0xf0] sm:$0xff]
        %v3667 = vld [vmem:[#allocation3 + $0xf8] sm:$0xff]
        %v3668 = vld [vmem:[#allocation3 + $0x100] sm:$0xff]
        %v3669 = vld [vmem:[#allocation3 + $0x108] sm:$0xff]
        %v3670 = vld [vmem:[#allocation3 + $0x110] sm:$0xff]
        %v3671 = vld [vmem:[#allocation3 + $0x118] sm:$0xff]
        %v3672 = vld [vmem:[#allocation3 + $0x120] sm:$0xff]
        %v3673 = vld [vmem:[#allocation3 + $0x128] sm:$0xff]
        %v3674 = vld [vmem:[#allocation3 + $0x130] sm:$0xff]
        %v3675 = vld [vmem:[#allocation3 + $0x138] sm:$0xff]
        %v3676 = vld [vmem:[#allocation3 + $0x140] sm:$0xff]
        %v3677 = vld [vmem:[#allocation3 + $0x148] sm:$0xff]
        %v3678 = vld [vmem:[#allocation3 + $0x150] sm:$0xff]
        %v3679 = vld [vmem:[#allocation3 + $0x158] sm:$0xff]
        %v3680 = vld [vmem:[#allocation3 + $0x160] sm:$0xff]
        %v3681 = vld [vmem:[#allocation3 + $0x168] sm:$0xff]
        %v3682 = vld [vmem:[#allocation3 + $0x170] sm:$0xff]
        %v3683 = vld [vmem:[#allocation3 + $0x178] sm:$0xff]
        %v3684 = vld [vmem:[#allocation9] sm:$0xf]
        %v3685 = vld [vmem:[#allocation9 + $0x4] sm:$0xf]
        %v3686 = vld [vmem:[#allocation9 + $0x8] sm:$0xf]
        %v3687 = vld [vmem:[#allocation9 + $0xc] sm:$0xf]
        %v3688 = vld [vmem:[#allocation9 + $0x10] sm:$0xf]
        %v3689 = vld [vmem:[#allocation9 + $0x14] sm:$0xf]
        %v3690 = vld [vmem:[#allocation9 + $0x18] sm:$0xf]
        %v3691 = vld [vmem:[#allocation9 + $0x1c] sm:$0xf]
        %v3692 = vld [vmem:[#allocation9 + $0x20] sm:$0xf]
        %v3693 = vld [vmem:[#allocation9 + $0x24] sm:$0xf]
        %v3694 = vld [vmem:[#allocation9 + $0x28] sm:$0xf]
        %v3695 = vld [vmem:[#allocation9 + $0x2c] sm:$0xf]
        %v3696 = vld [vmem:[#allocation9 + $0x30] sm:$0xf]
        %v3697 = vld [vmem:[#allocation9 + $0x34] sm:$0xf]
        %v3698 = vld [vmem:[#allocation9 + $0x38] sm:$0xf]
        %v3699 = vld [vmem:[#allocation9 + $0x3c] sm:$0xf]
        %v3700 = vld [vmem:[#allocation9 + $0x40] sm:$0xf]
        %v3701 = vld [vmem:[#allocation9 + $0x44] sm:$0xf]
        %v3702 = vld [vmem:[#allocation9 + $0x48] sm:$0xf]
        %v3703 = vld [vmem:[#allocation9 + $0x4c] sm:$0xf]
        %v3704 = vld [vmem:[#allocation9 + $0x50] sm:$0xf]
        %v3705 = vld [vmem:[#allocation9 + $0x54] sm:$0xf]
        %v3706 = vld [vmem:[#allocation9 + $0x58] sm:$0xf]
        %v3707 = vld [vmem:[#allocation9 + $0x5c] sm:$0xf]
        %v3708 = vld [vmem:[#allocation9 + $0x60] sm:$0xf]
        %v3709 = vld [vmem:[#allocation9 + $0x64] sm:$0xf]
        %v3710 = vld [vmem:[#allocation9 + $0x68] sm:$0xf]
        %v3711 = vld [vmem:[#allocation9 + $0x6c] sm:$0xf]
        %v3712 = vld [vmem:[#allocation9 + $0x70] sm:$0xf]
        %v3713 = vld [vmem:[#allocation9 + $0x74] sm:$0xf]
        %v3714 = vld [vmem:[#allocation9 + $0x78] sm:$0xf]
        %v3715 = vld [vmem:[#allocation9 + $0x7c] sm:$0xf]
        %v3716 = vld [vmem:[#allocation9 + $0x80] sm:$0xf]
        %v3717 = vld [vmem:[#allocation9 + $0x84] sm:$0xf]
        %v3718 = vld [vmem:[#allocation9 + $0x88] sm:$0xf]
        %v3719 = vld [vmem:[#allocation9 + $0x8c] sm:$0xf]
        %v3720 = vld [vmem:[#allocation9 + $0x90] sm:$0xf]
        %v3721 = vld [vmem:[#allocation9 + $0x94] sm:$0xf]
        %v3722 = vld [vmem:[#allocation9 + $0x98] sm:$0xf]
        %v3723 = vld [vmem:[#allocation9 + $0x9c] sm:$0xf]
        %v3724 = vld [vmem:[#allocation9 + $0xa0] sm:$0xf]
        %v3725 = vld [vmem:[#allocation9 + $0xa4] sm:$0xf]
        %v3726 = vld [vmem:[#allocation9 + $0xa8] sm:$0xf]
        %v3727 = vld [vmem:[#allocation9 + $0xac] sm:$0xf]
        %v3728 = vld [vmem:[#allocation9 + $0xb0] sm:$0xf]
        %v3729 = vld [vmem:[#allocation9 + $0xb4] sm:$0xf]
        %v3730 = vld [vmem:[#allocation9 + $0xb8] sm:$0xf]
        %v3731 = vld [vmem:[#allocation9 + $0xbc] sm:$0xf]
        %v3732 = vld [vmem:[#allocation3 + $0x180] sm:$0xff]
        %v3733 = vld [vmem:[#allocation3 + $0x188] sm:$0xff]
        %v3734 = vld [vmem:[#allocation3 + $0x190] sm:$0xff]
        %s3735 = scalar_lea.vmem [#allocation9], 192
        %v3736 = vld [vmem:[%s3735] sm:$0xf]
        %v3737 = vld [vmem:[%s3735 + $0x4] sm:$0xf]
        %v3738 = vld [vmem:[%s3735 + $0x8] sm:$0xf]
        %v3739 = vld [vmem:[%s3735 + $0xc] sm:$0xf]
        %v3740 = vld [vmem:[%s3735 + $0x10] sm:$0xf]
        %v3741 = vld [vmem:[%s3735 + $0x14] sm:$0xf]
        %v3742 = vld [vmem:[%s3735 + $0x18] sm:$0xf]
        %v3743 = vld [vmem:[%s3735 + $0x1c] sm:$0xf]
        %v3744 = vld [vmem:[%s3735 + $0x20] sm:$0xf]
        %v3745 = vld [vmem:[%s3735 + $0x24] sm:$0xf]
        %v3746 = vld [vmem:[%s3735 + $0x28] sm:$0xf]
        %v3747 = vld [vmem:[%s3735 + $0x2c] sm:$0xf]
        %v3748 = vld [vmem:[%s3735 + $0x30] sm:$0xf]
        %v3749 = vld [vmem:[%s3735 + $0x34] sm:$0xf]
        %v3750 = vld [vmem:[%s3735 + $0x38] sm:$0xf]
        %v3751 = vld [vmem:[%s3735 + $0x3c] sm:$0xf]
        %v3752 = vld [vmem:[%s3735 + $0x40] sm:$0xf]
        %v3753 = vld [vmem:[%s3735 + $0x44] sm:$0xf]
        %v3754 = vld [vmem:[%s3735 + $0x48] sm:$0xf]
        %v3755 = vld [vmem:[%s3735 + $0x4c] sm:$0xf]
        %v3756 = vld [vmem:[%s3735 + $0x50] sm:$0xf]
        %v3757 = vld [vmem:[%s3735 + $0x54] sm:$0xf]
        %v3758 = vld [vmem:[%s3735 + $0x58] sm:$0xf]
        %v3759 = vld [vmem:[%s3735 + $0x5c] sm:$0xf]
        %v3760 = vld [vmem:[%s3735 + $0x60] sm:$0xf]
        %v3761 = vld [vmem:[%s3735 + $0x64] sm:$0xf]
        %v3762 = vld [vmem:[%s3735 + $0x68] sm:$0xf]
        %v3763 = vld [vmem:[%s3735 + $0x6c] sm:$0xf]
        %v3764 = vld [vmem:[%s3735 + $0x70] sm:$0xf]
        %v3765 = vld [vmem:[%s3735 + $0x74] sm:$0xf]
        %v3766 = vld [vmem:[%s3735 + $0x78] sm:$0xf]
        %v3767 = vld [vmem:[%s3735 + $0x7c] sm:$0xf]
        %v3768 = vld [vmem:[%s3735 + $0x80] sm:$0xf]
        %v3769 = vld [vmem:[%s3735 + $0x84] sm:$0xf]
        %v3770 = vld [vmem:[%s3735 + $0x88] sm:$0xf]
        %v3771 = vld [vmem:[%s3735 + $0x8c] sm:$0xf]
        %v3772 = vld [vmem:[%s3735 + $0x90] sm:$0xf]
        %v3773 = vld [vmem:[%s3735 + $0x94] sm:$0xf]
        %v3774 = vld [vmem:[%s3735 + $0x98] sm:$0xf]
        %v3775 = vld [vmem:[%s3735 + $0x9c] sm:$0xf]
        %v3776 = vld [vmem:[%s3735 + $0xa0] sm:$0xf]
        %v3777 = vld [vmem:[%s3735 + $0xa4] sm:$0xf]
        %v3778 = vld [vmem:[%s3735 + $0xa8] sm:$0xf]
        %v3779 = vld [vmem:[%s3735 + $0xac] sm:$0xf]
        %v3780 = vld [vmem:[%s3735 + $0xb0] sm:$0xf]
        %v3781 = vld [vmem:[%s3735 + $0xb4] sm:$0xf]
        %v3782 = vld [vmem:[%s3735 + $0xb8] sm:$0xf]
        %v3783 = vld [vmem:[%s3735 + $0xbc] sm:$0xf]
        %v3832 = vunpack.c.l.b16 %v3736
        %v3833 = vunpack.c.l.b16 %v3737
        %v3834 = vunpack.c.l.b16 %v3738
        %v3835 = vunpack.c.l.b16 %v3739
        %v3836 = vunpack.c.l.b16 %v3740
        %v3837 = vunpack.c.l.b16 %v3741
        %v3838 = vunpack.c.l.b16 %v3742
        %v3839 = vunpack.c.l.b16 %v3743
        %v3840 = vunpack.c.l.b16 %v3744
        %v3841 = vunpack.c.l.b16 %v3745
        %v3842 = vunpack.c.l.b16 %v3746
        %v3843 = vunpack.c.l.b16 %v3747
        %v3844 = vunpack.c.l.b16 %v3748
        %v3845 = vunpack.c.l.b16 %v3749
        %v3846 = vunpack.c.l.b16 %v3750
        %v3847 = vunpack.c.l.b16 %v3751
        %v3848 = vunpack.c.l.b16 %v3752
        %v3849 = vunpack.c.l.b16 %v3753
        %v3850 = vunpack.c.l.b16 %v3754
        %v3851 = vunpack.c.l.b16 %v3755
        %v3852 = vunpack.c.l.b16 %v3756
        %v3853 = vunpack.c.l.b16 %v3757
        %v3854 = vunpack.c.l.b16 %v3758
        %v3855 = vunpack.c.l.b16 %v3759
        %v3856 = vunpack.c.l.b16 %v3760
        %v3857 = vunpack.c.l.b16 %v3761
        %v3858 = vunpack.c.l.b16 %v3762
        %v3859 = vunpack.c.l.b16 %v3763
        %v3860 = vunpack.c.l.b16 %v3764
        %v3861 = vunpack.c.l.b16 %v3765
        %v3862 = vunpack.c.l.b16 %v3766
        %v3863 = vunpack.c.l.b16 %v3767
        %v3864 = vunpack.c.l.b16 %v3768
        %v3865 = vunpack.c.l.b16 %v3769
        %v3866 = vunpack.c.l.b16 %v3770
        %v3867 = vunpack.c.l.b16 %v3771
        %v3868 = vunpack.c.l.b16 %v3772
        %v3869 = vunpack.c.l.b16 %v3773
        %v3870 = vunpack.c.l.b16 %v3774
        %v3871 = vunpack.c.l.b16 %v3775
        %v3872 = vunpack.c.l.b16 %v3776
        %v3873 = vunpack.c.l.b16 %v3777
        %v3874 = vunpack.c.l.b16 %v3778
        %v3875 = vunpack.c.l.b16 %v3779
        %v3876 = vunpack.c.l.b16 %v3780
        %v3877 = vunpack.c.l.b16 %v3781
        %v3878 = vunpack.c.l.b16 %v3782
        %v3879 = vunpack.c.l.b16 %v3783
        %v3880 = vpack.c.b16 %v3833, %v3832
        %v3881 = vpack.c.b16 %v3835, %v3834
        %v3882 = vpack.c.b16 %v3837, %v3836
        %v3883 = vpack.c.b16 %v3839, %v3838
        %v3884 = vpack.c.b16 %v3841, %v3840
        %v3885 = vpack.c.b16 %v3843, %v3842
        %v3886 = vpack.c.b16 %v3845, %v3844
        %v3887 = vpack.c.b16 %v3847, %v3846
        %v3888 = vpack.c.b16 %v3849, %v3848
        %v3889 = vpack.c.b16 %v3851, %v3850
        %v3890 = vpack.c.b16 %v3853, %v3852
        %v3891 = vpack.c.b16 %v3855, %v3854
        %v3892 = vpack.c.b16 %v3857, %v3856
        %v3893 = vpack.c.b16 %v3859, %v3858
        %v3894 = vpack.c.b16 %v3861, %v3860
        %v3895 = vpack.c.b16 %v3863, %v3862
        %v3896 = vpack.c.b16 %v3865, %v3864
        %v3897 = vpack.c.b16 %v3867, %v3866
        %v3898 = vpack.c.b16 %v3869, %v3868
        %v3899 = vpack.c.b16 %v3871, %v3870
        %v3900 = vpack.c.b16 %v3873, %v3872
        %v3901 = vpack.c.b16 %v3875, %v3874
        %v3902 = vpack.c.b16 %v3877, %v3876
        %v3903 = vpack.c.b16 %v3879, %v3878
        %3928 = vmatprep.subr.bf16.mxu0 0
        %3929 = vmatpush1.bf16.msra.mxu0 %v3880
        %3930 = vmatprep.subr.bf16.mxu0 0
        %3931 = vmatpush1.bf16.msra.mxu0 %v3881
        %3932 = vmatprep.subr.bf16.mxu0 0
        %3933 = vmatpush1.bf16.msra.mxu0 %v3882
        %3934 = vmatprep.subr.bf16.mxu0 0
        %3935 = vmatpush1.bf16.msra.mxu0 %v3883
        %3936 = vmatprep.subr.bf16.mxu0 0
        %3937 = vmatpush1.bf16.msra.mxu0 %v3884
        %3938 = vmatprep.subr.bf16.mxu0 0
        %3939 = vmatpush1.bf16.msra.mxu0 %v3885
        %3940 = vmatprep.subr.bf16.mxu0 0
        %3941 = vmatpush1.bf16.msra.mxu0 %v3886
        %3942 = vmatprep.subr.bf16.mxu0 0
        %3943 = vmatpush1.bf16.msra.mxu0 %v3887
        %3944 = vmatprep.subr.bf16.mxu0 0
        %3945 = vmatpush1.bf16.msra.mxu0 %v3888
        %3946 = vmatprep.subr.bf16.mxu0 0
        %3947 = vmatpush1.bf16.msra.mxu0 %v3889
        %3948 = vmatprep.subr.bf16.mxu0 0
        %3949 = vmatpush1.bf16.msra.mxu0 %v3890
        %3950 = vmatprep.subr.bf16.mxu0 0
        %3951 = vmatpush1.bf16.msra.mxu0 %v3891
        %3952 = vmatprep.subr.bf16.mxu0 0
        %3953 = vmatpush1.bf16.msra.mxu0 %v3892
        %3954 = vmatprep.subr.bf16.mxu0 0
        %3955 = vmatpush1.bf16.msra.mxu0 %v3893
        %3956 = vmatprep.subr.bf16.mxu0 0
        %3957 = vmatpush1.bf16.msra.mxu0 %v3894
        %3958 = vmatprep.subr.bf16.mxu0 0
        %3959 = vmatpush1.bf16.msra.mxu0 %v3895
        %3960 = vmatprep.mubr.bf16.mxu0 %v3640
        %3961 = vmatmul.mubr.bf16.gmra.mrb[0].mxu0 %v3639
        %v3962 = vpop.f32.mrb[0].mxu0
        %v3963 = vadd.f32 0.0, %v3962
        %v3964 = vpop.f32.mrb[0].mxu0
        %v3965 = vpop.f32.mrb[0].mxu0
        %v3966 = vadd.f32 0.0, %v3965
        %v3967 = vpop.f32.mrb[0].mxu0
        %3968 = vmatprep.mubr.bf16.mxu0 %v3643
        %3969 = vmatmul.mubr.bf16.gmra.mrb[0].mxu0 %v3642
        %v3970 = vpop.f32.mrb[0].mxu0
        %v3971 = vadd.f32 0.0, %v3970
        %v3972 = vpop.f32.mrb[0].mxu0
        %v3973 = vpop.f32.mrb[0].mxu0
        %v3974 = vadd.f32 0.0, %v3973
        %v3975 = vpop.f32.mrb[0].mxu0
        %3976 = vmatprep.mubr.bf16.mxu0 %v3646
        %3977 = vmatmul.mubr.bf16.gmra.mrb[0].mxu0 %v3645
        %v3978 = vpop.f32.mrb[0].mxu0
        %v3979 = vadd.f32 0.0, %v3978
        %v3980 = vpop.f32.mrb[0].mxu0
        %v3981 = vpop.f32.mrb[0].mxu0
        %v3982 = vadd.f32 0.0, %v3981
        %v3983 = vpop.f32.mrb[0].mxu0
        %3984 = vmatprep.mubr.bf16.mxu0 %v3649
        %3985 = vmatmul.mubr.bf16.gmra.mrb[0].mxu0 %v3648
        %v3986 = vpop.f32.mrb[0].mxu0
        %v3987 = vadd.f32 0.0, %v3986
        %v3988 = vpop.f32.mrb[0].mxu0
        %v3989 = vpop.f32.mrb[0].mxu0
        %v3990 = vadd.f32 0.0, %v3989
        %v3991 = vpop.f32.mrb[0].mxu0
        %3992 = vmatprep.mubr.bf16.mxu0 %v3652
        %3993 = vmatmul.mubr.bf16.gmra.mrb[0].mxu0 %v3651
        %v3994 = vpop.f32.mrb[0].mxu0
        %v3995 = vadd.f32 0.0, %v3994
        %v3996 = vpop.f32.mrb[0].mxu0
        %v3997 = vpop.f32.mrb[0].mxu0
        %v3998 = vadd.f32 0.0, %v3997
        %v3999 = vpop.f32.mrb[0].mxu0
        %4000 = vmatprep.mubr.bf16.mxu0 %v3655
        %4001 = vmatmul.mubr.bf16.gmra.mrb[0].mxu0 %v3654
        %v4002 = vpop.f32.mrb[0].mxu0
        %v4003 = vadd.f32 0.0, %v4002
        %v4004 = vpop.f32.mrb[0].mxu0
        %v4005 = vpop.f32.mrb[0].mxu0
        %v4006 = vadd.f32 0.0, %v4005
        %v4007 = vpop.f32.mrb[0].mxu0
        %4008 = vmatprep.mubr.bf16.mxu0 %v3658
        %4009 = vmatmul.mubr.bf16.gmra.mrb[0].mxu0 %v3657
        %v4010 = vpop.f32.mrb[0].mxu0
        %v4011 = vadd.f32 0.0, %v4010
        %v4012 = vpop.f32.mrb[0].mxu0
        %v4013 = vpop.f32.mrb[0].mxu0
        %v4014 = vadd.f32 0.0, %v4013
        %v4015 = vpop.f32.mrb[0].mxu0
        %4016 = vmatprep.mubr.bf16.mxu0 %v3661
        %4017 = vmatmul.mubr.bf16.gmra.mrb[0].mxu0 %v3660
        %v4018 = vpop.f32.mrb[0].mxu0
        %v4019 = vadd.f32 0.0, %v4018
        %v4020 = vpop.f32.mrb[0].mxu0
        %v4021 = vpop.f32.mrb[0].mxu0
        %v4022 = vadd.f32 0.0, %v4021
        %v4023 = vpop.f32.mrb[0].mxu0
        %4024 = vmatprep.mubr.bf16.mxu0 %v3664
        %4025 = vmatmul.mubr.bf16.gmra.mrb[0].mxu0 %v3663
        %v4026 = vpop.f32.mrb[0].mxu0
        %v4027 = vadd.f32 0.0, %v4026
        %v4028 = vpop.f32.mrb[0].mxu0
        %v4029 = vpop.f32.mrb[0].mxu0
        %v4030 = vadd.f32 0.0, %v4029
        %v4031 = vpop.f32.mrb[0].mxu0
        %4032 = vmatprep.mubr.bf16.mxu0 %v3667
        %4033 = vmatmul.mubr.bf16.gmra.mrb[0].mxu0 %v3666
        %v4034 = vpop.f32.mrb[0].mxu0
        %v4035 = vadd.f32 0.0, %v4034
        %v4036 = vpop.f32.mrb[0].mxu0
        %v4037 = vpop.f32.mrb[0].mxu0
        %v4038 = vadd.f32 0.0, %v4037
        %v4039 = vpop.f32.mrb[0].mxu0
        %4040 = vmatprep.mubr.bf16.mxu0 %v3670
        %4041 = vmatmul.mubr.bf16.gmra.mrb[0].mxu0 %v3669
        %v4042 = vpop.f32.mrb[0].mxu0
        %v4043 = vadd.f32 0.0, %v4042
        %v4044 = vpop.f32.mrb[0].mxu0
        %v4045 = vpop.f32.mrb[0].mxu0
        %v4046 = vadd.f32 0.0, %v4045
        %v4047 = vpop.f32.mrb[0].mxu0
        %4048 = vmatprep.mubr.bf16.mxu0 %v3673
        %4049 = vmatmul.mubr.bf16.gmra.mrb[0].mxu0 %v3672
        %v4050 = vpop.f32.mrb[0].mxu0
        %v4051 = vadd.f32 0.0, %v4050
        %v4052 = vpop.f32.mrb[0].mxu0
        %v4053 = vpop.f32.mrb[0].mxu0
        %v4054 = vadd.f32 0.0, %v4053
        %v4055 = vpop.f32.mrb[0].mxu0
        %4056 = vmatprep.mubr.bf16.mxu0 %v3676
        %4057 = vmatmul.mubr.bf16.gmra.mrb[0].mxu0 %v3675
        %v4058 = vpop.f32.mrb[0].mxu0
        %v4059 = vadd.f32 0.0, %v4058
        %v4060 = vpop.f32.mrb[0].mxu0
        %v4061 = vpop.f32.mrb[0].mxu0
        %v4062 = vadd.f32 0.0, %v4061
        %v4063 = vpop.f32.mrb[0].mxu0
        %4064 = vmatprep.mubr.bf16.mxu0 %v3679
        %4065 = vmatmul.mubr.bf16.gmra.mrb[0].mxu0 %v3678
        %v4066 = vpop.f32.mrb[0].mxu0
        %v4067 = vadd.f32 0.0, %v4066
        %v4068 = vpop.f32.mrb[0].mxu0
        %v4069 = vpop.f32.mrb[0].mxu0
        %v4070 = vadd.f32 0.0, %v4069
        %v4071 = vpop.f32.mrb[0].mxu0
        %4072 = vmatprep.mubr.bf16.mxu0 %v3682
        %4073 = vmatmul.mubr.bf16.gmra.mrb[0].mxu0 %v3681
        %v4074 = vpop.f32.mrb[0].mxu0
        %v4075 = vadd.f32 0.0, %v4074
        %v4076 = vpop.f32.mrb[0].mxu0
        %v4077 = vpop.f32.mrb[0].mxu0
        %v4078 = vadd.f32 0.0, %v4077
        %v4079 = vpop.f32.mrb[0].mxu0
        %4080 = vmatprep.mubr.bf16.mxu0 %v3733
        %4081 = vmatmul.mubr.bf16.gmra.mrb[0].mxu0 %v3732
        %v4082 = vpop.f32.mrb[0].mxu0
        %v4083 = vadd.f32 0.0, %v4082
        %v4084 = vpop.f32.mrb[0].mxu0
        %v4085 = vpop.f32.mrb[0].mxu0
        %v4086 = vadd.f32 0.0, %v4085
        %v4087 = vpop.f32.mrb[0].mxu0
        %4088 = vdwg.mxu0
        %4089 = vmatprep.subr.bf16.mxu0 0
        %4090 = vmatpush1.bf16.msra.mxu0 %v3896
        %4091 = vmatprep.subr.bf16.mxu0 0
        %4092 = vmatpush1.bf16.msra.mxu0 %v3897
        %4093 = vmatprep.subr.bf16.mxu0 0
        %4094 = vmatpush1.bf16.msra.mxu0 %v3898
        %4095 = vmatprep.subr.bf16.mxu0 0
        %4096 = vmatpush1.bf16.msra.mxu0 %v3899
        %4097 = vmatprep.subr.bf16.mxu0 0
        %4098 = vmatpush1.bf16.msra.mxu0 %v3900
        %4099 = vmatprep.subr.bf16.mxu0 0
        %4100 = vmatpush1.bf16.msra.mxu0 %v3901
        %4101 = vmatprep.subr.bf16.mxu0 0
        %4102 = vmatpush1.bf16.msra.mxu0 %v3902
        %4103 = vmatprep.subr.bf16.mxu0 0
        %4104 = vmatpush1.bf16.msra.mxu0 %v3903
        %4105 = vmatprep.subr.bf16.mxu0 0
        %4106 = vmatpush1.bf16.msra.mxu0 0
        %4107 = vmatprep.subr.bf16.mxu0 0
        %4108 = vmatpush1.bf16.msra.mxu0 0
        %4109 = vmatprep.subr.bf16.mxu0 0
        %4110 = vmatpush1.bf16.msra.mxu0 0
        %4111 = vmatprep.subr.bf16.mxu0 0
        %4112 = vmatpush1.bf16.msra.mxu0 0
        %4113 = vmatprep.subr.bf16.mxu0 0
        %4114 = vmatpush1.bf16.msra.mxu0 0
        %4115 = vmatprep.subr.bf16.mxu0 0
        %4116 = vmatpush1.bf16.msra.mxu0 0
        %4117 = vmatprep.subr.bf16.mxu0 0
        %4118 = vmatpush1.bf16.msra.mxu0 0
        %4119 = vmatprep.subr.bf16.mxu0 0
        %4120 = vmatpush1.bf16.msra.mxu0 0
        %4121 = vmatprep.mubr.bf16.mxu0 0
        %4122 = vmatmul.mubr.bf16.gmra.mrb[0].mxu0 %v3641
        %v4123 = vpop.f32.mrb[0].mxu0
        %v4124 = vadd.f32 %v3963, %v4123
        %v4125 = vpop.f32.mrb[0].mxu0
        %v4126 = vpop.f32.mrb[0].mxu0
        %v4127 = vadd.f32 %v3966, %v4126
        %v4128 = vpop.f32.mrb[0].mxu0
        %4129 = vmatprep.mubr.bf16.mxu0 0
        %4130 = vmatmul.mubr.bf16.gmra.mrb[0].mxu0 %v3644
        %v4131 = vpop.f32.mrb[0].mxu0
        %v4132 = vadd.f32 %v3971, %v4131
        %v4133 = vpop.f32.mrb[0].mxu0
        %v4134 = vpop.f32.mrb[0].mxu0
        %v4135 = vadd.f32 %v3974, %v4134
        %v4136 = vpop.f32.mrb[0].mxu0
        %4137 = vmatprep.mubr.bf16.mxu0 0
        %4138 = vmatmul.mubr.bf16.gmra.mrb[0].mxu0 %v3647
        %v4139 = vpop.f32.mrb[0].mxu0
        %v4140 = vadd.f32 %v3979, %v4139
        %v4141 = vpop.f32.mrb[0].mxu0
        %v4142 = vpop.f32.mrb[0].mxu0
        %v4143 = vadd.f32 %v3982, %v4142
        %v4144 = vpop.f32.mrb[0].mxu0
        %4145 = vmatprep.mubr.bf16.mxu0 0
        %4146 = vmatmul.mubr.bf16.gmra.mrb[0].mxu0 %v3650
        %v4147 = vpop.f32.mrb[0].mxu0
        %v4148 = vadd.f32 %v3987, %v4147
        %v4149 = vpop.f32.mrb[0].mxu0
        %v4150 = vpop.f32.mrb[0].mxu0
        %v4151 = vadd.f32 %v3990, %v4150
        %v4152 = vpop.f32.mrb[0].mxu0
        %4153 = vmatprep.mubr.bf16.mxu0 0
        %4154 = vmatmul.mubr.bf16.gmra.mrb[0].mxu0 %v3653
        %v4155 = vpop.f32.mrb[0].mxu0
        %v4156 = vadd.f32 %v3995, %v4155
        %v4157 = vpop.f32.mrb[0].mxu0
        %v4158 = vpop.f32.mrb[0].mxu0
        %v4159 = vadd.f32 %v3998, %v4158
        %v4160 = vpop.f32.mrb[0].mxu0
        %4161 = vmatprep.mubr.bf16.mxu0 0
        %4162 = vmatmul.mubr.bf16.gmra.mrb[0].mxu0 %v3656
        %v4163 = vpop.f32.mrb[0].mxu0
        %v4164 = vadd.f32 %v4003, %v4163
        %v4165 = vpop.f32.mrb[0].mxu0
        %v4166 = vpop.f32.mrb[0].mxu0
        %v4167 = vadd.f32 %v4006, %v4166
        %v4168 = vpop.f32.mrb[0].mxu0
        %4169 = vmatprep.mubr.bf16.mxu0 0
        %4170 = vmatmul.mubr.bf16.gmra.mrb[0].mxu0 %v3659
        %v4171 = vpop.f32.mrb[0].mxu0
        %v4172 = vadd.f32 %v4011, %v4171
        %v4173 = vpop.f32.mrb[0].mxu0
        %v4174 = vpop.f32.mrb[0].mxu0
        %v4175 = vadd.f32 %v4014, %v4174
        %v4176 = vpop.f32.mrb[0].mxu0
        %4177 = vmatprep.mubr.bf16.mxu0 0
        %4178 = vmatmul.mubr.bf16.gmra.mrb[0].mxu0 %v3662
        %v4179 = vpop.f32.mrb[0].mxu0
        %v4180 = vadd.f32 %v4019, %v4179
        %v4181 = vpop.f32.mrb[0].mxu0
        %v4182 = vpop.f32.mrb[0].mxu0
        %v4183 = vadd.f32 %v4022, %v4182
        %v4184 = vpop.f32.mrb[0].mxu0
        %4185 = vmatprep.mubr.bf16.mxu0 0
        %4186 = vmatmul.mubr.bf16.gmra.mrb[0].mxu0 %v3665
        %v4187 = vpop.f32.mrb[0].mxu0
        %v4188 = vadd.f32 %v4027, %v4187
        %v4189 = vpop.f32.mrb[0].mxu0
        %v4190 = vpop.f32.mrb[0].mxu0
        %v4191 = vadd.f32 %v4030, %v4190
        %v4192 = vpop.f32.mrb[0].mxu0
        %4193 = vmatprep.mubr.bf16.mxu0 0
        %4194 = vmatmul.mubr.bf16.gmra.mrb[0].mxu0 %v3668
        %v4195 = vpop.f32.mrb[0].mxu0
        %v4196 = vadd.f32 %v4035, %v4195
        %v4197 = vpop.f32.mrb[0].mxu0
        %v4198 = vpop.f32.mrb[0].mxu0
        %v4199 = vadd.f32 %v4038, %v4198
        %v4200 = vpop.f32.mrb[0].mxu0
        %4201 = vmatprep.mubr.bf16.mxu0 0
        %4202 = vmatmul.mubr.bf16.gmra.mrb[0].mxu0 %v3671
        %v4203 = vpop.f32.mrb[0].mxu0
        %v4204 = vadd.f32 %v4043, %v4203
        %v4205 = vpop.f32.mrb[0].mxu0
        %v4206 = vpop.f32.mrb[0].mxu0
        %v4207 = vadd.f32 %v4046, %v4206
        %v4208 = vpop.f32.mrb[0].mxu0
        %4209 = vmatprep.mubr.bf16.mxu0 0
        %4210 = vmatmul.mubr.bf16.gmra.mrb[0].mxu0 %v3674
        %v4211 = vpop.f32.mrb[0].mxu0
        %v4212 = vadd.f32 %v4051, %v4211
        %v4213 = vpop.f32.mrb[0].mxu0
        %v4214 = vpop.f32.mrb[0].mxu0
        %v4215 = vadd.f32 %v4054, %v4214
        %v4216 = vpop.f32.mrb[0].mxu0
        %4217 = vmatprep.mubr.bf16.mxu0 0
        %4218 = vmatmul.mubr.bf16.gmra.mrb[0].mxu0 %v3677
        %v4219 = vpop.f32.mrb[0].mxu0
        %v4220 = vadd.f32 %v4059, %v4219
        %v4221 = vpop.f32.mrb[0].mxu0
        %v4222 = vpop.f32.mrb[0].mxu0
        %v4223 = vadd.f32 %v4062, %v4222
        %v4224 = vpop.f32.mrb[0].mxu0
        %4225 = vmatprep.mubr.bf16.mxu0 0
        %4226 = vmatmul.mubr.bf16.gmra.mrb[0].mxu0 %v3680
        %v4227 = vpop.f32.mrb[0].mxu0
        %v4228 = vadd.f32 %v4067, %v4227
        %v4229 = vpop.f32.mrb[0].mxu0
        %v4230 = vpop.f32.mrb[0].mxu0
        %v4231 = vadd.f32 %v4070, %v4230
        %v4232 = vpop.f32.mrb[0].mxu0
        %4233 = vmatprep.mubr.bf16.mxu0 0
        %4234 = vmatmul.mubr.bf16.gmra.mrb[0].mxu0 %v3683
        %v4235 = vpop.f32.mrb[0].mxu0
        %v4236 = vadd.f32 %v4075, %v4235
        %v4237 = vpop.f32.mrb[0].mxu0
        %v4238 = vpop.f32.mrb[0].mxu0
        %v4239 = vadd.f32 %v4078, %v4238
        %v4240 = vpop.f32.mrb[0].mxu0
        %4241 = vmatprep.mubr.bf16.mxu0 0
        %4242 = vmatmul.mubr.bf16.gmra.mrb[0].mxu0 %v3734
        %v4243 = vpop.f32.mrb[0].mxu0
        %v4244 = vadd.f32 %v4083, %v4243
        %v4245 = vpop.f32.mrb[0].mxu0
        %v4246 = vpop.f32.mrb[0].mxu0
        %v4247 = vadd.f32 %v4086, %v4246
        %v4248 = vpop.f32.mrb[0].mxu0
        %4249 = vdwg.mxu0
        %v4298 = vunpack.c.l.b16 %v3684
        %v4299 = vunpack.c.l.b16 %v3685
        %v4300 = vunpack.c.l.b16 %v3686
        %v4301 = vunpack.c.l.b16 %v3687
        %v4302 = vunpack.c.l.b16 %v3688
        %v4303 = vunpack.c.l.b16 %v3689
        %v4304 = vunpack.c.l.b16 %v3690
        %v4305 = vunpack.c.l.b16 %v3691
        %v4306 = vunpack.c.l.b16 %v3692
        %v4307 = vunpack.c.l.b16 %v3693
        %v4308 = vunpack.c.l.b16 %v3694
        %v4309 = vunpack.c.l.b16 %v3695
        %v4310 = vunpack.c.l.b16 %v3696
        %v4311 = vunpack.c.l.b16 %v3697
        %v4312 = vunpack.c.l.b16 %v3698
        %v4313 = vunpack.c.l.b16 %v3699
        %v4314 = vunpack.c.l.b16 %v3700
        %v4315 = vunpack.c.l.b16 %v3701
        %v4316 = vunpack.c.l.b16 %v3702
        %v4317 = vunpack.c.l.b16 %v3703
        %v4318 = vunpack.c.l.b16 %v3704
        %v4319 = vunpack.c.l.b16 %v3705
        %v4320 = vunpack.c.l.b16 %v3706
        %v4321 = vunpack.c.l.b16 %v3707
        %v4322 = vunpack.c.l.b16 %v3708
        %v4323 = vunpack.c.l.b16 %v3709
        %v4324 = vunpack.c.l.b16 %v3710
        %v4325 = vunpack.c.l.b16 %v3711
        %v4326 = vunpack.c.l.b16 %v3712
        %v4327 = vunpack.c.l.b16 %v3713
        %v4328 = vunpack.c.l.b16 %v3714
        %v4329 = vunpack.c.l.b16 %v3715
        %v4330 = vunpack.c.l.b16 %v3716
        %v4331 = vunpack.c.l.b16 %v3717
        %v4332 = vunpack.c.l.b16 %v3718
        %v4333 = vunpack.c.l.b16 %v3719
        %v4334 = vunpack.c.l.b16 %v3720
        %v4335 = vunpack.c.l.b16 %v3721
        %v4336 = vunpack.c.l.b16 %v3722
        %v4337 = vunpack.c.l.b16 %v3723
        %v4338 = vunpack.c.l.b16 %v3724
        %v4339 = vunpack.c.l.b16 %v3725
        %v4340 = vunpack.c.l.b16 %v3726
        %v4341 = vunpack.c.l.b16 %v3727
        %v4342 = vunpack.c.l.b16 %v3728
        %v4343 = vunpack.c.l.b16 %v3729
        %v4344 = vunpack.c.l.b16 %v3730
        %v4345 = vunpack.c.l.b16 %v3731
        %v4346 = vpack.c.b16 %v4299, %v4298
        %v4347 = vpack.c.b16 %v4301, %v4300
        %v4348 = vpack.c.b16 %v4303, %v4302
        %v4349 = vpack.c.b16 %v4305, %v4304
        %v4350 = vpack.c.b16 %v4307, %v4306
        %v4351 = vpack.c.b16 %v4309, %v4308
        %v4352 = vpack.c.b16 %v4311, %v4310
        %v4353 = vpack.c.b16 %v4313, %v4312
        %v4354 = vpack.c.b16 %v4315, %v4314
        %v4355 = vpack.c.b16 %v4317, %v4316
        %v4356 = vpack.c.b16 %v4319, %v4318
        %v4357 = vpack.c.b16 %v4321, %v4320
        %v4358 = vpack.c.b16 %v4323, %v4322
        %v4359 = vpack.c.b16 %v4325, %v4324
        %v4360 = vpack.c.b16 %v4327, %v4326
        %v4361 = vpack.c.b16 %v4329, %v4328
        %v4362 = vpack.c.b16 %v4331, %v4330
        %v4363 = vpack.c.b16 %v4333, %v4332
        %v4364 = vpack.c.b16 %v4335, %v4334
        %v4365 = vpack.c.b16 %v4337, %v4336
        %v4366 = vpack.c.b16 %v4339, %v4338
        %v4367 = vpack.c.b16 %v4341, %v4340
        %v4368 = vpack.c.b16 %v4343, %v4342
        %v4369 = vpack.c.b16 %v4345, %v4344
        %4394 = vmatprep.subr.bf16.mxu0 0
        %4395 = vmatpush1.bf16.msra.mxu0 %v4346
        %4396 = vmatprep.subr.bf16.mxu0 0
        %4397 = vmatpush1.bf16.msra.mxu0 %v4347
        %4398 = vmatprep.subr.bf16.mxu0 0
        %4399 = vmatpush1.bf16.msra.mxu0 %v4348
        %4400 = vmatprep.subr.bf16.mxu0 0
        %4401 = vmatpush1.bf16.msra.mxu0 %v4349
        %4402 = vmatprep.subr.bf16.mxu0 0
        %4403 = vmatpush1.bf16.msra.mxu0 %v4350
        %4404 = vmatprep.subr.bf16.mxu0 0
        %4405 = vmatpush1.bf16.msra.mxu0 %v4351
        %4406 = vmatprep.subr.bf16.mxu0 0
        %4407 = vmatpush1.bf16.msra.mxu0 %v4352
        %4408 = vmatprep.subr.bf16.mxu0 0
        %4409 = vmatpush1.bf16.msra.mxu0 %v4353
        %4410 = vmatprep.subr.bf16.mxu0 0
        %4411 = vmatpush1.bf16.msra.mxu0 %v4354
        %4412 = vmatprep.subr.bf16.mxu0 0
        %4413 = vmatpush1.bf16.msra.mxu0 %v4355
        %4414 = vmatprep.subr.bf16.mxu0 0
        %4415 = vmatpush1.bf16.msra.mxu0 %v4356
        %4416 = vmatprep.subr.bf16.mxu0 0
        %4417 = vmatpush1.bf16.msra.mxu0 %v4357
        %4418 = vmatprep.subr.bf16.mxu0 0
        %4419 = vmatpush1.bf16.msra.mxu0 %v4358
        %4420 = vmatprep.subr.bf16.mxu0 0
        %4421 = vmatpush1.bf16.msra.mxu0 %v4359
        %4422 = vmatprep.subr.bf16.mxu0 0
        %4423 = vmatpush1.bf16.msra.mxu0 %v4360
        %4424 = vmatprep.subr.bf16.mxu0 0
        %4425 = vmatpush1.bf16.msra.mxu0 %v4361
        %4426 = vmatprep.mubr.bf16.mxu0 %v3637
        %4427 = vmatmul.mubr.bf16.gmra.mrb[0].mxu0 %v3636
        %v4428 = vpop.f32.mrb[0].mxu0
        %v4429 = vadd.f32 %v4124, %v4428
        %v4430 = vpop.f32.mrb[0].mxu0
        %v4431 = vpop.f32.mrb[0].mxu0
        %v4432 = vadd.f32 %v4127, %v4431
        %v4433 = vpop.f32.mrb[0].mxu0
        %4434 = vmatprep.mubr.bf16.mxu0 %v3640
        %4435 = vmatmul.mubr.bf16.gmra.mrb[0].mxu0 %v3639
        %v4436 = vpop.f32.mrb[0].mxu0
        %v4437 = vadd.f32 %v4132, %v4436
        %v4438 = vpop.f32.mrb[0].mxu0
        %v4439 = vpop.f32.mrb[0].mxu0
        %v4440 = vadd.f32 %v4135, %v4439
        %v4441 = vpop.f32.mrb[0].mxu0
        %4442 = vmatprep.mubr.bf16.mxu0 %v3643
        %4443 = vmatmul.mubr.bf16.gmra.mrb[0].mxu0 %v3642
        %v4444 = vpop.f32.mrb[0].mxu0
        %v4445 = vadd.f32 %v4140, %v4444
        %v4446 = vpop.f32.mrb[0].mxu0
        %v4447 = vpop.f32.mrb[0].mxu0
        %v4448 = vadd.f32 %v4143, %v4447
        %v4449 = vpop.f32.mrb[0].mxu0
        %4450 = vmatprep.mubr.bf16.mxu0 %v3646
        %4451 = vmatmul.mubr.bf16.gmra.mrb[0].mxu0 %v3645
        %v4452 = vpop.f32.mrb[0].mxu0
        %v4453 = vadd.f32 %v4148, %v4452
        %v4454 = vpop.f32.mrb[0].mxu0
        %v4455 = vpop.f32.mrb[0].mxu0
        %v4456 = vadd.f32 %v4151, %v4455
        %v4457 = vpop.f32.mrb[0].mxu0
        %4458 = vmatprep.mubr.bf16.mxu0 %v3649
        %4459 = vmatmul.mubr.bf16.gmra.mrb[0].mxu0 %v3648
        %v4460 = vpop.f32.mrb[0].mxu0
        %v4461 = vadd.f32 %v4156, %v4460
        %v4462 = vpop.f32.mrb[0].mxu0
        %v4463 = vpop.f32.mrb[0].mxu0
        %v4464 = vadd.f32 %v4159, %v4463
        %v4465 = vpop.f32.mrb[0].mxu0
        %4466 = vmatprep.mubr.bf16.mxu0 %v3652
        %4467 = vmatmul.mubr.bf16.gmra.mrb[0].mxu0 %v3651
        %v4468 = vpop.f32.mrb[0].mxu0
        %v4469 = vadd.f32 %v4164, %v4468
        %v4470 = vpop.f32.mrb[0].mxu0
        %v4471 = vpop.f32.mrb[0].mxu0
        %v4472 = vadd.f32 %v4167, %v4471
        %v4473 = vpop.f32.mrb[0].mxu0
        %4474 = vmatprep.mubr.bf16.mxu0 %v3655
        %4475 = vmatmul.mubr.bf16.gmra.mrb[0].mxu0 %v3654
        %v4476 = vpop.f32.mrb[0].mxu0
        %v4477 = vadd.f32 %v4172, %v4476
        %v4478 = vpop.f32.mrb[0].mxu0
        %v4479 = vpop.f32.mrb[0].mxu0
        %v4480 = vadd.f32 %v4175, %v4479
        %v4481 = vpop.f32.mrb[0].mxu0
        %4482 = vmatprep.mubr.bf16.mxu0 %v3658
        %4483 = vmatmul.mubr.bf16.gmra.mrb[0].mxu0 %v3657
        %v4484 = vpop.f32.mrb[0].mxu0
        %v4485 = vadd.f32 %v4180, %v4484
        %v4486 = vpop.f32.mrb[0].mxu0
        %v4487 = vpop.f32.mrb[0].mxu0
        %v4488 = vadd.f32 %v4183, %v4487
        %v4489 = vpop.f32.mrb[0].mxu0
        %4490 = vmatprep.mubr.bf16.mxu0 %v3661
        %4491 = vmatmul.mubr.bf16.gmra.mrb[0].mxu0 %v3660
        %v4492 = vpop.f32.mrb[0].mxu0
        %v4493 = vadd.f32 %v4188, %v4492
        %v4494 = vpop.f32.mrb[0].mxu0
        %v4495 = vpop.f32.mrb[0].mxu0
        %v4496 = vadd.f32 %v4191, %v4495
        %v4497 = vpop.f32.mrb[0].mxu0
        %4498 = vmatprep.mubr.bf16.mxu0 %v3664
        %4499 = vmatmul.mubr.bf16.gmra.mrb[0].mxu0 %v3663
        %v4500 = vpop.f32.mrb[0].mxu0
        %v4501 = vadd.f32 %v4196, %v4500
        %v4502 = vpop.f32.mrb[0].mxu0
        %v4503 = vpop.f32.mrb[0].mxu0
        %v4504 = vadd.f32 %v4199, %v4503
        %v4505 = vpop.f32.mrb[0].mxu0
        %4506 = vmatprep.mubr.bf16.mxu0 %v3667
        %4507 = vmatmul.mubr.bf16.gmra.mrb[0].mxu0 %v3666
        %v4508 = vpop.f32.mrb[0].mxu0
        %v4509 = vadd.f32 %v4204, %v4508
        %v4510 = vpop.f32.mrb[0].mxu0
        %v4511 = vpop.f32.mrb[0].mxu0
        %v4512 = vadd.f32 %v4207, %v4511
        %v4513 = vpop.f32.mrb[0].mxu0
        %4514 = vmatprep.mubr.bf16.mxu0 %v3670
        %4515 = vmatmul.mubr.bf16.gmra.mrb[0].mxu0 %v3669
        %v4516 = vpop.f32.mrb[0].mxu0
        %v4517 = vadd.f32 %v4212, %v4516
        %v4518 = vpop.f32.mrb[0].mxu0
        %v4519 = vpop.f32.mrb[0].mxu0
        %v4520 = vadd.f32 %v4215, %v4519
        %v4521 = vpop.f32.mrb[0].mxu0
        %4522 = vmatprep.mubr.bf16.mxu0 %v3673
        %4523 = vmatmul.mubr.bf16.gmra.mrb[0].mxu0 %v3672
        %v4524 = vpop.f32.mrb[0].mxu0
        %v4525 = vadd.f32 %v4220, %v4524
        %v4526 = vpop.f32.mrb[0].mxu0
        %v4527 = vpop.f32.mrb[0].mxu0
        %v4528 = vadd.f32 %v4223, %v4527
        %v4529 = vpop.f32.mrb[0].mxu0
        %4530 = vmatprep.mubr.bf16.mxu0 %v3676
        %4531 = vmatmul.mubr.bf16.gmra.mrb[0].mxu0 %v3675
        %v4532 = vpop.f32.mrb[0].mxu0
        %v4533 = vadd.f32 %v4228, %v4532
        %v4534 = vpop.f32.mrb[0].mxu0
        %v4535 = vpop.f32.mrb[0].mxu0
        %v4536 = vadd.f32 %v4231, %v4535
        %v4537 = vpop.f32.mrb[0].mxu0
        %4538 = vmatprep.mubr.bf16.mxu0 %v3679
        %4539 = vmatmul.mubr.bf16.gmra.mrb[0].mxu0 %v3678
        %v4540 = vpop.f32.mrb[0].mxu0
        %v4541 = vadd.f32 %v4236, %v4540
        %v4542 = vpop.f32.mrb[0].mxu0
        %v4543 = vpop.f32.mrb[0].mxu0
        %v4544 = vadd.f32 %v4239, %v4543
        %v4545 = vpop.f32.mrb[0].mxu0
        %4546 = vmatprep.mubr.bf16.mxu0 %v3682
        %4547 = vmatmul.mubr.bf16.gmra.mrb[0].mxu0 %v3681
        %v4548 = vpop.f32.mrb[0].mxu0
        %v4549 = vadd.f32 %v4244, %v4548
        %v4550 = vpop.f32.mrb[0].mxu0
        %v4551 = vpop.f32.mrb[0].mxu0
        %v4552 = vadd.f32 %v4247, %v4551
        %v4553 = vpop.f32.mrb[0].mxu0
        %4554 = vdwg.mxu0
        %4555 = vmatprep.subr.bf16.mxu0 0
        %4556 = vmatpush1.bf16.msra.mxu0 %v4362
        %4557 = vmatprep.subr.bf16.mxu0 0
        %4558 = vmatpush1.bf16.msra.mxu0 %v4363
        %4559 = vmatprep.subr.bf16.mxu0 0
        %4560 = vmatpush1.bf16.msra.mxu0 %v4364
        %4561 = vmatprep.subr.bf16.mxu0 0
        %4562 = vmatpush1.bf16.msra.mxu0 %v4365
        %4563 = vmatprep.subr.bf16.mxu0 0
        %4564 = vmatpush1.bf16.msra.mxu0 %v4366
        %4565 = vmatprep.subr.bf16.mxu0 0
        %4566 = vmatpush1.bf16.msra.mxu0 %v4367
        %4567 = vmatprep.subr.bf16.mxu0 0
        %4568 = vmatpush1.bf16.msra.mxu0 %v4368
        %4569 = vmatprep.subr.bf16.mxu0 0
        %4570 = vmatpush1.bf16.msra.mxu0 %v4369
        %4571 = vmatprep.subr.bf16.mxu0 0
        %4572 = vmatpush1.bf16.msra.mxu0 0
        %4573 = vmatprep.subr.bf16.mxu0 0
        %4574 = vmatpush1.bf16.msra.mxu0 0
        %4575 = vmatprep.subr.bf16.mxu0 0
        %4576 = vmatpush1.bf16.msra.mxu0 0
        %4577 = vmatprep.subr.bf16.mxu0 0
        %4578 = vmatpush1.bf16.msra.mxu0 0
        %4579 = vmatprep.subr.bf16.mxu0 0
        %4580 = vmatpush1.bf16.msra.mxu0 0
        %4581 = vmatprep.subr.bf16.mxu0 0
        %4582 = vmatpush1.bf16.msra.mxu0 0
        %4583 = vmatprep.subr.bf16.mxu0 0
        %4584 = vmatpush1.bf16.msra.mxu0 0
        %4585 = vmatprep.subr.bf16.mxu0 0
        %4586 = vmatpush1.bf16.msra.mxu0 0
        %4587 = vmatprep.mubr.bf16.mxu0 0
        %4588 = vmatmul.mubr.bf16.gmra.mrb[0].mxu0 %v3638
        %v4589 = vpop.f32.mrb[0].mxu0
        %v4590 = vadd.f32 %v4429, %v4589
        %v4591 = vpop.f32.mrb[0].mxu0
        %v4592 = vpop.f32.mrb[0].mxu0
        %v4593 = vadd.f32 %v4432, %v4592
        %v4594 = vpop.f32.mrb[0].mxu0
        %4595 = vmatprep.mubr.bf16.mxu0 0
        %4596 = vmatmul.mubr.bf16.gmra.mrb[0].mxu0 %v3641
        %v4597 = vpop.f32.mrb[0].mxu0
        %v4598 = vadd.f32 %v4437, %v4597
        %v4599 = vpop.f32.mrb[0].mxu0
        %v4600 = vpop.f32.mrb[0].mxu0
        %v4601 = vadd.f32 %v4440, %v4600
        %v4602 = vpop.f32.mrb[0].mxu0
        %4603 = vmatprep.mubr.bf16.mxu0 0
        %4604 = vmatmul.mubr.bf16.gmra.mrb[0].mxu0 %v3644
        %v4605 = vpop.f32.mrb[0].mxu0
        %v4606 = vadd.f32 %v4445, %v4605
        %v4607 = vpop.f32.mrb[0].mxu0
        %v4608 = vpop.f32.mrb[0].mxu0
        %v4609 = vadd.f32 %v4448, %v4608
        %v4610 = vpop.f32.mrb[0].mxu0
        %4611 = vmatprep.mubr.bf16.mxu0 0
        %4612 = vmatmul.mubr.bf16.gmra.mrb[0].mxu0 %v3647
        %v4613 = vpop.f32.mrb[0].mxu0
        %v4614 = vadd.f32 %v4453, %v4613
        %v4615 = vpop.f32.mrb[0].mxu0
        %v4616 = vpop.f32.mrb[0].mxu0
        %v4617 = vadd.f32 %v4456, %v4616
        %v4618 = vpop.f32.mrb[0].mxu0
        %4619 = vmatprep.mubr.bf16.mxu0 0
        %4620 = vmatmul.mubr.bf16.gmra.mrb[0].mxu0 %v3650
        %v4621 = vpop.f32.mrb[0].mxu0
        %v4622 = vadd.f32 %v4461, %v4621
        %v4623 = vpop.f32.mrb[0].mxu0
        %v4624 = vpop.f32.mrb[0].mxu0
        %v4625 = vadd.f32 %v4464, %v4624
        %v4626 = vpop.f32.mrb[0].mxu0
        %4627 = vmatprep.mubr.bf16.mxu0 0
        %4628 = vmatmul.mubr.bf16.gmra.mrb[0].mxu0 %v3653
        %v4629 = vpop.f32.mrb[0].mxu0
        %v4630 = vadd.f32 %v4469, %v4629
        %v4631 = vpop.f32.mrb[0].mxu0
        %v4632 = vpop.f32.mrb[0].mxu0
        %v4633 = vadd.f32 %v4472, %v4632
        %v4634 = vpop.f32.mrb[0].mxu0
        %4635 = vmatprep.mubr.bf16.mxu0 0
        %4636 = vmatmul.mubr.bf16.gmra.mrb[0].mxu0 %v3656
        %v4637 = vpop.f32.mrb[0].mxu0
        %v4638 = vadd.f32 %v4477, %v4637
        %v4639 = vpop.f32.mrb[0].mxu0
        %v4640 = vpop.f32.mrb[0].mxu0
        %v4641 = vadd.f32 %v4480, %v4640
        %v4642 = vpop.f32.mrb[0].mxu0
        %4643 = vmatprep.mubr.bf16.mxu0 0
        %4644 = vmatmul.mubr.bf16.gmra.mrb[0].mxu0 %v3659
        %v4645 = vpop.f32.mrb[0].mxu0
        %v4646 = vadd.f32 %v4485, %v4645
        %v4647 = vpop.f32.mrb[0].mxu0
        %v4648 = vpop.f32.mrb[0].mxu0
        %v4649 = vadd.f32 %v4488, %v4648
        %v4650 = vpop.f32.mrb[0].mxu0
        %4651 = vmatprep.mubr.bf16.mxu0 0
        %4652 = vmatmul.mubr.bf16.gmra.mrb[0].mxu0 %v3662
        %v4653 = vpop.f32.mrb[0].mxu0
        %v4654 = vadd.f32 %v4493, %v4653
        %v4655 = vpop.f32.mrb[0].mxu0
        %v4656 = vpop.f32.mrb[0].mxu0
        %v4657 = vadd.f32 %v4496, %v4656
        %v4658 = vpop.f32.mrb[0].mxu0
        %4659 = vmatprep.mubr.bf16.mxu0 0
        %4660 = vmatmul.mubr.bf16.gmra.mrb[0].mxu0 %v3665
        %v4661 = vpop.f32.mrb[0].mxu0
        %v4662 = vadd.f32 %v4501, %v4661
        %v4663 = vpop.f32.mrb[0].mxu0
        %v4664 = vpop.f32.mrb[0].mxu0
        %v4665 = vadd.f32 %v4504, %v4664
        %v4666 = vpop.f32.mrb[0].mxu0
        %4667 = vmatprep.mubr.bf16.mxu0 0
        %4668 = vmatmul.mubr.bf16.gmra.mrb[0].mxu0 %v3668
        %v4669 = vpop.f32.mrb[0].mxu0
        %v4670 = vadd.f32 %v4509, %v4669
        %v4671 = vpop.f32.mrb[0].mxu0
        %v4672 = vpop.f32.mrb[0].mxu0
        %v4673 = vadd.f32 %v4512, %v4672
        %v4674 = vpop.f32.mrb[0].mxu0
        %4675 = vmatprep.mubr.bf16.mxu0 0
        %4676 = vmatmul.mubr.bf16.gmra.mrb[0].mxu0 %v3671
        %v4677 = vpop.f32.mrb[0].mxu0
        %v4678 = vadd.f32 %v4517, %v4677
        %v4679 = vpop.f32.mrb[0].mxu0
        %v4680 = vpop.f32.mrb[0].mxu0
        %v4681 = vadd.f32 %v4520, %v4680
        %v4682 = vpop.f32.mrb[0].mxu0
        %4683 = vmatprep.mubr.bf16.mxu0 0
        %4684 = vmatmul.mubr.bf16.gmra.mrb[0].mxu0 %v3674
        %v4685 = vpop.f32.mrb[0].mxu0
        %v4686 = vadd.f32 %v4525, %v4685
        %v4687 = vpop.f32.mrb[0].mxu0
        %v4688 = vpop.f32.mrb[0].mxu0
        %v4689 = vadd.f32 %v4528, %v4688
        %v4690 = vpop.f32.mrb[0].mxu0
        %4691 = vmatprep.mubr.bf16.mxu0 0
        %4692 = vmatmul.mubr.bf16.gmra.mrb[0].mxu0 %v3677
        %v4693 = vpop.f32.mrb[0].mxu0
        %v4694 = vadd.f32 %v4533, %v4693
        %v4695 = vpop.f32.mrb[0].mxu0
        %v4696 = vpop.f32.mrb[0].mxu0
        %v4697 = vadd.f32 %v4536, %v4696
        %v4698 = vpop.f32.mrb[0].mxu0
        %4699 = vmatprep.mubr.bf16.mxu0 0
        %4700 = vmatmul.mubr.bf16.gmra.mrb[0].mxu0 %v3680
        %v4701 = vpop.f32.mrb[0].mxu0
        %v4702 = vadd.f32 %v4541, %v4701
        %v4703 = vpop.f32.mrb[0].mxu0
        %v4704 = vpop.f32.mrb[0].mxu0
        %v4705 = vadd.f32 %v4544, %v4704
        %v4706 = vpop.f32.mrb[0].mxu0
        %4707 = vmatprep.mubr.bf16.mxu0 0
        %4708 = vmatmul.mubr.bf16.gmra.mrb[0].mxu0 %v3683
        %v4709 = vpop.f32.mrb[0].mxu0
        %v4710 = vadd.f32 %v4549, %v4709
        %v4711 = vpop.f32.mrb[0].mxu0
        %v4712 = vpop.f32.mrb[0].mxu0
        %v4713 = vadd.f32 %v4552, %v4712
        %v4714 = vpop.f32.mrb[0].mxu0
        %4715 = vdwg.mxu0
        %v4716 = vld [vmem:[#allocation3 + $0x30] sm:$0xff]
        %v4717 = vld [vmem:[#allocation3 + $0x38] sm:$0xff]
        %v4718 = vld [vmem:[#allocation3 + $0x40] sm:$0xff]
        %v4719 = vld [vmem:[#allocation3 + $0x48] sm:$0xff]
        %v4720 = vld [vmem:[#allocation3 + $0x50] sm:$0xff]
        %v4721 = vld [vmem:[#allocation3 + $0x58] sm:$0xff]
        %v4722 = vld [vmem:[#allocation3 + $0x60] sm:$0xff]
        %v4723 = vld [vmem:[#allocation3 + $0x68] sm:$0xff]
        %v4724 = vld [vmem:[#allocation3 + $0x70] sm:$0xff]
        %v4725 = vld [vmem:[#allocation3 + $0x78] sm:$0xff]
        %v4726 = vld [vmem:[#allocation3 + $0x80] sm:$0xff]
        %v4727 = vld [vmem:[#allocation3 + $0x88] sm:$0xff]
        %v4728 = vld [vmem:[#allocation3 + $0x90] sm:$0xff]
        %v4729 = vld [vmem:[#allocation3 + $0x98] sm:$0xff]
        %v4730 = vld [vmem:[#allocation3 + $0xa0] sm:$0xff]
        %v4731 = vld [vmem:[#allocation3 + $0xa8] sm:$0xff]
        %v4732 = vld [vmem:[#allocation3 + $0xb0] sm:$0xff]
        %v4733 = vld [vmem:[#allocation3 + $0xb8] sm:$0xff]
        %v4734 = vld [vmem:[#allocation3 + $0xc0] sm:$0xff]
        %v4735 = vld [vmem:[#allocation3 + $0xc8] sm:$0xff]
        %v4736 = vld [vmem:[#allocation3 + $0xd0] sm:$0xff]
        %v4737 = vld [vmem:[#allocation3 + $0xd8] sm:$0xff]
        %v4738 = vld [vmem:[#allocation3 + $0xe0] sm:$0xff]
        %v4739 = vld [vmem:[#allocation3 + $0xe8] sm:$0xff]
        %v4740 = vld [vmem:[#allocation3 + $0xf0] sm:$0xff]
        %v4741 = vld [vmem:[#allocation3 + $0xf8] sm:$0xff]
        %v4742 = vld [vmem:[#allocation3 + $0x100] sm:$0xff]
        %v4743 = vld [vmem:[#allocation3 + $0x108] sm:$0xff]
        %v4744 = vld [vmem:[#allocation3 + $0x110] sm:$0xff]
        %v4745 = vld [vmem:[#allocation3 + $0x118] sm:$0xff]
        %v4746 = vld [vmem:[#allocation3 + $0x120] sm:$0xff]
        %v4747 = vld [vmem:[#allocation3 + $0x128] sm:$0xff]
        %v4748 = vld [vmem:[#allocation3 + $0x130] sm:$0xff]
        %v4749 = vld [vmem:[#allocation3 + $0x138] sm:$0xff]
        %v4750 = vld [vmem:[#allocation3 + $0x140] sm:$0xff]
        %v4751 = vld [vmem:[#allocation3 + $0x148] sm:$0xff]
        %v4752 = vld [vmem:[#allocation3 + $0x150] sm:$0xff]
        %v4753 = vld [vmem:[#allocation3 + $0x158] sm:$0xff]
        %v4754 = vld [vmem:[#allocation3 + $0x160] sm:$0xff]
        %v4755 = vld [vmem:[#allocation3 + $0x168] sm:$0xff]
        %v4756 = vld [vmem:[#allocation3 + $0x170] sm:$0xff]
        %v4757 = vld [vmem:[#allocation3 + $0x178] sm:$0xff]
        %v4758 = vld [vmem:[#allocation3 + $0x180] sm:$0xff]
        %v4759 = vld [vmem:[#allocation3 + $0x188] sm:$0xff]
        %v4760 = vld [vmem:[#allocation3 + $0x190] sm:$0xff]
        %v4761 = vld [vmem:[#allocation3 + $0x198] sm:$0xff]
        %v4762 = vld [vmem:[#allocation3 + $0x1a0] sm:$0xff]
        %v4763 = vld [vmem:[#allocation3 + $0x1a8] sm:$0xff]
        %s4764 = scalar_lea.vmem [#allocation9], 384
        %v4765 = vld [vmem:[%s4764] sm:$0xf]
        %v4766 = vld [vmem:[%s4764 + $0x4] sm:$0xf]
        %v4767 = vld [vmem:[%s4764 + $0x8] sm:$0xf]
        %v4768 = vld [vmem:[%s4764 + $0xc] sm:$0xf]
        %v4769 = vld [vmem:[%s4764 + $0x10] sm:$0xf]
        %v4770 = vld [vmem:[%s4764 + $0x14] sm:$0xf]
        %v4771 = vld [vmem:[%s4764 + $0x18] sm:$0xf]
        %v4772 = vld [vmem:[%s4764 + $0x1c] sm:$0xf]
        %v4773 = vld [vmem:[%s4764 + $0x20] sm:$0xf]
        %v4774 = vld [vmem:[%s4764 + $0x24] sm:$0xf]
        %v4775 = vld [vmem:[%s4764 + $0x28] sm:$0xf]
        %v4776 = vld [vmem:[%s4764 + $0x2c] sm:$0xf]
        %v4777 = vld [vmem:[%s4764 + $0x30] sm:$0xf]
        %v4778 = vld [vmem:[%s4764 + $0x34] sm:$0xf]
        %v4779 = vld [vmem:[%s4764 + $0x38] sm:$0xf]
        %v4780 = vld [vmem:[%s4764 + $0x3c] sm:$0xf]
        %v4781 = vld [vmem:[%s4764 + $0x40] sm:$0xf]
        %v4782 = vld [vmem:[%s4764 + $0x44] sm:$0xf]
        %v4783 = vld [vmem:[%s4764 + $0x48] sm:$0xf]
        %v4784 = vld [vmem:[%s4764 + $0x4c] sm:$0xf]
        %v4785 = vld [vmem:[%s4764 + $0x50] sm:$0xf]
        %v4786 = vld [vmem:[%s4764 + $0x54] sm:$0xf]
        %v4787 = vld [vmem:[%s4764 + $0x58] sm:$0xf]
        %v4788 = vld [vmem:[%s4764 + $0x5c] sm:$0xf]
        %v4789 = vld [vmem:[%s4764 + $0x60] sm:$0xf]
        %v4790 = vld [vmem:[%s4764 + $0x64] sm:$0xf]
        %v4791 = vld [vmem:[%s4764 + $0x68] sm:$0xf]
        %v4792 = vld [vmem:[%s4764 + $0x6c] sm:$0xf]
        %v4793 = vld [vmem:[%s4764 + $0x70] sm:$0xf]
        %v4794 = vld [vmem:[%s4764 + $0x74] sm:$0xf]
        %v4795 = vld [vmem:[%s4764 + $0x78] sm:$0xf]
        %v4796 = vld [vmem:[%s4764 + $0x7c] sm:$0xf]
        %v4797 = vld [vmem:[%s4764 + $0x80] sm:$0xf]
        %v4798 = vld [vmem:[%s4764 + $0x84] sm:$0xf]
        %v4799 = vld [vmem:[%s4764 + $0x88] sm:$0xf]
        %v4800 = vld [vmem:[%s4764 + $0x8c] sm:$0xf]
        %v4801 = vld [vmem:[%s4764 + $0x90] sm:$0xf]
        %v4802 = vld [vmem:[%s4764 + $0x94] sm:$0xf]
        %v4803 = vld [vmem:[%s4764 + $0x98] sm:$0xf]
        %v4804 = vld [vmem:[%s4764 + $0x9c] sm:$0xf]
        %v4805 = vld [vmem:[%s4764 + $0xa0] sm:$0xf]
        %v4806 = vld [vmem:[%s4764 + $0xa4] sm:$0xf]
        %v4807 = vld [vmem:[%s4764 + $0xa8] sm:$0xf]
        %v4808 = vld [vmem:[%s4764 + $0xac] sm:$0xf]
        %v4809 = vld [vmem:[%s4764 + $0xb0] sm:$0xf]
        %v4810 = vld [vmem:[%s4764 + $0xb4] sm:$0xf]
        %v4811 = vld [vmem:[%s4764 + $0xb8] sm:$0xf]
        %v4812 = vld [vmem:[%s4764 + $0xbc] sm:$0xf]
        %v4861 = vunpack.c.l.b16 %v4765
        %v4862 = vunpack.c.l.b16 %v4766
        %v4863 = vunpack.c.l.b16 %v4767
        %v4864 = vunpack.c.l.b16 %v4768
        %v4865 = vunpack.c.l.b16 %v4769
        %v4866 = vunpack.c.l.b16 %v4770
        %v4867 = vunpack.c.l.b16 %v4771
        %v4868 = vunpack.c.l.b16 %v4772
        %v4869 = vunpack.c.l.b16 %v4773
        %v4870 = vunpack.c.l.b16 %v4774
        %v4871 = vunpack.c.l.b16 %v4775
        %v4872 = vunpack.c.l.b16 %v4776
        %v4873 = vunpack.c.l.b16 %v4777
        %v4874 = vunpack.c.l.b16 %v4778
        %v4875 = vunpack.c.l.b16 %v4779
        %v4876 = vunpack.c.l.b16 %v4780
        %v4877 = vunpack.c.l.b16 %v4781
        %v4878 = vunpack.c.l.b16 %v4782
        %v4879 = vunpack.c.l.b16 %v4783
        %v4880 = vunpack.c.l.b16 %v4784
        %v4881 = vunpack.c.l.b16 %v4785
        %v4882 = vunpack.c.l.b16 %v4786
        %v4883 = vunpack.c.l.b16 %v4787
        %v4884 = vunpack.c.l.b16 %v4788
        %v4885 = vunpack.c.l.b16 %v4789
        %v4886 = vunpack.c.l.b16 %v4790
        %v4887 = vunpack.c.l.b16 %v4791
        %v4888 = vunpack.c.l.b16 %v4792
        %v4889 = vunpack.c.l.b16 %v4793
        %v4890 = vunpack.c.l.b16 %v4794
        %v4891 = vunpack.c.l.b16 %v4795
        %v4892 = vunpack.c.l.b16 %v4796
        %v4893 = vunpack.c.l.b16 %v4797
        %v4894 = vunpack.c.l.b16 %v4798
        %v4895 = vunpack.c.l.b16 %v4799
        %v4896 = vunpack.c.l.b16 %v4800
        %v4897 = vunpack.c.l.b16 %v4801
        %v4898 = vunpack.c.l.b16 %v4802
        %v4899 = vunpack.c.l.b16 %v4803
        %v4900 = vunpack.c.l.b16 %v4804
        %v4901 = vunpack.c.l.b16 %v4805
        %v4902 = vunpack.c.l.b16 %v4806
        %v4903 = vunpack.c.l.b16 %v4807
        %v4904 = vunpack.c.l.b16 %v4808
        %v4905 = vunpack.c.l.b16 %v4809
        %v4906 = vunpack.c.l.b16 %v4810
        %v4907 = vunpack.c.l.b16 %v4811
        %v4908 = vunpack.c.l.b16 %v4812
        %v4909 = vpack.c.b16 %v4862, %v4861
        %v4910 = vpack.c.b16 %v4864, %v4863
        %v4911 = vpack.c.b16 %v4866, %v4865
        %v4912 = vpack.c.b16 %v4868, %v4867
        %v4913 = vpack.c.b16 %v4870, %v4869
        %v4914 = vpack.c.b16 %v4872, %v4871
        %v4915 = vpack.c.b16 %v4874, %v4873
        %v4916 = vpack.c.b16 %v4876, %v4875
        %v4917 = vpack.c.b16 %v4878, %v4877
        %v4918 = vpack.c.b16 %v4880, %v4879
        %v4919 = vpack.c.b16 %v4882, %v4881
        %v4920 = vpack.c.b16 %v4884, %v4883
        %v4921 = vpack.c.b16 %v4886, %v4885
        %v4922 = vpack.c.b16 %v4888, %v4887
        %v4923 = vpack.c.b16 %v4890, %v4889
        %v4924 = vpack.c.b16 %v4892, %v4891
        %v4925 = vpack.c.b16 %v4894, %v4893
        %v4926 = vpack.c.b16 %v4896, %v4895
        %v4927 = vpack.c.b16 %v4898, %v4897
        %v4928 = vpack.c.b16 %v4900, %v4899
        %v4929 = vpack.c.b16 %v4902, %v4901
        %v4930 = vpack.c.b16 %v4904, %v4903
        %v4931 = vpack.c.b16 %v4906, %v4905
        %v4932 = vpack.c.b16 %v4908, %v4907
        %4957 = vmatprep.subr.bf16.mxu0 0
        %4958 = vmatpush1.bf16.msra.mxu0 %v4909
        %4959 = vmatprep.subr.bf16.mxu0 0
        %4960 = vmatpush1.bf16.msra.mxu0 %v4910
        %4961 = vmatprep.subr.bf16.mxu0 0
        %4962 = vmatpush1.bf16.msra.mxu0 %v4911
        %4963 = vmatprep.subr.bf16.mxu0 0
        %4964 = vmatpush1.bf16.msra.mxu0 %v4912
        %4965 = vmatprep.subr.bf16.mxu0 0
        %4966 = vmatpush1.bf16.msra.mxu0 %v4913
        %4967 = vmatprep.subr.bf16.mxu0 0
        %4968 = vmatpush1.bf16.msra.mxu0 %v4914
        %4969 = vmatprep.subr.bf16.mxu0 0
        %4970 = vmatpush1.bf16.msra.mxu0 %v4915
        %4971 = vmatprep.subr.bf16.mxu0 0
        %4972 = vmatpush1.bf16.msra.mxu0 %v4916
        %4973 = vmatprep.subr.bf16.mxu0 0
        %4974 = vmatpush1.bf16.msra.mxu0 %v4917
        %4975 = vmatprep.subr.bf16.mxu0 0
        %4976 = vmatpush1.bf16.msra.mxu0 %v4918
        %4977 = vmatprep.subr.bf16.mxu0 0
        %4978 = vmatpush1.bf16.msra.mxu0 %v4919
        %4979 = vmatprep.subr.bf16.mxu0 0
        %4980 = vmatpush1.bf16.msra.mxu0 %v4920
        %4981 = vmatprep.subr.bf16.mxu0 0
        %4982 = vmatpush1.bf16.msra.mxu0 %v4921
        %4983 = vmatprep.subr.bf16.mxu0 0
        %4984 = vmatpush1.bf16.msra.mxu0 %v4922
        %4985 = vmatprep.subr.bf16.mxu0 0
        %4986 = vmatpush1.bf16.msra.mxu0 %v4923
        %4987 = vmatprep.subr.bf16.mxu0 0
        %4988 = vmatpush1.bf16.msra.mxu0 %v4924
        %4989 = vmatprep.mubr.bf16.mxu0 %v4717
        %4990 = vmatmul.mubr.bf16.gmra.mrb[0].mxu0 %v4716
        %v4991 = vpop.f32.mrb[0].mxu0
        %v4992 = vadd.f32 0.0, %v4991
        %v4993 = vpop.f32.mrb[0].mxu0
        %v4994 = vpop.f32.mrb[0].mxu0
        %v4995 = vadd.f32 0.0, %v4994
        %v4996 = vpop.f32.mrb[0].mxu0
        %4997 = vmatprep.mubr.bf16.mxu0 %v4720
        %4998 = vmatmul.mubr.bf16.gmra.mrb[0].mxu0 %v4719
        %v4999 = vpop.f32.mrb[0].mxu0
        %v5000 = vadd.f32 0.0, %v4999
        %v5001 = vpop.f32.mrb[0].mxu0
        %v5002 = vpop.f32.mrb[0].mxu0
        %v5003 = vadd.f32 0.0, %v5002
        %v5004 = vpop.f32.mrb[0].mxu0
        %5005 = vmatprep.mubr.bf16.mxu0 %v4723
        %5006 = vmatmul.mubr.bf16.gmra.mrb[0].mxu0 %v4722
        %v5007 = vpop.f32.mrb[0].mxu0
        %v5008 = vadd.f32 0.0, %v5007
        %v5009 = vpop.f32.mrb[0].mxu0
        %v5010 = vpop.f32.mrb[0].mxu0
        %v5011 = vadd.f32 0.0, %v5010
        %v5012 = vpop.f32.mrb[0].mxu0
        %5013 = vmatprep.mubr.bf16.mxu0 %v4726
        %5014 = vmatmul.mubr.bf16.gmra.mrb[0].mxu0 %v4725
        %v5015 = vpop.f32.mrb[0].mxu0
        %v5016 = vadd.f32 0.0, %v5015
        %v5017 = vpop.f32.mrb[0].mxu0
        %v5018 = vpop.f32.mrb[0].mxu0
        %v5019 = vadd.f32 0.0, %v5018
        %v5020 = vpop.f32.mrb[0].mxu0
        %5021 = vmatprep.mubr.bf16.mxu0 %v4729
        %5022 = vmatmul.mubr.bf16.gmra.mrb[0].mxu0 %v4728
        %v5023 = vpop.f32.mrb[0].mxu0
        %v5024 = vadd.f32 0.0, %v5023
        %v5025 = vpop.f32.mrb[0].mxu0
        %v5026 = vpop.f32.mrb[0].mxu0
        %v5027 = vadd.f32 0.0, %v5026
        %v5028 = vpop.f32.mrb[0].mxu0
        %5029 = vmatprep.mubr.bf16.mxu0 %v4732
        %5030 = vmatmul.mubr.bf16.gmra.mrb[0].mxu0 %v4731
        %v5031 = vpop.f32.mrb[0].mxu0
        %v5032 = vadd.f32 0.0, %v5031
        %v5033 = vpop.f32.mrb[0].mxu0
        %v5034 = vpop.f32.mrb[0].mxu0
        %v5035 = vadd.f32 0.0, %v5034
        %v5036 = vpop.f32.mrb[0].mxu0
        %5037 = vmatprep.mubr.bf16.mxu0 %v4735
        %5038 = vmatmul.mubr.bf16.gmra.mrb[0].mxu0 %v4734
        %v5039 = vpop.f32.mrb[0].mxu0
        %v5040 = vadd.f32 0.0, %v5039
        %v5041 = vpop.f32.mrb[0].mxu0
        %v5042 = vpop.f32.mrb[0].mxu0
        %v5043 = vadd.f32 0.0, %v5042
        %v5044 = vpop.f32.mrb[0].mxu0
        %5045 = vmatprep.mubr.bf16.mxu0 %v4738
        %5046 = vmatmul.mubr.bf16.gmra.mrb[0].mxu0 %v4737
        %v5047 = vpop.f32.mrb[0].mxu0
        %v5048 = vadd.f32 0.0, %v5047
        %v5049 = vpop.f32.mrb[0].mxu0
        %v5050 = vpop.f32.mrb[0].mxu0
        %v5051 = vadd.f32 0.0, %v5050
        %v5052 = vpop.f32.mrb[0].mxu0
        %5053 = vmatprep.mubr.bf16.mxu0 %v4741
        %5054 = vmatmul.mubr.bf16.gmra.mrb[0].mxu0 %v4740
        %v5055 = vpop.f32.mrb[0].mxu0
        %v5056 = vadd.f32 0.0, %v5055
        %v5057 = vpop.f32.mrb[0].mxu0
        %v5058 = vpop.f32.mrb[0].mxu0
        %v5059 = vadd.f32 0.0, %v5058
        %v5060 = vpop.f32.mrb[0].mxu0
        %5061 = vmatprep.mubr.bf16.mxu0 %v4744
        %5062 = vmatmul.mubr.bf16.gmra.mrb[0].mxu0 %v4743
        %v5063 = vpop.f32.mrb[0].mxu0
        %v5064 = vadd.f32 0.0, %v5063
        %v5065 = vpop.f32.mrb[0].mxu0
        %v5066 = vpop.f32.mrb[0].mxu0
        %v5067 = vadd.f32 0.0, %v5066
        %v5068 = vpop.f32.mrb[0].mxu0
        %5069 = vmatprep.mubr.bf16.mxu0 %v4747
        %5070 = vmatmul.mubr.bf16.gmra.mrb[0].mxu0 %v4746
        %v5071 = vpop.f32.mrb[0].mxu0
        %v5072 = vadd.f32 0.0, %v5071
        %v5073 = vpop.f32.mrb[0].mxu0
        %v5074 = vpop.f32.mrb[0].mxu0
        %v5075 = vadd.f32 0.0, %v5074
        %v5076 = vpop.f32.mrb[0].mxu0
        %5077 = vmatprep.mubr.bf16.mxu0 %v4750
        %5078 = vmatmul.mubr.bf16.gmra.mrb[0].mxu0 %v4749
        %v5079 = vpop.f32.mrb[0].mxu0
        %v5080 = vadd.f32 0.0, %v5079
        %v5081 = vpop.f32.mrb[0].mxu0
        %v5082 = vpop.f32.mrb[0].mxu0
        %v5083 = vadd.f32 0.0, %v5082
        %v5084 = vpop.f32.mrb[0].mxu0
        %5085 = vmatprep.mubr.bf16.mxu0 %v4753
        %5086 = vmatmul.mubr.bf16.gmra.mrb[0].mxu0 %v4752
        %v5087 = vpop.f32.mrb[0].mxu0
        %v5088 = vadd.f32 0.0, %v5087
        %v5089 = vpop.f32.mrb[0].mxu0
        %v5090 = vpop.f32.mrb[0].mxu0
        %v5091 = vadd.f32 0.0, %v5090
        %v5092 = vpop.f32.mrb[0].mxu0
        %5093 = vmatprep.mubr.bf16.mxu0 %v4756
        %5094 = vmatmul.mubr.bf16.gmra.mrb[0].mxu0 %v4755
        %v5095 = vpop.f32.mrb[0].mxu0
        %v5096 = vadd.f32 0.0, %v5095
        %v5097 = vpop.f32.mrb[0].mxu0
        %v5098 = vpop.f32.mrb[0].mxu0
        %v5099 = vadd.f32 0.0, %v5098
        %v5100 = vpop.f32.mrb[0].mxu0
        %5101 = vmatprep.mubr.bf16.mxu0 %v4759
        %5102 = vmatmul.mubr.bf16.gmra.mrb[0].mxu0 %v4758
        %v5103 = vpop.f32.mrb[0].mxu0
        %v5104 = vadd.f32 0.0, %v5103
        %v5105 = vpop.f32.mrb[0].mxu0
        %v5106 = vpop.f32.mrb[0].mxu0
        %v5107 = vadd.f32 0.0, %v5106
        %v5108 = vpop.f32.mrb[0].mxu0
        %5109 = vmatprep.mubr.bf16.mxu0 %v4762
        %5110 = vmatmul.mubr.bf16.gmra.mrb[0].mxu0 %v4761
        %v5111 = vpop.f32.mrb[0].mxu0
        %v5112 = vadd.f32 0.0, %v5111
        %v5113 = vpop.f32.mrb[0].mxu0
        %v5114 = vpop.f32.mrb[0].mxu0
        %v5115 = vadd.f32 0.0, %v5114
        %v5116 = vpop.f32.mrb[0].mxu0
        %5117 = vdwg.mxu0
        %5118 = vmatprep.subr.bf16.mxu0 0
        %5119 = vmatpush1.bf16.msra.mxu0 %v4925
        %5120 = vmatprep.subr.bf16.mxu0 0
        %5121 = vmatpush1.bf16.msra.mxu0 %v4926
        %5122 = vmatprep.subr.bf16.mxu0 0
        %5123 = vmatpush1.bf16.msra.mxu0 %v4927
        %5124 = vmatprep.subr.bf16.mxu0 0
        %5125 = vmatpush1.bf16.msra.mxu0 %v4928
        %5126 = vmatprep.subr.bf16.mxu0 0
        %5127 = vmatpush1.bf16.msra.mxu0 %v4929
        %5128 = vmatprep.subr.bf16.mxu0 0
        %5129 = vmatpush1.bf16.msra.mxu0 %v4930
        %5130 = vmatprep.subr.bf16.mxu0 0
        %5131 = vmatpush1.bf16.msra.mxu0 %v4931
        %5132 = vmatprep.subr.bf16.mxu0 0
        %5133 = vmatpush1.bf16.msra.mxu0 %v4932
        %5134 = vmatprep.subr.bf16.mxu0 0
        %5135 = vmatpush1.bf16.msra.mxu0 0
        %5136 = vmatprep.subr.bf16.mxu0 0
        %5137 = vmatpush1.bf16.msra.mxu0 0
        %5138 = vmatprep.subr.bf16.mxu0 0
        %5139 = vmatpush1.bf16.msra.mxu0 0
        %5140 = vmatprep.subr.bf16.mxu0 0
        %5141 = vmatpush1.bf16.msra.mxu0 0
        %5142 = vmatprep.subr.bf16.mxu0 0
        %5143 = vmatpush1.bf16.msra.mxu0 0
        %5144 = vmatprep.subr.bf16.mxu0 0
        %5145 = vmatpush1.bf16.msra.mxu0 0
        %5146 = vmatprep.subr.bf16.mxu0 0
        %5147 = vmatpush1.bf16.msra.mxu0 0
        %5148 = vmatprep.subr.bf16.mxu0 0
        %5149 = vmatpush1.bf16.msra.mxu0 0
        %5150 = vmatprep.mubr.bf16.mxu0 0
        %5151 = vmatmul.mubr.bf16.gmra.mrb[0].mxu0 %v4718
        %v5152 = vpop.f32.mrb[0].mxu0
        %v5153 = vadd.f32 %v4992, %v5152
        %v5154 = vpop.f32.mrb[0].mxu0
        %v5155 = vpop.f32.mrb[0].mxu0
        %v5156 = vadd.f32 %v4995, %v5155
        %v5157 = vpop.f32.mrb[0].mxu0
        %5158 = vmatprep.mubr.bf16.mxu0 0
        %5159 = vmatmul.mubr.bf16.gmra.mrb[0].mxu0 %v4721
        %v5160 = vpop.f32.mrb[0].mxu0
        %v5161 = vadd.f32 %v5000, %v5160
        %v5162 = vpop.f32.mrb[0].mxu0
        %v5163 = vpop.f32.mrb[0].mxu0
        %v5164 = vadd.f32 %v5003, %v5163
        %v5165 = vpop.f32.mrb[0].mxu0
        %5166 = vmatprep.mubr.bf16.mxu0 0
        %5167 = vmatmul.mubr.bf16.gmra.mrb[0].mxu0 %v4724
        %v5168 = vpop.f32.mrb[0].mxu0
        %v5169 = vadd.f32 %v5008, %v5168
        %v5170 = vpop.f32.mrb[0].mxu0
        %v5171 = vpop.f32.mrb[0].mxu0
        %v5172 = vadd.f32 %v5011, %v5171
        %v5173 = vpop.f32.mrb[0].mxu0
        %5174 = vmatprep.mubr.bf16.mxu0 0
        %5175 = vmatmul.mubr.bf16.gmra.mrb[0].mxu0 %v4727
        %v5176 = vpop.f32.mrb[0].mxu0
        %v5177 = vadd.f32 %v5016, %v5176
        %v5178 = vpop.f32.mrb[0].mxu0
        %v5179 = vpop.f32.mrb[0].mxu0
        %v5180 = vadd.f32 %v5019, %v5179
        %v5181 = vpop.f32.mrb[0].mxu0
        %5182 = vmatprep.mubr.bf16.mxu0 0
        %5183 = vmatmul.mubr.bf16.gmra.mrb[0].mxu0 %v4730
        %v5184 = vpop.f32.mrb[0].mxu0
        %v5185 = vadd.f32 %v5024, %v5184
        %v5186 = vpop.f32.mrb[0].mxu0
        %v5187 = vpop.f32.mrb[0].mxu0
        %v5188 = vadd.f32 %v5027, %v5187
        %v5189 = vpop.f32.mrb[0].mxu0
        %5190 = vmatprep.mubr.bf16.mxu0 0
        %5191 = vmatmul.mubr.bf16.gmra.mrb[0].mxu0 %v4733
        %v5192 = vpop.f32.mrb[0].mxu0
        %v5193 = vadd.f32 %v5032, %v5192
        %v5194 = vpop.f32.mrb[0].mxu0
        %v5195 = vpop.f32.mrb[0].mxu0
        %v5196 = vadd.f32 %v5035, %v5195
        %v5197 = vpop.f32.mrb[0].mxu0
        %5198 = vmatprep.mubr.bf16.mxu0 0
        %5199 = vmatmul.mubr.bf16.gmra.mrb[0].mxu0 %v4736
        %v5200 = vpop.f32.mrb[0].mxu0
        %v5201 = vadd.f32 %v5040, %v5200
        %v5202 = vpop.f32.mrb[0].mxu0
        %v5203 = vpop.f32.mrb[0].mxu0
        %v5204 = vadd.f32 %v5043, %v5203
        %v5205 = vpop.f32.mrb[0].mxu0
        %5206 = vmatprep.mubr.bf16.mxu0 0
        %5207 = vmatmul.mubr.bf16.gmra.mrb[0].mxu0 %v4739
        %v5208 = vpop.f32.mrb[0].mxu0
        %v5209 = vadd.f32 %v5048, %v5208
        %v5210 = vpop.f32.mrb[0].mxu0
        %v5211 = vpop.f32.mrb[0].mxu0
        %v5212 = vadd.f32 %v5051, %v5211
        %v5213 = vpop.f32.mrb[0].mxu0
        %5214 = vmatprep.mubr.bf16.mxu0 0
        %5215 = vmatmul.mubr.bf16.gmra.mrb[0].mxu0 %v4742
        %v5216 = vpop.f32.mrb[0].mxu0
        %v5217 = vadd.f32 %v5056, %v5216
        %v5218 = vpop.f32.mrb[0].mxu0
        %v5219 = vpop.f32.mrb[0].mxu0
        %v5220 = vadd.f32 %v5059, %v5219
        %v5221 = vpop.f32.mrb[0].mxu0
        %5222 = vmatprep.mubr.bf16.mxu0 0
        %5223 = vmatmul.mubr.bf16.gmra.mrb[0].mxu0 %v4745
        %v5224 = vpop.f32.mrb[0].mxu0
        %v5225 = vadd.f32 %v5064, %v5224
        %v5226 = vpop.f32.mrb[0].mxu0
        %v5227 = vpop.f32.mrb[0].mxu0
        %v5228 = vadd.f32 %v5067, %v5227
        %v5229 = vpop.f32.mrb[0].mxu0
        %5230 = vmatprep.mubr.bf16.mxu0 0
        %5231 = vmatmul.mubr.bf16.gmra.mrb[0].mxu0 %v4748
        %v5232 = vpop.f32.mrb[0].mxu0
        %v5233 = vadd.f32 %v5072, %v5232
        %v5234 = vpop.f32.mrb[0].mxu0
        %v5235 = vpop.f32.mrb[0].mxu0
        %v5236 = vadd.f32 %v5075, %v5235
        %v5237 = vpop.f32.mrb[0].mxu0
        %5238 = vmatprep.mubr.bf16.mxu0 0
        %5239 = vmatmul.mubr.bf16.gmra.mrb[0].mxu0 %v4751
        %v5240 = vpop.f32.mrb[0].mxu0
        %v5241 = vadd.f32 %v5080, %v5240
        %v5242 = vpop.f32.mrb[0].mxu0
        %v5243 = vpop.f32.mrb[0].mxu0
        %v5244 = vadd.f32 %v5083, %v5243
        %v5245 = vpop.f32.mrb[0].mxu0
        %5246 = vmatprep.mubr.bf16.mxu0 0
        %5247 = vmatmul.mubr.bf16.gmra.mrb[0].mxu0 %v4754
        %v5248 = vpop.f32.mrb[0].mxu0
        %v5249 = vadd.f32 %v5088, %v5248
        %v5250 = vpop.f32.mrb[0].mxu0
        %v5251 = vpop.f32.mrb[0].mxu0
        %v5252 = vadd.f32 %v5091, %v5251
        %v5253 = vpop.f32.mrb[0].mxu0
        %5254 = vmatprep.mubr.bf16.mxu0 0
        %5255 = vmatmul.mubr.bf16.gmra.mrb[0].mxu0 %v4757
        %v5256 = vpop.f32.mrb[0].mxu0
        %v5257 = vadd.f32 %v5096, %v5256
        %v5258 = vpop.f32.mrb[0].mxu0
        %v5259 = vpop.f32.mrb[0].mxu0
        %v5260 = vadd.f32 %v5099, %v5259
        %v5261 = vpop.f32.mrb[0].mxu0
        %5262 = vmatprep.mubr.bf16.mxu0 0
        %5263 = vmatmul.mubr.bf16.gmra.mrb[0].mxu0 %v4760
        %v5264 = vpop.f32.mrb[0].mxu0
        %v5265 = vadd.f32 %v5104, %v5264
        %v5266 = vpop.f32.mrb[0].mxu0
        %v5267 = vpop.f32.mrb[0].mxu0
        %v5268 = vadd.f32 %v5107, %v5267
        %v5269 = vpop.f32.mrb[0].mxu0
        %5270 = vmatprep.mubr.bf16.mxu0 0
        %5271 = vmatmul.mubr.bf16.gmra.mrb[0].mxu0 %v4763
        %v5272 = vpop.f32.mrb[0].mxu0
        %v5273 = vadd.f32 %v5112, %v5272
        %v5274 = vpop.f32.mrb[0].mxu0
        %v5275 = vpop.f32.mrb[0].mxu0
        %v5276 = vadd.f32 %v5115, %v5275
        %v5277 = vpop.f32.mrb[0].mxu0
        %5278 = vdwg.mxu0
        %v5279 = vadd.f32 %v4590, %v5153
        %v5280 = vadd.f32 %v4593, %v5156
        %v5281 = vadd.f32 %v4598, %v5161
        %v5282 = vadd.f32 %v4601, %v5164
        %v5283 = vadd.f32 %v4606, %v5169
        %v5284 = vadd.f32 %v4609, %v5172
        %v5285 = vadd.f32 %v4614, %v5177
        %v5286 = vadd.f32 %v4617, %v5180
        %v5287 = vadd.f32 %v4622, %v5185
        %v5288 = vadd.f32 %v4625, %v5188
        %v5289 = vadd.f32 %v4630, %v5193
        %v5290 = vadd.f32 %v4633, %v5196
        %v5291 = vadd.f32 %v4638, %v5201
        %v5292 = vadd.f32 %v4641, %v5204
        %v5293 = vadd.f32 %v4646, %v5209
        %v5294 = vadd.f32 %v4649, %v5212
        %v5295 = vadd.f32 %v4654, %v5217
        %v5296 = vadd.f32 %v4657, %v5220
        %v5297 = vadd.f32 %v4662, %v5225
        %v5298 = vadd.f32 %v4665, %v5228
        %v5299 = vadd.f32 %v4670, %v5233
        %v5300 = vadd.f32 %v4673, %v5236
        %v5301 = vadd.f32 %v4678, %v5241
        %v5302 = vadd.f32 %v4681, %v5244
        %v5303 = vadd.f32 %v4686, %v5249
        %v5304 = vadd.f32 %v4689, %v5252
        %v5305 = vadd.f32 %v4694, %v5257
        %v5306 = vadd.f32 %v4697, %v5260
        %v5307 = vadd.f32 %v4702, %v5265
        %v5308 = vadd.f32 %v4705, %v5268
        %v5309 = vadd.f32 %v4710, %v5273
        %v5310 = vadd.f32 %v4713, %v5276
        %v5311 = vld [vmem:[%s430] sm:$0xf]
        %v5312 = vld [vmem:[%s430 + $0x4] sm:$0xf]
        %v5313 = vld [vmem:[%s430 + $0x8] sm:$0xf]
        %v5314 = vld [vmem:[%s430 + $0xc] sm:$0xf]
        %v5315 = vld [vmem:[%s430 + $0x10] sm:$0xf]
        %v5316 = vld [vmem:[%s430 + $0x14] sm:$0xf]
        %v5317 = vld [vmem:[%s430 + $0x18] sm:$0xf]
        %v5318 = vld [vmem:[%s430 + $0x1c] sm:$0xf]
        %v5319 = vld [vmem:[%s430 + $0x20] sm:$0xf]
        %v5320 = vld [vmem:[%s430 + $0x24] sm:$0xf]
        %v5321 = vld [vmem:[%s430 + $0x28] sm:$0xf]
        %v5322 = vld [vmem:[%s430 + $0x2c] sm:$0xf]
        %v5323 = vld [vmem:[%s430 + $0x30] sm:$0xf]
        %v5324 = vld [vmem:[%s430 + $0x34] sm:$0xf]
        %v5325 = vld [vmem:[%s430 + $0x38] sm:$0xf]
        %v5326 = vld [vmem:[%s430 + $0x3c] sm:$0xf]
        %v5327 = vld [vmem:[%s430 + $0x40] sm:$0xf]
        %v5328 = vld [vmem:[%s430 + $0x44] sm:$0xf]
        %v5329 = vld [vmem:[%s430 + $0x48] sm:$0xf]
        %v5330 = vld [vmem:[%s430 + $0x4c] sm:$0xf]
        %v5331 = vld [vmem:[%s430 + $0x50] sm:$0xf]
        %v5332 = vld [vmem:[%s430 + $0x54] sm:$0xf]
        %v5333 = vld [vmem:[%s430 + $0x58] sm:$0xf]
        %v5334 = vld [vmem:[%s430 + $0x5c] sm:$0xf]
        %v5335 = vld [vmem:[%s430 + $0x60] sm:$0xf]
        %v5336 = vld [vmem:[%s430 + $0x64] sm:$0xf]
        %v5337 = vld [vmem:[%s430 + $0x68] sm:$0xf]
        %v5338 = vld [vmem:[%s430 + $0x6c] sm:$0xf]
        %v5339 = vld [vmem:[%s430 + $0x70] sm:$0xf]
        %v5340 = vld [vmem:[%s430 + $0x74] sm:$0xf]
        %v5341 = vld [vmem:[%s430 + $0x78] sm:$0xf]
        %v5342 = vld [vmem:[%s430 + $0x7c] sm:$0xf]
        %v5343 = vld [vmem:[#allocation10] sm:$0xf]
        %v5344 = vld [vmem:[#allocation10 + $0x4] sm:$0xf]
        %v5345 = vld [vmem:[#allocation10 + $0x8] sm:$0xf]
        %v5346 = vld [vmem:[#allocation10 + $0xc] sm:$0xf]
        %v5347 = vld [vmem:[#allocation10 + $0x10] sm:$0xf]
        %v5348 = vld [vmem:[#allocation10 + $0x14] sm:$0xf]
        %v5349 = vld [vmem:[#allocation10 + $0x18] sm:$0xf]
        %v5350 = vld [vmem:[#allocation10 + $0x1c] sm:$0xf]
        %v5351 = vld [vmem:[#allocation10 + $0x20] sm:$0xf]
        %v5352 = vld [vmem:[#allocation10 + $0x24] sm:$0xf]
        %v5353 = vld [vmem:[#allocation10 + $0x28] sm:$0xf]
        %v5354 = vld [vmem:[#allocation10 + $0x2c] sm:$0xf]
        %v5355 = vld [vmem:[#allocation10 + $0x30] sm:$0xf]
        %v5356 = vld [vmem:[#allocation10 + $0x34] sm:$0xf]
        %v5357 = vld [vmem:[#allocation10 + $0x38] sm:$0xf]
        %v5358 = vld [vmem:[#allocation10 + $0x3c] sm:$0xf]
        %v5359 = vld [vmem:[%s494] sm:$0x1]
        %v5361 = vlaneseq
        %v5362 = vshrl.u32 %v5361, 7
        %v5363 = vsub.s32 0, %v5362
        %v5364 = vrot.slane %v5359, %v5363
        %v5398 = vunpack.c.l.b16 %v5311
        %v5399 = vunpack.c.l.b16 %v5312
        %v5400 = vunpack.c.l.b16 %v5313
        %v5401 = vunpack.c.l.b16 %v5314
        %v5402 = vunpack.c.l.b16 %v5315
        %v5403 = vunpack.c.l.b16 %v5316
        %v5404 = vunpack.c.l.b16 %v5317
        %v5405 = vunpack.c.l.b16 %v5318
        %v5406 = vunpack.c.l.b16 %v5319
        %v5407 = vunpack.c.l.b16 %v5320
        %v5408 = vunpack.c.l.b16 %v5321
        %v5409 = vunpack.c.l.b16 %v5322
        %v5410 = vunpack.c.l.b16 %v5323
        %v5411 = vunpack.c.l.b16 %v5324
        %v5412 = vunpack.c.l.b16 %v5325
        %v5413 = vunpack.c.l.b16 %v5326
        %v5414 = vunpack.c.l.b16 %v5327
        %v5415 = vunpack.c.l.b16 %v5328
        %v5416 = vunpack.c.l.b16 %v5329
        %v5417 = vunpack.c.l.b16 %v5330
        %v5418 = vunpack.c.l.b16 %v5331
        %v5419 = vunpack.c.l.b16 %v5332
        %v5420 = vunpack.c.l.b16 %v5333
        %v5421 = vunpack.c.l.b16 %v5334
        %v5422 = vunpack.c.l.b16 %v5335
        %v5423 = vunpack.c.l.b16 %v5336
        %v5424 = vunpack.c.l.b16 %v5337
        %v5425 = vunpack.c.l.b16 %v5338
        %v5426 = vunpack.c.l.b16 %v5339
        %v5427 = vunpack.c.l.b16 %v5340
        %v5428 = vunpack.c.l.b16 %v5341
        %v5429 = vunpack.c.l.b16 %v5342
        %v5430 = vpack.c.b16 %v5399, %v5398
        %v5431 = vpack.c.b16 %v5401, %v5400
        %v5432 = vpack.c.b16 %v5403, %v5402
        %v5433 = vpack.c.b16 %v5405, %v5404
        %v5434 = vpack.c.b16 %v5407, %v5406
        %v5435 = vpack.c.b16 %v5409, %v5408
        %v5436 = vpack.c.b16 %v5411, %v5410
        %v5437 = vpack.c.b16 %v5413, %v5412
        %v5438 = vpack.c.b16 %v5415, %v5414
        %v5439 = vpack.c.b16 %v5417, %v5416
        %v5440 = vpack.c.b16 %v5419, %v5418
        %v5441 = vpack.c.b16 %v5421, %v5420
        %v5442 = vpack.c.b16 %v5423, %v5422
        %v5443 = vpack.c.b16 %v5425, %v5424
        %v5444 = vpack.c.b16 %v5427, %v5426
        %v5445 = vpack.c.b16 %v5429, %v5428
        %v5478 = vunpack.c.l.b16 %v5343
        %v5479 = vunpack.c.l.b16 %v5344
        %v5480 = vunpack.c.l.b16 %v5345
        %v5481 = vunpack.c.l.b16 %v5346
        %v5482 = vunpack.c.l.b16 %v5347
        %v5483 = vunpack.c.l.b16 %v5348
        %v5484 = vunpack.c.l.b16 %v5349
        %v5485 = vunpack.c.l.b16 %v5350
        %v5486 = vunpack.c.l.b16 %v5351
        %v5487 = vunpack.c.l.b16 %v5352
        %v5488 = vunpack.c.l.b16 %v5353
        %v5489 = vunpack.c.l.b16 %v5354
        %v5490 = vunpack.c.l.b16 %v5355
        %v5491 = vunpack.c.l.b16 %v5356
        %v5492 = vunpack.c.l.b16 %v5357
        %v5493 = vunpack.c.l.b16 %v5358
        %v5494 = vpack.c.b16 %v5479, %v5478
        %v5495 = vpack.c.b16 %v5481, %v5480
        %v5496 = vpack.c.b16 %v5483, %v5482
        %v5497 = vpack.c.b16 %v5485, %v5484
        %v5498 = vpack.c.b16 %v5487, %v5486
        %v5499 = vpack.c.b16 %v5489, %v5488
        %v5500 = vpack.c.b16 %v5491, %v5490
        %v5501 = vpack.c.b16 %v5493, %v5492
        %5510 = vmatprep.subr.bf16.mxu0 0
        %5511 = vmatpush1.bf16.msra.mxu0 %v5494
        %5512 = vmatprep.subr.bf16.mxu0 0
        %5513 = vmatpush1.bf16.msra.mxu0 %v5495
        %5514 = vmatprep.subr.bf16.mxu0 0
        %5515 = vmatpush1.bf16.msra.mxu0 %v5496
        %5516 = vmatprep.subr.bf16.mxu0 0
        %5517 = vmatpush1.bf16.msra.mxu0 %v5497
        %5518 = vmatprep.subr.bf16.mxu0 0
        %5519 = vmatpush1.bf16.msra.mxu0 %v5498
        %5520 = vmatprep.subr.bf16.mxu0 0
        %5521 = vmatpush1.bf16.msra.mxu0 %v5499
        %5522 = vmatprep.subr.bf16.mxu0 0
        %5523 = vmatpush1.bf16.msra.mxu0 %v5500
        %5524 = vmatprep.subr.bf16.mxu0 0
        %5525 = vmatpush1.bf16.msra.mxu0 %v5501
        %5526 = vmatprep.subr.bf16.mxu0 0
        %5527 = vmatpush1.bf16.msra.mxu0 0
        %5528 = vmatprep.subr.bf16.mxu0 0
        %5529 = vmatpush1.bf16.msra.mxu0 0
        %5530 = vmatprep.subr.bf16.mxu0 0
        %5531 = vmatpush1.bf16.msra.mxu0 0
        %5532 = vmatprep.subr.bf16.mxu0 0
        %5533 = vmatpush1.bf16.msra.mxu0 0
        %5534 = vmatprep.subr.bf16.mxu0 0
        %5535 = vmatpush1.bf16.msra.mxu0 0
        %5536 = vmatprep.subr.bf16.mxu0 0
        %5537 = vmatpush1.bf16.msra.mxu0 0
        %5538 = vmatprep.subr.bf16.mxu0 0
        %5539 = vmatpush1.bf16.msra.mxu0 0
        %5540 = vmatprep.subr.bf16.mxu0 0
        %5541 = vmatpush1.bf16.msra.mxu0 0
        %5542 = vmatprep.mubr.bf16.mxu0 0
        %5543 = vmatmul.mubr.bf16.gmra.mrb[0].mxu0 %v5430
        %v5544 = vpop.f32.mrb[0].mxu0
        %v5545 = vadd.f32 %v5364, %v5544
        %v5546 = vpop.f32.mrb[0].mxu0
        %v5547 = vpop.f32.mrb[0].mxu0
        %v5548 = vadd.f32 %v5364, %v5547
        %v5549 = vpop.f32.mrb[0].mxu0
        %5550 = vmatprep.mubr.bf16.mxu0 0
        %5551 = vmatmul.mubr.bf16.gmra.mrb[0].mxu0 %v5431
        %v5552 = vpop.f32.mrb[0].mxu0
        %v5553 = vadd.f32 %v5364, %v5552
        %v5554 = vpop.f32.mrb[0].mxu0
        %v5555 = vpop.f32.mrb[0].mxu0
        %v5556 = vadd.f32 %v5364, %v5555
        %v5557 = vpop.f32.mrb[0].mxu0
        %5558 = vmatprep.mubr.bf16.mxu0 0
        %5559 = vmatmul.mubr.bf16.gmra.mrb[0].mxu0 %v5432
        %v5560 = vpop.f32.mrb[0].mxu0
        %v5561 = vadd.f32 %v5364, %v5560
        %v5562 = vpop.f32.mrb[0].mxu0
        %v5563 = vpop.f32.mrb[0].mxu0
        %v5564 = vadd.f32 %v5364, %v5563
        %v5565 = vpop.f32.mrb[0].mxu0
        %5566 = vmatprep.mubr.bf16.mxu0 0
        %5567 = vmatmul.mubr.bf16.gmra.mrb[0].mxu0 %v5433
        %v5568 = vpop.f32.mrb[0].mxu0
        %v5569 = vadd.f32 %v5364, %v5568
        %v5570 = vpop.f32.mrb[0].mxu0
        %v5571 = vpop.f32.mrb[0].mxu0
        %v5572 = vadd.f32 %v5364, %v5571
        %v5573 = vpop.f32.mrb[0].mxu0
        %5574 = vmatprep.mubr.bf16.mxu0 0
        %5575 = vmatmul.mubr.bf16.gmra.mrb[0].mxu0 %v5434
        %v5576 = vpop.f32.mrb[0].mxu0
        %v5577 = vadd.f32 %v5364, %v5576
        %v5578 = vpop.f32.mrb[0].mxu0
        %v5579 = vpop.f32.mrb[0].mxu0
        %v5580 = vadd.f32 %v5364, %v5579
        %v5581 = vpop.f32.mrb[0].mxu0
        %5582 = vmatprep.mubr.bf16.mxu0 0
        %5583 = vmatmul.mubr.bf16.gmra.mrb[0].mxu0 %v5435
        %v5584 = vpop.f32.mrb[0].mxu0
        %v5585 = vadd.f32 %v5364, %v5584
        %v5586 = vpop.f32.mrb[0].mxu0
        %v5587 = vpop.f32.mrb[0].mxu0
        %v5588 = vadd.f32 %v5364, %v5587
        %v5589 = vpop.f32.mrb[0].mxu0
        %5590 = vmatprep.mubr.bf16.mxu0 0
        %5591 = vmatmul.mubr.bf16.gmra.mrb[0].mxu0 %v5436
        %v5592 = vpop.f32.mrb[0].mxu0
        %v5593 = vadd.f32 %v5364, %v5592
        %v5594 = vpop.f32.mrb[0].mxu0
        %v5595 = vpop.f32.mrb[0].mxu0
        %v5596 = vadd.f32 %v5364, %v5595
        %v5597 = vpop.f32.mrb[0].mxu0
        %5598 = vmatprep.mubr.bf16.mxu0 0
        %5599 = vmatmul.mubr.bf16.gmra.mrb[0].mxu0 %v5437
        %v5600 = vpop.f32.mrb[0].mxu0
        %v5601 = vadd.f32 %v5364, %v5600
        %v5602 = vpop.f32.mrb[0].mxu0
        %v5603 = vpop.f32.mrb[0].mxu0
        %v5604 = vadd.f32 %v5364, %v5603
        %v5605 = vpop.f32.mrb[0].mxu0
        %5606 = vmatprep.mubr.bf16.mxu0 0
        %5607 = vmatmul.mubr.bf16.gmra.mrb[0].mxu0 %v5438
        %v5608 = vpop.f32.mrb[0].mxu0
        %v5609 = vadd.f32 %v5364, %v5608
        %v5610 = vpop.f32.mrb[0].mxu0
        %v5611 = vpop.f32.mrb[0].mxu0
        %v5612 = vadd.f32 %v5364, %v5611
        %v5613 = vpop.f32.mrb[0].mxu0
        %5614 = vmatprep.mubr.bf16.mxu0 0
        %5615 = vmatmul.mubr.bf16.gmra.mrb[0].mxu0 %v5439
        %v5616 = vpop.f32.mrb[0].mxu0
        %v5617 = vadd.f32 %v5364, %v5616
        %v5618 = vpop.f32.mrb[0].mxu0
        %v5619 = vpop.f32.mrb[0].mxu0
        %v5620 = vadd.f32 %v5364, %v5619
        %v5621 = vpop.f32.mrb[0].mxu0
        %5622 = vmatprep.mubr.bf16.mxu0 0
        %5623 = vmatmul.mubr.bf16.gmra.mrb[0].mxu0 %v5440
        %v5624 = vpop.f32.mrb[0].mxu0
        %v5625 = vadd.f32 %v5364, %v5624
        %v5626 = vpop.f32.mrb[0].mxu0
        %v5627 = vpop.f32.mrb[0].mxu0
        %v5628 = vadd.f32 %v5364, %v5627
        %v5629 = vpop.f32.mrb[0].mxu0
        %5630 = vmatprep.mubr.bf16.mxu0 0
        %5631 = vmatmul.mubr.bf16.gmra.mrb[0].mxu0 %v5441
        %v5632 = vpop.f32.mrb[0].mxu0
        %v5633 = vadd.f32 %v5364, %v5632
        %v5634 = vpop.f32.mrb[0].mxu0
        %v5635 = vpop.f32.mrb[0].mxu0
        %v5636 = vadd.f32 %v5364, %v5635
        %v5637 = vpop.f32.mrb[0].mxu0
        %5638 = vmatprep.mubr.bf16.mxu0 0
        %5639 = vmatmul.mubr.bf16.gmra.mrb[0].mxu0 %v5442
        %v5640 = vpop.f32.mrb[0].mxu0
        %v5641 = vadd.f32 %v5364, %v5640
        %v5642 = vpop.f32.mrb[0].mxu0
        %v5643 = vpop.f32.mrb[0].mxu0
        %v5644 = vadd.f32 %v5364, %v5643
        %v5645 = vpop.f32.mrb[0].mxu0
        %5646 = vmatprep.mubr.bf16.mxu0 0
        %5647 = vmatmul.mubr.bf16.gmra.mrb[0].mxu0 %v5443
        %v5648 = vpop.f32.mrb[0].mxu0
        %v5649 = vadd.f32 %v5364, %v5648
        %v5650 = vpop.f32.mrb[0].mxu0
        %v5651 = vpop.f32.mrb[0].mxu0
        %v5652 = vadd.f32 %v5364, %v5651
        %v5653 = vpop.f32.mrb[0].mxu0
        %5654 = vmatprep.mubr.bf16.mxu0 0
        %5655 = vmatmul.mubr.bf16.gmra.mrb[0].mxu0 %v5444
        %v5656 = vpop.f32.mrb[0].mxu0
        %v5657 = vadd.f32 %v5364, %v5656
        %v5658 = vpop.f32.mrb[0].mxu0
        %v5659 = vpop.f32.mrb[0].mxu0
        %v5660 = vadd.f32 %v5364, %v5659
        %v5661 = vpop.f32.mrb[0].mxu0
        %5662 = vmatprep.mubr.bf16.mxu0 0
        %5663 = vmatmul.mubr.bf16.gmra.mrb[0].mxu0 %v5445
        %v5664 = vpop.f32.mrb[0].mxu0
        %v5665 = vadd.f32 %v5364, %v5664
        %v5666 = vpop.f32.mrb[0].mxu0
        %v5667 = vpop.f32.mrb[0].mxu0
        %v5668 = vadd.f32 %v5364, %v5667
        %v5669 = vpop.f32.mrb[0].mxu0
        %5670 = vdwg.mxu0
        %v5671 = vadd.f32 %v5279, %v5545
        %v5672 = vadd.f32 %v5280, %v5548
        %v5673 = vadd.f32 %v5281, %v5553
        %v5674 = vadd.f32 %v5282, %v5556
        %v5675 = vadd.f32 %v5283, %v5561
        %v5676 = vadd.f32 %v5284, %v5564
        %v5677 = vadd.f32 %v5285, %v5569
        %v5678 = vadd.f32 %v5286, %v5572
        %v5679 = vadd.f32 %v5287, %v5577
        %v5680 = vadd.f32 %v5288, %v5580
        %v5681 = vadd.f32 %v5289, %v5585
        %v5682 = vadd.f32 %v5290, %v5588
        %v5683 = vadd.f32 %v5291, %v5593
        %v5684 = vadd.f32 %v5292, %v5596
        %v5685 = vadd.f32 %v5293, %v5601
        %v5686 = vadd.f32 %v5294, %v5604
        %v5687 = vadd.f32 %v5295, %v5609
        %v5688 = vadd.f32 %v5296, %v5612
        %v5689 = vadd.f32 %v5297, %v5617
        %v5690 = vadd.f32 %v5298, %v5620
        %v5691 = vadd.f32 %v5299, %v5625
        %v5692 = vadd.f32 %v5300, %v5628
        %v5693 = vadd.f32 %v5301, %v5633
        %v5694 = vadd.f32 %v5302, %v5636
        %v5695 = vadd.f32 %v5303, %v5641
        %v5696 = vadd.f32 %v5304, %v5644
        %v5697 = vadd.f32 %v5305, %v5649
        %v5698 = vadd.f32 %v5306, %v5652
        %v5699 = vadd.f32 %v5307, %v5657
        %v5700 = vadd.f32 %v5308, %v5660
        %v5701 = vadd.f32 %v5309, %v5665
        %v5702 = vadd.f32 %v5310, %v5668
        %v5703 = vld [vmem:[%s503] sm:$0x1]
        %v5705 = vlaneseq
        %v5706 = vshrl.u32 %v5705, 7
        %v5707 = vsub.s32 0, %v5706
        %v5708 = vrot.slane %v5703, %v5707
        %v5710 = vmul.f32 %v5671, %v5708
        %v5711 = vmul.f32 %v5672, %v5708
        %v5712 = vmul.f32 %v5673, %v5708
        %v5713 = vmul.f32 %v5674, %v5708
        %v5714 = vmul.f32 %v5675, %v5708
        %v5715 = vmul.f32 %v5676, %v5708
        %v5716 = vmul.f32 %v5677, %v5708
        %v5717 = vmul.f32 %v5678, %v5708
        %v5718 = vmul.f32 %v5679, %v5708
        %v5719 = vmul.f32 %v5680, %v5708
        %v5720 = vmul.f32 %v5681, %v5708
        %v5721 = vmul.f32 %v5682, %v5708
        %v5722 = vmul.f32 %v5683, %v5708
        %v5723 = vmul.f32 %v5684, %v5708
        %v5724 = vmul.f32 %v5685, %v5708
        %v5725 = vmul.f32 %v5686, %v5708
        %v5726 = vmul.f32 %v5687, %v5708
        %v5727 = vmul.f32 %v5688, %v5708
        %v5728 = vmul.f32 %v5689, %v5708
        %v5729 = vmul.f32 %v5690, %v5708
        %v5730 = vmul.f32 %v5691, %v5708
        %v5731 = vmul.f32 %v5692, %v5708
        %v5732 = vmul.f32 %v5693, %v5708
        %v5733 = vmul.f32 %v5694, %v5708
        %v5734 = vmul.f32 %v5695, %v5708
        %v5735 = vmul.f32 %v5696, %v5708
        %v5736 = vmul.f32 %v5697, %v5708
        %v5737 = vmul.f32 %v5698, %v5708
        %v5738 = vmul.f32 %v5699, %v5708
        %v5739 = vmul.f32 %v5700, %v5708
        %v5740 = vmul.f32 %v5701, %v5708
        %v5741 = vmul.f32 %v5702, %v5708
        %v5742 = vld [vmem:[%s506] sm:$0x1]
        %v5744 = vlaneseq
        %v5745 = vshrl.u32 %v5744, 7
        %v5746 = vsub.s32 0, %v5745
        %v5747 = vrot.slane %v5742, %v5746
        %v5749 = vadd.f32 %v5710, %v5747
        %v5750 = vadd.f32 %v5711, %v5747
        %v5751 = vadd.f32 %v5712, %v5747
        %v5752 = vadd.f32 %v5713, %v5747
        %v5753 = vadd.f32 %v5714, %v5747
        %v5754 = vadd.f32 %v5715, %v5747
        %v5755 = vadd.f32 %v5716, %v5747
        %v5756 = vadd.f32 %v5717, %v5747
        %v5757 = vadd.f32 %v5718, %v5747
        %v5758 = vadd.f32 %v5719, %v5747
        %v5759 = vadd.f32 %v5720, %v5747
        %v5760 = vadd.f32 %v5721, %v5747
        %v5761 = vadd.f32 %v5722, %v5747
        %v5762 = vadd.f32 %v5723, %v5747
        %v5763 = vadd.f32 %v5724, %v5747
        %v5764 = vadd.f32 %v5725, %v5747
        %v5765 = vadd.f32 %v5726, %v5747
        %v5766 = vadd.f32 %v5727, %v5747
        %v5767 = vadd.f32 %v5728, %v5747
        %v5768 = vadd.f32 %v5729, %v5747
        %v5769 = vadd.f32 %v5730, %v5747
        %v5770 = vadd.f32 %v5731, %v5747
        %v5771 = vadd.f32 %v5732, %v5747
        %v5772 = vadd.f32 %v5733, %v5747
        %v5773 = vadd.f32 %v5734, %v5747
        %v5774 = vadd.f32 %v5735, %v5747
        %v5775 = vadd.f32 %v5736, %v5747
        %v5776 = vadd.f32 %v5737, %v5747
        %v5777 = vadd.f32 %v5738, %v5747
        %v5778 = vadd.f32 %v5739, %v5747
        %v5779 = vadd.f32 %v5740, %v5747
        %v5780 = vadd.f32 %v5741, %v5747
        %v5781 = vmax.f32 %v5749, 0.0
        %v5782 = vmax.f32 %v5750, 0.0
        %v5783 = vmax.f32 %v5751, 0.0
        %v5784 = vmax.f32 %v5752, 0.0
        %v5785 = vmax.f32 %v5753, 0.0
        %v5786 = vmax.f32 %v5754, 0.0
        %v5787 = vmax.f32 %v5755, 0.0
        %v5788 = vmax.f32 %v5756, 0.0
        %v5789 = vmax.f32 %v5757, 0.0
        %v5790 = vmax.f32 %v5758, 0.0
        %v5791 = vmax.f32 %v5759, 0.0
        %v5792 = vmax.f32 %v5760, 0.0
        %v5793 = vmax.f32 %v5761, 0.0
        %v5794 = vmax.f32 %v5762, 0.0
        %v5795 = vmax.f32 %v5763, 0.0
        %v5796 = vmax.f32 %v5764, 0.0
        %v5797 = vmax.f32 %v5765, 0.0
        %v5798 = vmax.f32 %v5766, 0.0
        %v5799 = vmax.f32 %v5767, 0.0
        %v5800 = vmax.f32 %v5768, 0.0
        %v5801 = vmax.f32 %v5769, 0.0
        %v5802 = vmax.f32 %v5770, 0.0
        %v5803 = vmax.f32 %v5771, 0.0
        %v5804 = vmax.f32 %v5772, 0.0
        %v5805 = vmax.f32 %v5773, 0.0
        %v5806 = vmax.f32 %v5774, 0.0
        %v5807 = vmax.f32 %v5775, 0.0
        %v5808 = vmax.f32 %v5776, 0.0
        %v5809 = vmax.f32 %v5777, 0.0
        %v5810 = vmax.f32 %v5778, 0.0
        %v5811 = vmax.f32 %v5779, 0.0
        %v5812 = vmax.f32 %v5780, 0.0
        %v5813 = vpack.c.bf16 %v5782, %v5781
        %v5814 = vpack.c.bf16 %v5784, %v5783
        %v5815 = vpack.c.bf16 %v5786, %v5785
        %v5816 = vpack.c.bf16 %v5788, %v5787
        %v5817 = vpack.c.bf16 %v5790, %v5789
        %v5818 = vpack.c.bf16 %v5792, %v5791
        %v5819 = vpack.c.bf16 %v5794, %v5793
        %v5820 = vpack.c.bf16 %v5796, %v5795
        %v5821 = vpack.c.bf16 %v5798, %v5797
        %v5822 = vpack.c.bf16 %v5800, %v5799
        %v5823 = vpack.c.bf16 %v5802, %v5801
        %v5824 = vpack.c.bf16 %v5804, %v5803
        %v5825 = vpack.c.bf16 %v5806, %v5805
        %v5826 = vpack.c.bf16 %v5808, %v5807
        %v5827 = vpack.c.bf16 %v5810, %v5809
        %v5828 = vpack.c.bf16 %v5812, %v5811
        %v5845 = vunpack.c.l.b16 %v5813
        %v5846 = vunpack.c.h.b16 %v5813
        %v5847 = vunpack.c.l.b16 %v5814
        %v5848 = vunpack.c.h.b16 %v5814
        %v5849 = vunpack.c.l.b16 %v5815
        %v5850 = vunpack.c.h.b16 %v5815
        %v5851 = vunpack.c.l.b16 %v5816
        %v5852 = vunpack.c.h.b16 %v5816
        %v5853 = vunpack.c.l.b16 %v5817
        %v5854 = vunpack.c.h.b16 %v5817
        %v5855 = vunpack.c.l.b16 %v5818
        %v5856 = vunpack.c.h.b16 %v5818
        %v5857 = vunpack.c.l.b16 %v5819
        %v5858 = vunpack.c.h.b16 %v5819
        %v5859 = vunpack.c.l.b16 %v5820
        %v5860 = vunpack.c.h.b16 %v5820
        %v5861 = vunpack.c.l.b16 %v5821
        %v5862 = vunpack.c.h.b16 %v5821
        %v5863 = vunpack.c.l.b16 %v5822
        %v5864 = vunpack.c.h.b16 %v5822
        %v5865 = vunpack.c.l.b16 %v5823
        %v5866 = vunpack.c.h.b16 %v5823
        %v5867 = vunpack.c.l.b16 %v5824
        %v5868 = vunpack.c.h.b16 %v5824
        %v5869 = vunpack.c.l.b16 %v5825
        %v5870 = vunpack.c.h.b16 %v5825
        %v5871 = vunpack.c.l.b16 %v5826
        %v5872 = vunpack.c.h.b16 %v5826
        %v5873 = vunpack.c.l.b16 %v5827
        %v5874 = vunpack.c.h.b16 %v5827
        %v5875 = vunpack.c.l.b16 %v5828
        %v5876 = vunpack.c.h.b16 %v5828
        %v5877 = vpack.c.b16 %v5845, %v5845
        %v5878 = vpack.c.b16 %v5846, %v5846
        %v5879 = vpack.c.b16 %v5847, %v5847
        %v5880 = vpack.c.b16 %v5848, %v5848
        %v5881 = vpack.c.b16 %v5849, %v5849
        %v5882 = vpack.c.b16 %v5850, %v5850
        %v5883 = vpack.c.b16 %v5851, %v5851
        %v5884 = vpack.c.b16 %v5852, %v5852
        %v5885 = vpack.c.b16 %v5853, %v5853
        %v5886 = vpack.c.b16 %v5854, %v5854
        %v5887 = vpack.c.b16 %v5855, %v5855
        %v5888 = vpack.c.b16 %v5856, %v5856
        %v5889 = vpack.c.b16 %v5857, %v5857
        %v5890 = vpack.c.b16 %v5858, %v5858
        %v5891 = vpack.c.b16 %v5859, %v5859
        %v5892 = vpack.c.b16 %v5860, %v5860
        %v5893 = vpack.c.b16 %v5861, %v5861
        %v5894 = vpack.c.b16 %v5862, %v5862
        %v5895 = vpack.c.b16 %v5863, %v5863
        %v5896 = vpack.c.b16 %v5864, %v5864
        %v5897 = vpack.c.b16 %v5865, %v5865
        %v5898 = vpack.c.b16 %v5866, %v5866
        %v5899 = vpack.c.b16 %v5867, %v5867
        %v5900 = vpack.c.b16 %v5868, %v5868
        %v5901 = vpack.c.b16 %v5869, %v5869
        %v5902 = vpack.c.b16 %v5870, %v5870
        %v5903 = vpack.c.b16 %v5871, %v5871
        %v5904 = vpack.c.b16 %v5872, %v5872
        %v5905 = vpack.c.b16 %v5873, %v5873
        %v5906 = vpack.c.b16 %v5874, %v5874
        %v5907 = vpack.c.b16 %v5875, %v5875
        %v5908 = vpack.c.b16 %v5876, %v5876
        %5941 = vst [vmem:[%s491] sm:$0xf] %v5877
        %5942 = vst [vmem:[%s491 + $0x4] sm:$0xf] %v5878
        %5943 = vst [vmem:[%s491 + $0x8] sm:$0xf] %v5879
        %5944 = vst [vmem:[%s491 + $0xc] sm:$0xf] %v5880
        %5945 = vst [vmem:[%s491 + $0x10] sm:$0xf] %v5881
        %5946 = vst [vmem:[%s491 + $0x14] sm:$0xf] %v5882
        %5947 = vst [vmem:[%s491 + $0x18] sm:$0xf] %v5883
        %5948 = vst [vmem:[%s491 + $0x1c] sm:$0xf] %v5884
        %5949 = vst [vmem:[%s491 + $0x20] sm:$0xf] %v5885
        %5950 = vst [vmem:[%s491 + $0x24] sm:$0xf] %v5886
        %5951 = vst [vmem:[%s491 + $0x28] sm:$0xf] %v5887
        %5952 = vst [vmem:[%s491 + $0x2c] sm:$0xf] %v5888
        %5953 = vst [vmem:[%s491 + $0x30] sm:$0xf] %v5889
        %5954 = vst [vmem:[%s491 + $0x34] sm:$0xf] %v5890
        %5955 = vst [vmem:[%s491 + $0x38] sm:$0xf] %v5891
        %5956 = vst [vmem:[%s491 + $0x3c] sm:$0xf] %v5892
        %5957 = vst [vmem:[%s491 + $0x40] sm:$0xf] %v5893
        %5958 = vst [vmem:[%s491 + $0x44] sm:$0xf] %v5894
        %5959 = vst [vmem:[%s491 + $0x48] sm:$0xf] %v5895
        %5960 = vst [vmem:[%s491 + $0x4c] sm:$0xf] %v5896
        %5961 = vst [vmem:[%s491 + $0x50] sm:$0xf] %v5897
        %5962 = vst [vmem:[%s491 + $0x54] sm:$0xf] %v5898
        %5963 = vst [vmem:[%s491 + $0x58] sm:$0xf] %v5899
        %5964 = vst [vmem:[%s491 + $0x5c] sm:$0xf] %v5900
        %5965 = vst [vmem:[%s491 + $0x60] sm:$0xf] %v5901
        %5966 = vst [vmem:[%s491 + $0x64] sm:$0xf] %v5902
        %5967 = vst [vmem:[%s491 + $0x68] sm:$0xf] %v5903
        %5968 = vst [vmem:[%s491 + $0x6c] sm:$0xf] %v5904
        %5969 = vst [vmem:[%s491 + $0x70] sm:$0xf] %v5905
        %5970 = vst [vmem:[%s491 + $0x74] sm:$0xf] %v5906
        %5971 = vst [vmem:[%s491 + $0x78] sm:$0xf] %v5907
        %5972 = vst [vmem:[%s491 + $0x7c] sm:$0xf] %v5908
        %s5973 = sand.u32 %s286, 1
        %s5974 = scalar_lea.sflag [#allocation6], %s5973
        %s5975 = sand.u32 %s286, 1
        %s5976 = smul.addr %s5975, 128
        %s5977 = scalar_lea.vmem [#allocation12], %s5976
        // Predicated region
        $region73: #{tpu_custom_call.1} parent=55 // pred_check
          %p5978 = pneg %p296
        $region74: #{tpu_custom_call.1} parent=55 // pred_check_branch
          %5980 = sbr.rel (%p5978) target = $region76
        $region75: #{tpu_custom_call.1} parent=55 // pred_region
          %s5982 = ssub.s32 2048, 2048
          %5983 = vsyncadd %s5974, %s5982
          %s5984 = smul.addr %s32, 32
          %s5985 = smul.addr %s33, 32
          %s5986 = sadd.s32 %s5984, %s5985
          %s5987 = smul.addr %s5986, 64
          %s5988 = scalar_lea.hbm %s9, %s5987
          %s5989 = sshll.u32 %s5977, 4
          %s5990 = int_to_ptr.vmem [resolvable:$true] %s5989
          %5995 = dma.vmem_to_hbm [thread:$0]  %s5990, 2048, %s5988, %s5974, 64, 64, 4
        $region76: #{tpu_custom_call.1} parent=55 // pred_fallthru
          _
      $region56: #{tpu_custom_call.1} parent=5 // pred_fallthru
        _
      %p5996 = scmp.le.s32.totalorder 2, %s23
      // Predicated region
      $region77: #{tpu_custom_call.1} parent=5 // pred_check
        %p5997 = pneg %p5996
      $region78: #{tpu_custom_call.1} parent=5 // pred_check_branch
        %5999 = sbr.rel (%p5997) target = $region80
      $region79: #{tpu_custom_call.1} parent=5 // pred_region
        %s6000 = ssub.s32 %s23, 2
        // Predicated region
        $region81: #{tpu_custom_call.1} parent=79 // pred_check
          %p6001 = pneg %p302
        $region82: #{tpu_custom_call.1} parent=79 // pred_check_branch
          %6003 = sbr.rel (%p6001) target = $region84
        $region83: #{tpu_custom_call.1} parent=79 // pred_region
          %s6004 = sand.u32 %s287, 1
          %s6005 = scalar_lea.sflag [#allocation6], %s6004
          %s6006 = sand.u32 %s287, 1
          %s6007 = smul.addr %s6006, 128
          %s6008 = scalar_lea.vmem [#allocation12], %s6007
          %6009 = dma.done %s6005, 2048
        $region84: #{tpu_custom_call.1} parent=79 // pred_fallthru
          _
      $region80: #{tpu_custom_call.1} parent=5 // pred_fallthru
        _
    $region6: #{tpu_custom_call.1} parent=1 // loop_footer
      %s27 = sadd.s32 1, %s23
    $region7: #{tpu_custom_call.1} parent=1 // loop_footer_branch
      %22 = sbr.rel target = $region3
    $region8: #{tpu_custom_call.1} parent=1 // loop_exit
      _
    %6010 = vsyncpa [#allocation5], 1
    %s6011 = scalar_lea.sflag [#allocation5], 1
    %6012 = vsyncpa %s6011, 1
    %6013 = vsyncpa [#allocation8], 1
    %6014 = vsyncpa [#allocation11], 1
    %6015 = vsyncpa [#allocation6], 1
    %s6016 = scalar_lea.sflag [#allocation6], 1
    %6017 = vsyncpa %s6016, 1

</llo_original>
